<compile_context>
chip_gen: v5e
topology: v5e:2x2
jax: 0.10.0
libtpu: 0.0.40
codegen_flags: <defaults>
</compile_context>

<pallas_src>
import functools

import jax
import jax.numpy as jnp
from jax import lax
from jax.experimental import pallas as pl
from jax.experimental.pallas import tpu as pltpu


def _round_up(x, m):
    return (x + m - 1) // m * m


def _pick_batch_block(B, cap=256):
    """Largest multiple-of-8 divisor of B (<= cap); when B permits two blocks,
    keep Bb <= B/2 so the batch grid has >= 2 steps (v7x dual-TC sharding)."""
    if B < 16 or B % 8 != 0:
        return B
    limit = min(cap, B // 2)
    best = 8
    for bb in range(8, limit + 1, 8):
        if B % bb == 0:
            best = bb
    return best


def decoder_kernel(emb_ref, h0_ref, enc_ref,
                   wih_ref, bgx_ref, whh_ref, bhn_ref,
                   wac_ref, wad_ref, battn_ref,
                   wfc_ref, bfc_ref,
                   logits_ref, hidden_ref,
                   dec_scratch, out_scratch):
    # emb_ref    : [T, Bb, E]  bf16, time-major
    # h0_ref     : [Bb, Hp] f32          (hidden padded to a 128-lane multiple)
    # enc_ref    : [Bb, S, Hp] bf16
    # wih_ref    : [E, 3Hp] bf16   bgx_ref: [1, 3Hp] f32  (b_ih + b_hr/b_hz; b_in)
    # whh_ref    : [Hp, 3Hp] f32   bhn_ref: [1, Hp] f32   (b_hn, inside r-gate)
    # wac_ref    : [Hp, 2H] bf16 (attn_fc rows for c_t)   wad_ref: rows for dec
    # battn_ref  : [1, 2H] f32
    # wfc_ref    : [2H, Nt] bf16   bfc_ref: [1, Nt] f32   (vocab tile j)
    # logits_ref : [Bb, T, Nt] bf16       hidden_ref: [Bb, Hp] f32
    # dec_scratch: [T, Bb, Hp] f32 VMEM   out_scratch: [Bb*T, 2H] bf16 VMEM
    j = pl.program_id(1)
    T, Bb, E = emb_ref.shape
    Hp = h0_ref.shape[1]

    # GRU recurrence + attention + attn_fc run once per batch block (j == 0);
    # the per-vocab-tile fc below reuses out_scratch for j > 0.
    @pl.when(j == 0)
    def _():
        # hoisted input-side gate pre-activations (biases folded in prepare_params)
        gx_all = (jnp.dot(emb_ref[...].reshape(T * Bb, E), wih_ref[...],
                          preferred_element_type=jnp.float32)
                  + bgx_ref[...]).reshape(T, Bb, 3 * Hp)
        whh = whh_ref[...]                                   # hoisted
        bhn = jnp.broadcast_to(bhn_ref[...], (Bb, Hp))       # hoisted broadcast

        h = h0_ref[...]
        for t in range(T):                                   # static -> unrolled
            gx = gx_all[t]                                   # [Bb, 3Hp]
            gh = jnp.dot(h, whh, preferred_element_type=jnp.float32)
            r = jax.nn.sigmoid(gx[:, 0:Hp] + gh[:, 0:Hp])
            z = jax.nn.sigmoid(gx[:, Hp:2 * Hp] + gh[:, Hp:2 * Hp])
            n = jnp.tanh(gx[:, 2 * Hp:] + r * (gh[:, 2 * Hp:] + bhn))
            h = (1.0 - z) * n + z * h
            dec_scratch[t] = h                               # contiguous [Bb,Hp] store

        # one layout fix-up per batch block (off the serial critical path)
        dec = jnp.swapaxes(dec_scratch[...], 0, 1)           # [Bb, T, Hp]
        dec_bf = dec.astype(jnp.bfloat16)
        enc_bf = enc_ref[...]                                # already bf16

        # attention: softmax over encoder positions S
        scores = jnp.einsum("bth,bsh->bts", dec_bf, enc_bf,
                            preferred_element_type=jnp.float32)
        scores = scores - jnp.max(scores, axis=-1, keepdims=True)
        e = jnp.exp(scores)
        attn = e * pl.reciprocal(jnp.sum(e, axis=-1, keepdims=True), approx=True)
        c_t = jnp.einsum("bts,bsh->bth", attn.astype(jnp.bfloat16), enc_bf,
                         preferred_element_type=jnp.float32)  # [Bb, T, Hp]

        # attn_fc + tanh on [c_t, dec] without materializing the concat
        c_flat = c_t.reshape(Bb * T, Hp).astype(jnp.bfloat16)
        d_flat = dec_bf.reshape(Bb * T, Hp)
        out = jnp.tanh(
            jnp.dot(c_flat, wac_ref[...], preferred_element_type=jnp.float32)
            + jnp.dot(d_flat, wad_ref[...], preferred_element_type=jnp.float32)
            + battn_ref[...])                                 # [Bb*T, 2H]
        out_scratch[...] = out.astype(jnp.bfloat16)

    # final GRU hidden state = last recurrence step (cheap VMEM copy every j)
    hidden_ref[...] = dec_scratch[T - 1]

    # fc on vocab tile j: lane-dense bf16 logits
    logits = (jnp.dot(out_scratch[...], wfc_ref[...],
                      preferred_element_type=jnp.float32)
              + bfc_ref[...])                                 # [Bb*T, Nt]
    logits_ref[...] = logits.reshape(Bb, T, -1).astype(logits_ref.dtype)


def prepare_params(params, nt_cap=2048):
    """One-time re-layout of PyTorch-style weights into kernel layout:
    gate blocks padded to lane-aligned Hp, biases folded, vocab padded to the
    vocab tile size, big matmul operands in bf16."""
    H = params["gru_w_hh"].shape[1]
    V = params["fc_w"].shape[0]
    Hp = _round_up(max(H, 128), 128)
    Nt = min(_round_up(max(V, 128), 128), nt_cap)     # vocab tile (lane multiple)
    Vp = _round_up(max(V, 128), Nt)                   # padded vocab

    bih, bhh = params["gru_b_ih"], params["gru_b_hh"]

    wih_small = params["gru_w_ih"].T                  # [E, 3H]
    whh_small = params["gru_w_hh"].T                  # [H, 3H]
    E = wih_small.shape[0]
    wih_t = jnp.zeros((E, 3 * Hp), jnp.float32)
    whh_t = jnp.zeros((Hp, 3 * Hp), jnp.float32)
    for g in range(3):
        wih_t = wih_t.at[:, g * Hp:g * Hp + H].set(wih_small[:, g * H:(g + 1) * H])
        whh_t = whh_t.at[:H, g * Hp:g * Hp + H].set(whh_small[:, g * H:(g + 1) * H])

    # fold b_ih (all gates) and b_hh (r, z gates) into the hoisted input matmul
    # bias; b_hn stays separate because PyTorch applies it inside the r-gating.
    b_gx = jnp.zeros((1, 3 * Hp), jnp.float32)
    b_gx = b_gx.at[0, 0 * Hp:0 * Hp + H].set(bih[0:H] + bhh[0:H])            # r
    b_gx = b_gx.at[0, 1 * Hp:1 * Hp + H].set(bih[H:2 * H] + bhh[H:2 * H])    # z
    b_gx = b_gx.at[0, 2 * Hp:2 * Hp + H].set(bih[2 * H:3 * H])               # n
    b_hn = jnp.zeros((1, Hp), jnp.float32).at[0, :H].set(bhh[2 * H:3 * H])

    wattn_t = params["attn_fc_w"].T                   # [2H, 2H]
    wac = jnp.zeros((Hp, 2 * H), jnp.float32).at[:H].set(wattn_t[:H])
    wad = jnp.zeros((Hp, 2 * H), jnp.float32).at[:H].set(wattn_t[H:])

    wfc_t = params["fc_w"].T                          # [2H, V]
    wfc_p = jnp.zeros((2 * H, Vp), jnp.float32).at[:, :V].set(wfc_t)
    bfc_p = jnp.zeros((1, Vp), jnp.float32).at[:, :V].set(params["fc_b"][None, :])

    return {
        "embedding": params["embedding"].astype(jnp.bfloat16),   # [V, E] bf16
        "wih_t": wih_t.astype(jnp.bfloat16),                     # [E, 3Hp]
        "b_gx": b_gx,                                            # [1, 3Hp]
        "whh_t": whh_t,                                          # [Hp, 3Hp] f32
        "b_hn": b_hn,                                            # [1, Hp]
        "wattn_c": wac.astype(jnp.bfloat16),                     # [Hp, 2H]
        "wattn_d": wad.astype(jnp.bfloat16),                     # [Hp, 2H]
        "battn": params["attn_fc_b"].reshape(1, 2 * H),
        "wfc": wfc_p.astype(jnp.bfloat16),                       # [2H, Vp]
        "bfc": bfc_p,                                            # [1, Vp]
        "nt": Nt,                                                # static ints
        "vocab": V,
    }


@functools.partial(jax.jit,
                   static_argnames=("nt", "vocab", "single_buffer_weights"))
def _decoder_forward_impl(token_seq, hidden_state, enc_output, weights, *,
                          nt, vocab, single_buffer_weights):
    B, T = token_seq.shape
    S = enc_output.shape[1]
    H = hidden_state.shape[1]
    Hp = weights["whh_t"].shape[0]
    Vp = weights["wfc"].shape[1]
    E = weights["embedding"].shape[1]

    # glue: embedding gather (bf16 table, time-major) + zero-pad hidden to Hp lanes
    emb = jnp.take(weights["embedding"], token_seq.T, axis=0)    # [T, B, E] bf16
    h0 = hidden_state
    enc = enc_output
    if Hp != H:
        h0 = jnp.pad(h0, ((0, 0), (0, Hp - H)))
        enc = jnp.pad(enc, ((0, 0), (0, 0), (0, Hp - H)))
    # TODO(synk): in a full pipeline the encoder should emit bf16 directly so
    # this cast is not an extra HBM pass.
    enc = enc.astype(jnp.bfloat16)

    Bb = _pick_batch_block(B)
    grid = (B // Bb, Vp // nt)

    def wspec(shape):
        idx = lambda b, j, _n=len(shape): (0,) * _n
        if single_buffer_weights:
            # resident weights never change across the grid -> single-buffer
            return pl.BlockSpec(shape, idx, pipeline_mode=pl.Buffered(1))
        return pl.BlockSpec(shape, idx)

    in_specs = [
        pl.BlockSpec((T, Bb, E), lambda b, j: (0, b, 0)),            # embedded
        pl.BlockSpec((Bb, Hp), lambda b, j: (b, 0)),                 # h0
        pl.BlockSpec((Bb, S, Hp), lambda b, j: (b, 0, 0)),           # enc_output
        wspec((E, 3 * Hp)), wspec((1, 3 * Hp)),                      # W_ih^T, b_gx
        wspec((Hp, 3 * Hp)), wspec((1, Hp)),                         # W_hh^T, b_hn
        wspec((Hp, 2 * H)), wspec((Hp, 2 * H)), wspec((1, 2 * H)),   # attn_fc
        pl.BlockSpec((2 * H, nt), lambda b, j: (0, j)),              # fc W tile
        pl.BlockSpec((1, nt), lambda b, j: (0, j)),                  # fc b tile
    ]
    out_specs = (
        pl.BlockSpec((Bb, T, nt), lambda b, j: (b, 0, j)),
        pl.BlockSpec((Bb, Hp), lambda b, j: (b, 0)),
    )
    out_shapes = (
        jax.ShapeDtypeStruct((B, T, Vp), jnp.bfloat16),
        jax.ShapeDtypeStruct((B, Hp), jnp.float32),
    )

    logits_p, hidden_p = pl.pallas_call(
        decoder_kernel,
        out_shape=out_shapes,
        grid=grid,
        in_specs=in_specs,
        out_specs=out_specs,
        scratch_shapes=[pltpu.VMEM((T, Bb, Hp), jnp.float32),
                        pltpu.VMEM((Bb * T, 2 * H), jnp.bfloat16)],
        compiler_params=pltpu.CompilerParams(
            dimension_semantics=("parallel", "arbitrary"),
            vmem_limit_bytes=64 * 1024 * 1024),
    )(emb, h0, enc,
      weights["wih_t"], weights["b_gx"], weights["whh_t"], weights["b_hn"],
      weights["wattn_c"], weights["wattn_d"], weights["battn"],
      weights["wfc"], weights["bfc"])

    logits = logits_p[:, :, :vocab].astype(jnp.float32)   # drop vocab padding
    hidden = hidden_p[:, :H]                              # drop hidden padding
    return logits, hidden[None]                           # GRU hidden: [1, B, H]


def decoder_forward(token_seq, hidden_state, enc_output, prep):
    weights = {k: v for k, v in prep.items() if k not in ("nt", "vocab")}
    nt, vocab = prep["nt"], prep["vocab"]
    try:
        # preferred: single-buffered resident weights (halves weight VMEM)
        return _decoder_forward_impl(token_seq, hidden_state, enc_output, weights,
                                     nt=nt, vocab=vocab,
                                     single_buffer_weights=True)
    except Exception:
        # fallback if this jax build rejects pipeline_mode on BlockSpec
        return _decoder_forward_impl(token_seq, hidden_state, enc_output, weights,
                                     nt=nt, vocab=vocab,
                                     single_buffer_weights=False)


def decoder_reference(token_seq, hidden_state, enc_output, params):
    """Pure-JAX reference mirroring the PyTorch forward."""
    embedded = jnp.take(params["embedding"], token_seq, axis=0)
    H = hidden_state.shape[1]
    wih, whh = params["gru_w_ih"], params["gru_w_hh"]
    bih, bhh = params["gru_b_ih"], params["gru_b_hh"]
    w_ir, w_iz, w_in = wih[:H], wih[H:2 * H], wih[2 * H:]
    w_hr, w_hz, w_hn = whh[:H], whh[H:2 * H], whh[2 * H:]
    b_ir, b_iz, b_in = bih[:H], bih[H:2 * H], bih[2 * H:]
    b_hr, b_hz, b_hn = bhh[:H], bhh[H:2 * H], bhh[2 * H:]

    def step(h, x_t):
        r = jax.nn.sigmoid(x_t @ w_ir.T + b_ir + h @ w_hr.T + b_hr)
        z = jax.nn.sigmoid(x_t @ w_iz.T + b_iz + h @ w_hz.T + b_hz)
        n = jnp.tanh(x_t @ w_in.T + b_in + r * (h @ w_hn.T + b_hn))
        h_new = (1.0 - z) * n + z * h
        return h_new, h_new

    xs = jnp.transpose(embedded, (1, 0, 2))                    # [T, B, E]
    h_final, dec_seq = lax.scan(step, hidden_state, xs)
    dec_output = jnp.transpose(dec_seq, (1, 0, 2))             # [B, T, H]

    a_t = jnp.einsum("bsh,bth->bst", enc_output, dec_output)
    a_t = jax.nn.softmax(a_t, axis=1)
    c_t = jnp.einsum("bst,bsh->bth", a_t, enc_output)
    cat = jnp.concatenate([c_t, dec_output], axis=-1)
    out = jnp.tanh(cat @ params["attn_fc_w"].T + params["attn_fc_b"])
    logits = out @ params["fc_w"].T + params["fc_b"]
    return logits, h_final[None]


def init_params(key, input_dim, emb_dim, hidden_dim):
    ks = jax.random.split(key, 9)
    s = 0.1
    return {
        "embedding": s * jax.random.normal(ks[0], (input_dim, emb_dim), jnp.float32),
        "gru_w_ih": s * jax.random.normal(ks[1], (3 * hidden_dim, emb_dim), jnp.float32),
        "gru_w_hh": s * jax.random.normal(ks[2], (3 * hidden_dim, hidden_dim), jnp.float32),
        "gru_b_ih": s * jax.random.normal(ks[3], (3 * hidden_dim,), jnp.float32),
        "gru_b_hh": s * jax.random.normal(ks[4], (3 * hidden_dim,), jnp.float32),
        "attn_fc_w": s * jax.random.normal(ks[5], (2 * hidden_dim, 2 * hidden_dim), jnp.float32),
        "attn_fc_b": s * jax.random.normal(ks[6], (2 * hidden_dim,), jnp.float32),
        "fc_w": s * jax.random.normal(ks[7], (input_dim, 2 * hidden_dim), jnp.float32),
        "fc_b": s * jax.random.normal(ks[8], (input_dim,), jnp.float32),
    }


if __name__ == "__main__":
    V, E, H = 16, 32, 32          # input_dim (vocab), emb_dim, hidden_dim
    B, T, S = 2, 8, 8             # batch, decoder seq len, encoder seq len

    key = jax.random.PRNGKey(0)
    k_tok, k_h, k_enc, k_par = jax.random.split(key, 4)
    token_seq = jax.random.randint(k_tok, (B, T), 0, V, dtype=jnp.int32)
    hidden_state = 0.1 * jax.random.normal(k_h, (B, H), jnp.float32)
    enc_output = 0.1 * jax.random.normal(k_enc, (B, S, H), jnp.float32)
    params = init_params(k_par, V, E, H)
    prep = prepare_params(params)   # one-time weight re-layout (not per call)

    logits, hidden = decoder_forward(token_seq, hidden_state, enc_output, prep)
    jax.block_until_ready((logits, hidden))

    ref_logits, ref_hidden = decoder_reference(token_seq, hidden_state, enc_output, params)
    assert logits.shape == (B, T, V) and hidden.shape == (1, B, H)
    assert jnp.allclose(logits, ref_logits, atol=5e-2, rtol=5e-2)
    assert jnp.allclose(hidden, ref_hidden, atol=5e-2, rtol=5e-2)

    print("KERNEL_OK")
</pallas_src>

<mosaic_0001>
module attributes {stable_mosaic.version = 11 : i64} {
  func.func @decoder_kernel(%arg0: i32, %arg1: i32, %arg2: memref<8x2x32xbf16, #tpu.memory_space<vmem>>, %arg3: memref<2x128xf32, #tpu.memory_space<vmem>>, %arg4: memref<2x8x128xbf16, #tpu.memory_space<vmem>>, %arg5: memref<32x384xbf16, #tpu.memory_space<vmem>>, %arg6: memref<1x384xf32, #tpu.memory_space<vmem>>, %arg7: memref<128x384xf32, #tpu.memory_space<vmem>>, %arg8: memref<1x128xf32, #tpu.memory_space<vmem>>, %arg9: memref<128x64xbf16, #tpu.memory_space<vmem>>, %arg10: memref<128x64xbf16, #tpu.memory_space<vmem>>, %arg11: memref<1x64xf32, #tpu.memory_space<vmem>>, %arg12: memref<64x128xbf16, #tpu.memory_space<vmem>>, %arg13: memref<1x128xf32, #tpu.memory_space<vmem>>, %arg14: memref<2x8x128xbf16, #tpu.memory_space<vmem>>, %arg15: memref<2x128xf32, #tpu.memory_space<vmem>>, %arg16: memref<8x2x128xf32, #tpu.memory_space<vmem>>, %arg17: memref<16x64xbf16, #tpu.memory_space<vmem>>) attributes {dimension_semantics = [#tpu.dimension_semantics<parallel>, #tpu.dimension_semantics<arbitrary>], iteration_bounds = array<i64: 1, 1>, scalar_prefetch = 0 : i64, scratch_operands = 2 : i64, tpu.core_type = #tpu.core_type<tc>, window_params = [{transform_indices = @transform_0, window_bounds = array<i64: 8, 2, 32>}, {transform_indices = @transform_1, window_bounds = array<i64: 2, 128>}, {transform_indices = @transform_2, window_bounds = array<i64: 2, 8, 128>}, {pipeline_mode = #tpu.pipeline_mode<synchronous>, transform_indices = @transform_3, window_bounds = array<i64: 32, 384>}, {pipeline_mode = #tpu.pipeline_mode<synchronous>, transform_indices = @transform_4, window_bounds = array<i64: 1, 384>}, {pipeline_mode = #tpu.pipeline_mode<synchronous>, transform_indices = @transform_5, window_bounds = array<i64: 128, 384>}, {pipeline_mode = #tpu.pipeline_mode<synchronous>, transform_indices = @transform_6, window_bounds = array<i64: 1, 128>}, {pipeline_mode = #tpu.pipeline_mode<synchronous>, transform_indices = @transform_7, window_bounds = array<i64: 128, 64>}, {pipeline_mode = #tpu.pipeline_mode<synchronous>, transform_indices = @transform_8, window_bounds = array<i64: 128, 64>}, {pipeline_mode = #tpu.pipeline_mode<synchronous>, transform_indices = @transform_9, window_bounds = array<i64: 1, 64>}, {transform_indices = @transform_10, window_bounds = array<i64: 64, 128>}, {transform_indices = @transform_11, window_bounds = array<i64: 1, 128>}, {transform_indices = @transform_12, window_bounds = array<i64: 2, 8, 128>}, {transform_indices = @transform_13, window_bounds = array<i64: 2, 128>}]} {
    %c0_i32 = arith.constant 0 : i32
    %0 = arith.cmpi eq, %arg1, %c0_i32 : i32
    %1 = arith.extui %0 : i1 to i32
    %c0_i32_0 = arith.constant 0 : i32
    %2 = arith.cmpi ne, %1, %c0_i32_0 : i32
    scf.if %2 {
      %c0_13 = arith.constant 0 : index
      %c0_14 = arith.constant 0 : index
      %c0_15 = arith.constant 0 : index
      %15 = vector.load %arg2[%c0_13, %c0_14, %c0_15] : memref<8x2x32xbf16, #tpu.memory_space<vmem>>, vector<8x2x32xbf16>
      %16 = vector.shape_cast %15 : vector<8x2x32xbf16> to vector<16x32xbf16>
      %c0_16 = arith.constant 0 : index
      %c0_17 = arith.constant 0 : index
      %17 = vector.load %arg5[%c0_16, %c0_17] : memref<32x384xbf16, #tpu.memory_space<vmem>>, vector<32x384xbf16>
      %cst_18 = arith.constant dense<0.000000e+00> : vector<16x384xf32>
      %18 = tpu.matmul %16, %17, %cst_18 {dimension_numbers = #tpu.dot_dimension_numbers<[1], [0], [0], [1], [0, 0, 1, 1], [], []>} : vector<16x32xbf16>, vector<32x384xbf16>, vector<16x384xf32> -> vector<16x384xf32>
      %c0_19 = arith.constant 0 : index
      %c0_20 = arith.constant 0 : index
      %19 = vector.load %arg6[%c0_19, %c0_20] : memref<1x384xf32, #tpu.memory_space<vmem>>, vector<1x384xf32>
      %20 = vector.broadcast %19 : vector<1x384xf32> to vector<16x384xf32>
      %21 = arith.addf %18, %20 : vector<16x384xf32>
      %22 = vector.shape_cast %21 : vector<16x384xf32> to vector<8x2x384xf32>
      %c0_21 = arith.constant 0 : index
      %c0_22 = arith.constant 0 : index
      %23 = vector.load %arg7[%c0_21, %c0_22] : memref<128x384xf32, #tpu.memory_space<vmem>>, vector<128x384xf32>
      %c0_23 = arith.constant 0 : index
      %c0_24 = arith.constant 0 : index
      %24 = vector.load %arg8[%c0_23, %c0_24] : memref<1x128xf32, #tpu.memory_space<vmem>>, vector<1x128xf32>
      %25 = vector.shape_cast %24 : vector<1x128xf32> to vector<1x128xf32>
      %26 = vector.broadcast %25 : vector<1x128xf32> to vector<2x128xf32>
      %c0_25 = arith.constant 0 : index
      %c0_26 = arith.constant 0 : index
      %27 = vector.load %arg3[%c0_25, %c0_26] : memref<2x128xf32, #tpu.memory_space<vmem>>, vector<2x128xf32>
      %28 = vector.extract_strided_slice %22 {offsets = [0, 0, 0], sizes = [1, 2, 384], strides = [1, 1, 1]} : vector<8x2x384xf32> to vector<1x2x384xf32>
      %29 = vector.shape_cast %28 : vector<1x2x384xf32> to vector<2x384xf32>
      %cst_27 = arith.constant dense<0.000000e+00> : vector<2x384xf32>
      %30 = tpu.matmul %27, %23, %cst_27 {dimension_numbers = #tpu.dot_dimension_numbers<[1], [0], [0], [1], [0, 0, 1, 1], [], []>} : vector<2x128xf32>, vector<128x384xf32>, vector<2x384xf32> -> vector<2x384xf32>
      %31 = vector.extract_strided_slice %29 {offsets = [0, 0], sizes = [2, 128], strides = [1, 1]} : vector<2x384xf32> to vector<2x128xf32>
      %32 = vector.extract_strided_slice %30 {offsets = [0, 0], sizes = [2, 128], strides = [1, 1]} : vector<2x384xf32> to vector<2x128xf32>
      %33 = arith.addf %31, %32 : vector<2x128xf32>
      %34 = arith.negf %33 : vector<2x128xf32>
      %35 = math.exp %34 : vector<2x128xf32>
      %cst_28 = arith.constant 1.000000e+00 : f32
      %36 = vector.broadcast %cst_28 : f32 to vector<2x128xf32>
      %37 = arith.addf %36, %35 : vector<2x128xf32>
      %38 = arith.divf %36, %37 : vector<2x128xf32>
      %39 = vector.extract_strided_slice %29 {offsets = [0, 128], sizes = [2, 128], strides = [1, 1]} : vector<2x384xf32> to vector<2x128xf32>
      %40 = vector.extract_strided_slice %30 {offsets = [0, 128], sizes = [2, 128], strides = [1, 1]} : vector<2x384xf32> to vector<2x128xf32>
      %41 = arith.addf %39, %40 : vector<2x128xf32>
      %42 = arith.negf %41 : vector<2x128xf32>
      %43 = math.exp %42 : vector<2x128xf32>
      %cst_29 = arith.constant 1.000000e+00 : f32
      %44 = vector.broadcast %cst_29 : f32 to vector<2x128xf32>
      %45 = arith.addf %44, %43 : vector<2x128xf32>
      %46 = arith.divf %44, %45 : vector<2x128xf32>
      %47 = vector.extract_strided_slice %29 {offsets = [0, 256], sizes = [2, 128], strides = [1, 1]} : vector<2x384xf32> to vector<2x128xf32>
      %48 = vector.extract_strided_slice %30 {offsets = [0, 256], sizes = [2, 128], strides = [1, 1]} : vector<2x384xf32> to vector<2x128xf32>
      %49 = arith.addf %48, %26 : vector<2x128xf32>
      %50 = arith.mulf %38, %49 : vector<2x128xf32>
      %51 = arith.addf %47, %50 : vector<2x128xf32>
      %52 = math.tanh %51 : vector<2x128xf32>
      %cst_30 = arith.constant 1.000000e+00 : f32
      %53 = vector.broadcast %cst_30 : f32 to vector<2x128xf32>
      %54 = arith.subf %53, %46 : vector<2x128xf32>
      %55 = arith.mulf %54, %52 : vector<2x128xf32>
      %56 = arith.mulf %46, %27 : vector<2x128xf32>
      %57 = arith.addf %55, %56 : vector<2x128xf32>
      %c0_31 = arith.constant 0 : index
      %c0_32 = arith.constant 0 : index
      %c0_33 = arith.constant 0 : index
      %58 = vector.load %arg16[%c0_31, %c0_32, %c0_33] : memref<8x2x128xf32, #tpu.memory_space<vmem>>, vector<1x2x128xf32>
      %59 = vector.shape_cast %58 : vector<1x2x128xf32> to vector<2x128xf32>
      %60 = vector.shape_cast %57 : vector<2x128xf32> to vector<1x2x128xf32>
      tpu.vector_store %arg16[%c0_31, %c0_32, %c0_33], %60 {strides = array<i32>} : memref<8x2x128xf32, #tpu.memory_space<vmem>>, vector<1x2x128xf32>,
      %61 = vector.extract_strided_slice %22 {offsets = [1, 0, 0], sizes = [1, 2, 384], strides = [1, 1, 1]} : vector<8x2x384xf32> to vector<1x2x384xf32>
      %62 = vector.shape_cast %61 : vector<1x2x384xf32> to vector<2x384xf32>
      %cst_34 = arith.constant dense<0.000000e+00> : vector<2x384xf32>
      %63 = tpu.matmul %57, %23, %cst_34 {dimension_numbers = #tpu.dot_dimension_numbers<[1], [0], [0], [1], [0, 0, 1, 1], [], []>} : vector<2x128xf32>, vector<128x384xf32>, vector<2x384xf32> -> vector<2x384xf32>
      %64 = vector.extract_strided_slice %62 {offsets = [0, 0], sizes = [2, 128], strides = [1, 1]} : vector<2x384xf32> to vector<2x128xf32>
      %65 = vector.extract_strided_slice %63 {offsets = [0, 0], sizes = [2, 128], strides = [1, 1]} : vector<2x384xf32> to vector<2x128xf32>
      %66 = arith.addf %64, %65 : vector<2x128xf32>
      %67 = arith.negf %66 : vector<2x128xf32>
      %68 = math.exp %67 : vector<2x128xf32>
      %cst_35 = arith.constant 1.000000e+00 : f32
      %69 = vector.broadcast %cst_35 : f32 to vector<2x128xf32>
      %70 = arith.addf %69, %68 : vector<2x128xf32>
      %71 = arith.divf %69, %70 : vector<2x128xf32>
      %72 = vector.extract_strided_slice %62 {offsets = [0, 128], sizes = [2, 128], strides = [1, 1]} : vector<2x384xf32> to vector<2x128xf32>
      %73 = vector.extract_strided_slice %63 {offsets = [0, 128], sizes = [2, 128], strides = [1, 1]} : vector<2x384xf32> to vector<2x128xf32>
      %74 = arith.addf %72, %73 : vector<2x128xf32>
      %75 = arith.negf %74 : vector<2x128xf32>
      %76 = math.exp %75 : vector<2x128xf32>
      %cst_36 = arith.constant 1.000000e+00 : f32
      %77 = vector.broadcast %cst_36 : f32 to vector<2x128xf32>
      %78 = arith.addf %77, %76 : vector<2x128xf32>
      %79 = arith.divf %77, %78 : vector<2x128xf32>
      %80 = vector.extract_strided_slice %62 {offsets = [0, 256], sizes = [2, 128], strides = [1, 1]} : vector<2x384xf32> to vector<2x128xf32>
      %81 = vector.extract_strided_slice %63 {offsets = [0, 256], sizes = [2, 128], strides = [1, 1]} : vector<2x384xf32> to vector<2x128xf32>
      %82 = arith.addf %81, %26 : vector<2x128xf32>
      %83 = arith.mulf %71, %82 : vector<2x128xf32>
      %84 = arith.addf %80, %83 : vector<2x128xf32>
      %85 = math.tanh %84 : vector<2x128xf32>
      %cst_37 = arith.constant 1.000000e+00 : f32
      %86 = vector.broadcast %cst_37 : f32 to vector<2x128xf32>
      %87 = arith.subf %86, %79 : vector<2x128xf32>
      %88 = arith.mulf %87, %85 : vector<2x128xf32>
      %89 = arith.mulf %79, %57 : vector<2x128xf32>
      %90 = arith.addf %88, %89 : vector<2x128xf32>
      %c1 = arith.constant 1 : index
      %c0_38 = arith.constant 0 : index
      %c0_39 = arith.constant 0 : index
      %91 = vector.load %arg16[%c1, %c0_38, %c0_39] : memref<8x2x128xf32, #tpu.memory_space<vmem>>, vector<1x2x128xf32>
      %92 = vector.shape_cast %91 : vector<1x2x128xf32> to vector<2x128xf32>
      %93 = vector.shape_cast %90 : vector<2x128xf32> to vector<1x2x128xf32>
      tpu.vector_store %arg16[%c1, %c0_38, %c0_39], %93 {strides = array<i32>} : memref<8x2x128xf32, #tpu.memory_space<vmem>>, vector<1x2x128xf32>,
      %94 = vector.extract_strided_slice %22 {offsets = [2, 0, 0], sizes = [1, 2, 384], strides = [1, 1, 1]} : vector<8x2x384xf32> to vector<1x2x384xf32>
      %95 = vector.shape_cast %94 : vector<1x2x384xf32> to vector<2x384xf32>
      %cst_40 = arith.constant dense<0.000000e+00> : vector<2x384xf32>
      %96 = tpu.matmul %90, %23, %cst_40 {dimension_numbers = #tpu.dot_dimension_numbers<[1], [0], [0], [1], [0, 0, 1, 1], [], []>} : vector<2x128xf32>, vector<128x384xf32>, vector<2x384xf32> -> vector<2x384xf32>
      %97 = vector.extract_strided_slice %95 {offsets = [0, 0], sizes = [2, 128], strides = [1, 1]} : vector<2x384xf32> to vector<2x128xf32>
      %98 = vector.extract_strided_slice %96 {offsets = [0, 0], sizes = [2, 128], strides = [1, 1]} : vector<2x384xf32> to vector<2x128xf32>
      %99 = arith.addf %97, %98 : vector<2x128xf32>
      %100 = arith.negf %99 : vector<2x128xf32>
      %101 = math.exp %100 : vector<2x128xf32>
      %cst_41 = arith.constant 1.000000e+00 : f32
      %102 = vector.broadcast %cst_41 : f32 to vector<2x128xf32>
      %103 = arith.addf %102, %101 : vector<2x128xf32>
      %104 = arith.divf %102, %103 : vector<2x128xf32>
      %105 = vector.extract_strided_slice %95 {offsets = [0, 128], sizes = [2, 128], strides = [1, 1]} : vector<2x384xf32> to vector<2x128xf32>
      %106 = vector.extract_strided_slice %96 {offsets = [0, 128], sizes = [2, 128], strides = [1, 1]} : vector<2x384xf32> to vector<2x128xf32>
      %107 = arith.addf %105, %106 : vector<2x128xf32>
      %108 = arith.negf %107 : vector<2x128xf32>
      %109 = math.exp %108 : vector<2x128xf32>
      %cst_42 = arith.constant 1.000000e+00 : f32
      %110 = vector.broadcast %cst_42 : f32 to vector<2x128xf32>
      %111 = arith.addf %110, %109 : vector<2x128xf32>
      %112 = arith.divf %110, %111 : vector<2x128xf32>
      %113 = vector.extract_strided_slice %95 {offsets = [0, 256], sizes = [2, 128], strides = [1, 1]} : vector<2x384xf32> to vector<2x128xf32>
      %114 = vector.extract_strided_slice %96 {offsets = [0, 256], sizes = [2, 128], strides = [1, 1]} : vector<2x384xf32> to vector<2x128xf32>
      %115 = arith.addf %114, %26 : vector<2x128xf32>
      %116 = arith.mulf %104, %115 : vector<2x128xf32>
      %117 = arith.addf %113, %116 : vector<2x128xf32>
      %118 = math.tanh %117 : vector<2x128xf32>
      %cst_43 = arith.constant 1.000000e+00 : f32
      %119 = vector.broadcast %cst_43 : f32 to vector<2x128xf32>
      %120 = arith.subf %119, %112 : vector<2x128xf32>
      %121 = arith.mulf %120, %118 : vector<2x128xf32>
      %122 = arith.mulf %112, %90 : vector<2x128xf32>
      %123 = arith.addf %121, %122 : vector<2x128xf32>
      %c2 = arith.constant 2 : index
      %c0_44 = arith.constant 0 : index
      %c0_45 = arith.constant 0 : index
      %124 = vector.load %arg16[%c2, %c0_44, %c0_45] : memref<8x2x128xf32, #tpu.memory_space<vmem>>, vector<1x2x128xf32>
      %125 = vector.shape_cast %124 : vector<1x2x128xf32> to vector<2x128xf32>
      %126 = vector.shape_cast %123 : vector<2x128xf32> to vector<1x2x128xf32>
      tpu.vector_store %arg16[%c2, %c0_44, %c0_45], %126 {strides = array<i32>} : memref<8x2x128xf32, #tpu.memory_space<vmem>>, vector<1x2x128xf32>,
      %127 = vector.extract_strided_slice %22 {offsets = [3, 0, 0], sizes = [1, 2, 384], strides = [1, 1, 1]} : vector<8x2x384xf32> to vector<1x2x384xf32>
      %128 = vector.shape_cast %127 : vector<1x2x384xf32> to vector<2x384xf32>
      %cst_46 = arith.constant dense<0.000000e+00> : vector<2x384xf32>
      %129 = tpu.matmul %123, %23, %cst_46 {dimension_numbers = #tpu.dot_dimension_numbers<[1], [0], [0], [1], [0, 0, 1, 1], [], []>} : vector<2x128xf32>, vector<128x384xf32>, vector<2x384xf32> -> vector<2x384xf32>
      %130 = vector.extract_strided_slice %128 {offsets = [0, 0], sizes = [2, 128], strides = [1, 1]} : vector<2x384xf32> to vector<2x128xf32>
      %131 = vector.extract_strided_slice %129 {offsets = [0, 0], sizes = [2, 128], strides = [1, 1]} : vector<2x384xf32> to vector<2x128xf32>
      %132 = arith.addf %130, %131 : vector<2x128xf32>
      %133 = arith.negf %132 : vector<2x128xf32>
      %134 = math.exp %133 : vector<2x128xf32>
      %cst_47 = arith.constant 1.000000e+00 : f32
      %135 = vector.broadcast %cst_47 : f32 to vector<2x128xf32>
      %136 = arith.addf %135, %134 : vector<2x128xf32>
      %137 = arith.divf %135, %136 : vector<2x128xf32>
      %138 = vector.extract_strided_slice %128 {offsets = [0, 128], sizes = [2, 128], strides = [1, 1]} : vector<2x384xf32> to vector<2x128xf32>
      %139 = vector.extract_strided_slice %129 {offsets = [0, 128], sizes = [2, 128], strides = [1, 1]} : vector<2x384xf32> to vector<2x128xf32>
      %140 = arith.addf %138, %139 : vector<2x128xf32>
      %141 = arith.negf %140 : vector<2x128xf32>
      %142 = math.exp %141 : vector<2x128xf32>
      %cst_48 = arith.constant 1.000000e+00 : f32
      %143 = vector.broadcast %cst_48 : f32 to vector<2x128xf32>
      %144 = arith.addf %143, %142 : vector<2x128xf32>
      %145 = arith.divf %143, %144 : vector<2x128xf32>
      %146 = vector.extract_strided_slice %128 {offsets = [0, 256], sizes = [2, 128], strides = [1, 1]} : vector<2x384xf32> to vector<2x128xf32>
      %147 = vector.extract_strided_slice %129 {offsets = [0, 256], sizes = [2, 128], strides = [1, 1]} : vector<2x384xf32> to vector<2x128xf32>
      %148 = arith.addf %147, %26 : vector<2x128xf32>
      %149 = arith.mulf %137, %148 : vector<2x128xf32>
      %150 = arith.addf %146, %149 : vector<2x128xf32>
      %151 = math.tanh %150 : vector<2x128xf32>
      %cst_49 = arith.constant 1.000000e+00 : f32
      %152 = vector.broadcast %cst_49 : f32 to vector<2x128xf32>
      %153 = arith.subf %152, %145 : vector<2x128xf32>
      %154 = arith.mulf %153, %151 : vector<2x128xf32>
      %155 = arith.mulf %145, %123 : vector<2x128xf32>
      %156 = arith.addf %154, %155 : vector<2x128xf32>
      %c3 = arith.constant 3 : index
      %c0_50 = arith.constant 0 : index
      %c0_51 = arith.constant 0 : index
      %157 = vector.load %arg16[%c3, %c0_50, %c0_51] : memref<8x2x128xf32, #tpu.memory_space<vmem>>, vector<1x2x128xf32>
      %158 = vector.shape_cast %157 : vector<1x2x128xf32> to vector<2x128xf32>
      %159 = vector.shape_cast %156 : vector<2x128xf32> to vector<1x2x128xf32>
      tpu.vector_store %arg16[%c3, %c0_50, %c0_51], %159 {strides = array<i32>} : memref<8x2x128xf32, #tpu.memory_space<vmem>>, vector<1x2x128xf32>,
      %160 = vector.extract_strided_slice %22 {offsets = [4, 0, 0], sizes = [1, 2, 384], strides = [1, 1, 1]} : vector<8x2x384xf32> to vector<1x2x384xf32>
      %161 = vector.shape_cast %160 : vector<1x2x384xf32> to vector<2x384xf32>
      %cst_52 = arith.constant dense<0.000000e+00> : vector<2x384xf32>
      %162 = tpu.matmul %156, %23, %cst_52 {dimension_numbers = #tpu.dot_dimension_numbers<[1], [0], [0], [1], [0, 0, 1, 1], [], []>} : vector<2x128xf32>, vector<128x384xf32>, vector<2x384xf32> -> vector<2x384xf32>
      %163 = vector.extract_strided_slice %161 {offsets = [0, 0], sizes = [2, 128], strides = [1, 1]} : vector<2x384xf32> to vector<2x128xf32>
      %164 = vector.extract_strided_slice %162 {offsets = [0, 0], sizes = [2, 128], strides = [1, 1]} : vector<2x384xf32> to vector<2x128xf32>
      %165 = arith.addf %163, %164 : vector<2x128xf32>
      %166 = arith.negf %165 : vector<2x128xf32>
      %167 = math.exp %166 : vector<2x128xf32>
      %cst_53 = arith.constant 1.000000e+00 : f32
      %168 = vector.broadcast %cst_53 : f32 to vector<2x128xf32>
      %169 = arith.addf %168, %167 : vector<2x128xf32>
      %170 = arith.divf %168, %169 : vector<2x128xf32>
      %171 = vector.extract_strided_slice %161 {offsets = [0, 128], sizes = [2, 128], strides = [1, 1]} : vector<2x384xf32> to vector<2x128xf32>
      %172 = vector.extract_strided_slice %162 {offsets = [0, 128], sizes = [2, 128], strides = [1, 1]} : vector<2x384xf32> to vector<2x128xf32>
      %173 = arith.addf %171, %172 : vector<2x128xf32>
      %174 = arith.negf %173 : vector<2x128xf32>
      %175 = math.exp %174 : vector<2x128xf32>
      %cst_54 = arith.constant 1.000000e+00 : f32
      %176 = vector.broadcast %cst_54 : f32 to vector<2x128xf32>
      %177 = arith.addf %176, %175 : vector<2x128xf32>
      %178 = arith.divf %176, %177 : vector<2x128xf32>
      %179 = vector.extract_strided_slice %161 {offsets = [0, 256], sizes = [2, 128], strides = [1, 1]} : vector<2x384xf32> to vector<2x128xf32>
      %180 = vector.extract_strided_slice %162 {offsets = [0, 256], sizes = [2, 128], strides = [1, 1]} : vector<2x384xf32> to vector<2x128xf32>
      %181 = arith.addf %180, %26 : vector<2x128xf32>
      %182 = arith.mulf %170, %181 : vector<2x128xf32>
      %183 = arith.addf %179, %182 : vector<2x128xf32>
      %184 = math.tanh %183 : vector<2x128xf32>
      %cst_55 = arith.constant 1.000000e+00 : f32
      %185 = vector.broadcast %cst_55 : f32 to vector<2x128xf32>
      %186 = arith.subf %185, %178 : vector<2x128xf32>
      %187 = arith.mulf %186, %184 : vector<2x128xf32>
      %188 = arith.mulf %178, %156 : vector<2x128xf32>
      %189 = arith.addf %187, %188 : vector<2x128xf32>
      %c4 = arith.constant 4 : index
      %c0_56 = arith.constant 0 : index
      %c0_57 = arith.constant 0 : index
      %190 = vector.load %arg16[%c4, %c0_56, %c0_57] : memref<8x2x128xf32, #tpu.memory_space<vmem>>, vector<1x2x128xf32>
      %191 = vector.shape_cast %190 : vector<1x2x128xf32> to vector<2x128xf32>
      %192 = vector.shape_cast %189 : vector<2x128xf32> to vector<1x2x128xf32>
      tpu.vector_store %arg16[%c4, %c0_56, %c0_57], %192 {strides = array<i32>} : memref<8x2x128xf32, #tpu.memory_space<vmem>>, vector<1x2x128xf32>,
      %193 = vector.extract_strided_slice %22 {offsets = [5, 0, 0], sizes = [1, 2, 384], strides = [1, 1, 1]} : vector<8x2x384xf32> to vector<1x2x384xf32>
      %194 = vector.shape_cast %193 : vector<1x2x384xf32> to vector<2x384xf32>
      %cst_58 = arith.constant dense<0.000000e+00> : vector<2x384xf32>
      %195 = tpu.matmul %189, %23, %cst_58 {dimension_numbers = #tpu.dot_dimension_numbers<[1], [0], [0], [1], [0, 0, 1, 1], [], []>} : vector<2x128xf32>, vector<128x384xf32>, vector<2x384xf32> -> vector<2x384xf32>
      %196 = vector.extract_strided_slice %194 {offsets = [0, 0], sizes = [2, 128], strides = [1, 1]} : vector<2x384xf32> to vector<2x128xf32>
      %197 = vector.extract_strided_slice %195 {offsets = [0, 0], sizes = [2, 128], strides = [1, 1]} : vector<2x384xf32> to vector<2x128xf32>
      %198 = arith.addf %196, %197 : vector<2x128xf32>
      %199 = arith.negf %198 : vector<2x128xf32>
      %200 = math.exp %199 : vector<2x128xf32>
      %cst_59 = arith.constant 1.000000e+00 : f32
      %201 = vector.broadcast %cst_59 : f32 to vector<2x128xf32>
      %202 = arith.addf %201, %200 : vector<2x128xf32>
      %203 = arith.divf %201, %202 : vector<2x128xf32>
      %204 = vector.extract_strided_slice %194 {offsets = [0, 128], sizes = [2, 128], strides = [1, 1]} : vector<2x384xf32> to vector<2x128xf32>
      %205 = vector.extract_strided_slice %195 {offsets = [0, 128], sizes = [2, 128], strides = [1, 1]} : vector<2x384xf32> to vector<2x128xf32>
      %206 = arith.addf %204, %205 : vector<2x128xf32>
      %207 = arith.negf %206 : vector<2x128xf32>
      %208 = math.exp %207 : vector<2x128xf32>
      %cst_60 = arith.constant 1.000000e+00 : f32
      %209 = vector.broadcast %cst_60 : f32 to vector<2x128xf32>
      %210 = arith.addf %209, %208 : vector<2x128xf32>
      %211 = arith.divf %209, %210 : vector<2x128xf32>
      %212 = vector.extract_strided_slice %194 {offsets = [0, 256], sizes = [2, 128], strides = [1, 1]} : vector<2x384xf32> to vector<2x128xf32>
      %213 = vector.extract_strided_slice %195 {offsets = [0, 256], sizes = [2, 128], strides = [1, 1]} : vector<2x384xf32> to vector<2x128xf32>
      %214 = arith.addf %213, %26 : vector<2x128xf32>
      %215 = arith.mulf %203, %214 : vector<2x128xf32>
      %216 = arith.addf %212, %215 : vector<2x128xf32>
      %217 = math.tanh %216 : vector<2x128xf32>
      %cst_61 = arith.constant 1.000000e+00 : f32
      %218 = vector.broadcast %cst_61 : f32 to vector<2x128xf32>
      %219 = arith.subf %218, %211 : vector<2x128xf32>
      %220 = arith.mulf %219, %217 : vector<2x128xf32>
      %221 = arith.mulf %211, %189 : vector<2x128xf32>
      %222 = arith.addf %220, %221 : vector<2x128xf32>
      %c5 = arith.constant 5 : index
      %c0_62 = arith.constant 0 : index
      %c0_63 = arith.constant 0 : index
      %223 = vector.load %arg16[%c5, %c0_62, %c0_63] : memref<8x2x128xf32, #tpu.memory_space<vmem>>, vector<1x2x128xf32>
      %224 = vector.shape_cast %223 : vector<1x2x128xf32> to vector<2x128xf32>
      %225 = vector.shape_cast %222 : vector<2x128xf32> to vector<1x2x128xf32>
      tpu.vector_store %arg16[%c5, %c0_62, %c0_63], %225 {strides = array<i32>} : memref<8x2x128xf32, #tpu.memory_space<vmem>>, vector<1x2x128xf32>,
      %226 = vector.extract_strided_slice %22 {offsets = [6, 0, 0], sizes = [1, 2, 384], strides = [1, 1, 1]} : vector<8x2x384xf32> to vector<1x2x384xf32>
      %227 = vector.shape_cast %226 : vector<1x2x384xf32> to vector<2x384xf32>
      %cst_64 = arith.constant dense<0.000000e+00> : vector<2x384xf32>
      %228 = tpu.matmul %222, %23, %cst_64 {dimension_numbers = #tpu.dot_dimension_numbers<[1], [0], [0], [1], [0, 0, 1, 1], [], []>} : vector<2x128xf32>, vector<128x384xf32>, vector<2x384xf32> -> vector<2x384xf32>
      %229 = vector.extract_strided_slice %227 {offsets = [0, 0], sizes = [2, 128], strides = [1, 1]} : vector<2x384xf32> to vector<2x128xf32>
      %230 = vector.extract_strided_slice %228 {offsets = [0, 0], sizes = [2, 128], strides = [1, 1]} : vector<2x384xf32> to vector<2x128xf32>
      %231 = arith.addf %229, %230 : vector<2x128xf32>
      %232 = arith.negf %231 : vector<2x128xf32>
      %233 = math.exp %232 : vector<2x128xf32>
      %cst_65 = arith.constant 1.000000e+00 : f32
      %234 = vector.broadcast %cst_65 : f32 to vector<2x128xf32>
      %235 = arith.addf %234, %233 : vector<2x128xf32>
      %236 = arith.divf %234, %235 : vector<2x128xf32>
      %237 = vector.extract_strided_slice %227 {offsets = [0, 128], sizes = [2, 128], strides = [1, 1]} : vector<2x384xf32> to vector<2x128xf32>
      %238 = vector.extract_strided_slice %228 {offsets = [0, 128], sizes = [2, 128], strides = [1, 1]} : vector<2x384xf32> to vector<2x128xf32>
      %239 = arith.addf %237, %238 : vector<2x128xf32>
      %240 = arith.negf %239 : vector<2x128xf32>
      %241 = math.exp %240 : vector<2x128xf32>
      %cst_66 = arith.constant 1.000000e+00 : f32
      %242 = vector.broadcast %cst_66 : f32 to vector<2x128xf32>
      %243 = arith.addf %242, %241 : vector<2x128xf32>
      %244 = arith.divf %242, %243 : vector<2x128xf32>
      %245 = vector.extract_strided_slice %227 {offsets = [0, 256], sizes = [2, 128], strides = [1, 1]} : vector<2x384xf32> to vector<2x128xf32>
      %246 = vector.extract_strided_slice %228 {offsets = [0, 256], sizes = [2, 128], strides = [1, 1]} : vector<2x384xf32> to vector<2x128xf32>
      %247 = arith.addf %246, %26 : vector<2x128xf32>
      %248 = arith.mulf %236, %247 : vector<2x128xf32>
      %249 = arith.addf %245, %248 : vector<2x128xf32>
      %250 = math.tanh %249 : vector<2x128xf32>
      %cst_67 = arith.constant 1.000000e+00 : f32
      %251 = vector.broadcast %cst_67 : f32 to vector<2x128xf32>
      %252 = arith.subf %251, %244 : vector<2x128xf32>
      %253 = arith.mulf %252, %250 : vector<2x128xf32>
      %254 = arith.mulf %244, %222 : vector<2x128xf32>
      %255 = arith.addf %253, %254 : vector<2x128xf32>
      %c6 = arith.constant 6 : index
      %c0_68 = arith.constant 0 : index
      %c0_69 = arith.constant 0 : index
      %256 = vector.load %arg16[%c6, %c0_68, %c0_69] : memref<8x2x128xf32, #tpu.memory_space<vmem>>, vector<1x2x128xf32>
      %257 = vector.shape_cast %256 : vector<1x2x128xf32> to vector<2x128xf32>
      %258 = vector.shape_cast %255 : vector<2x128xf32> to vector<1x2x128xf32>
      tpu.vector_store %arg16[%c6, %c0_68, %c0_69], %258 {strides = array<i32>} : memref<8x2x128xf32, #tpu.memory_space<vmem>>, vector<1x2x128xf32>,
      %259 = vector.extract_strided_slice %22 {offsets = [7, 0, 0], sizes = [1, 2, 384], strides = [1, 1, 1]} : vector<8x2x384xf32> to vector<1x2x384xf32>
      %260 = vector.shape_cast %259 : vector<1x2x384xf32> to vector<2x384xf32>
      %cst_70 = arith.constant dense<0.000000e+00> : vector<2x384xf32>
      %261 = tpu.matmul %255, %23, %cst_70 {dimension_numbers = #tpu.dot_dimension_numbers<[1], [0], [0], [1], [0, 0, 1, 1], [], []>} : vector<2x128xf32>, vector<128x384xf32>, vector<2x384xf32> -> vector<2x384xf32>
      %262 = vector.extract_strided_slice %260 {offsets = [0, 0], sizes = [2, 128], strides = [1, 1]} : vector<2x384xf32> to vector<2x128xf32>
      %263 = vector.extract_strided_slice %261 {offsets = [0, 0], sizes = [2, 128], strides = [1, 1]} : vector<2x384xf32> to vector<2x128xf32>
      %264 = arith.addf %262, %263 : vector<2x128xf32>
      %265 = arith.negf %264 : vector<2x128xf32>
      %266 = math.exp %265 : vector<2x128xf32>
      %cst_71 = arith.constant 1.000000e+00 : f32
      %267 = vector.broadcast %cst_71 : f32 to vector<2x128xf32>
      %268 = arith.addf %267, %266 : vector<2x128xf32>
      %269 = arith.divf %267, %268 : vector<2x128xf32>
      %270 = vector.extract_strided_slice %260 {offsets = [0, 128], sizes = [2, 128], strides = [1, 1]} : vector<2x384xf32> to vector<2x128xf32>
      %271 = vector.extract_strided_slice %261 {offsets = [0, 128], sizes = [2, 128], strides = [1, 1]} : vector<2x384xf32> to vector<2x128xf32>
      %272 = arith.addf %270, %271 : vector<2x128xf32>
      %273 = arith.negf %272 : vector<2x128xf32>
      %274 = math.exp %273 : vector<2x128xf32>
      %cst_72 = arith.constant 1.000000e+00 : f32
      %275 = vector.broadcast %cst_72 : f32 to vector<2x128xf32>
      %276 = arith.addf %275, %274 : vector<2x128xf32>
      %277 = arith.divf %275, %276 : vector<2x128xf32>
      %278 = vector.extract_strided_slice %260 {offsets = [0, 256], sizes = [2, 128], strides = [1, 1]} : vector<2x384xf32> to vector<2x128xf32>
      %279 = vector.extract_strided_slice %261 {offsets = [0, 256], sizes = [2, 128], strides = [1, 1]} : vector<2x384xf32> to vector<2x128xf32>
      %280 = arith.addf %279, %26 : vector<2x128xf32>
      %281 = arith.mulf %269, %280 : vector<2x128xf32>
      %282 = arith.addf %278, %281 : vector<2x128xf32>
      %283 = math.tanh %282 : vector<2x128xf32>
      %cst_73 = arith.constant 1.000000e+00 : f32
      %284 = vector.broadcast %cst_73 : f32 to vector<2x128xf32>
      %285 = arith.subf %284, %277 : vector<2x128xf32>
      %286 = arith.mulf %285, %283 : vector<2x128xf32>
      %287 = arith.mulf %277, %255 : vector<2x128xf32>
      %288 = arith.addf %286, %287 : vector<2x128xf32>
      %c7_74 = arith.constant 7 : index
      %c0_75 = arith.constant 0 : index
      %c0_76 = arith.constant 0 : index
      %289 = vector.load %arg16[%c7_74, %c0_75, %c0_76] : memref<8x2x128xf32, #tpu.memory_space<vmem>>, vector<1x2x128xf32>
      %290 = vector.shape_cast %289 : vector<1x2x128xf32> to vector<2x128xf32>
      %291 = vector.shape_cast %288 : vector<2x128xf32> to vector<1x2x128xf32>
      tpu.vector_store %arg16[%c7_74, %c0_75, %c0_76], %291 {strides = array<i32>} : memref<8x2x128xf32, #tpu.memory_space<vmem>>, vector<1x2x128xf32>,
      %c0_77 = arith.constant 0 : index
      %c0_78 = arith.constant 0 : index
      %c0_79 = arith.constant 0 : index
      %292 = vector.load %arg16[%c0_77, %c0_78, %c0_79] : memref<8x2x128xf32, #tpu.memory_space<vmem>>, vector<8x2x128xf32>
      %293 = tpu.transpose %292, [1, 0, 2] : vector<8x2x128xf32> -> vector<2x8x128xf32>
      %294 = arith.truncf %293 : vector<2x8x128xf32> to vector<2x8x128xbf16>
      %c0_80 = arith.constant 0 : index
      %c0_81 = arith.constant 0 : index
      %c0_82 = arith.constant 0 : index
      %295 = vector.load %arg4[%c0_80, %c0_81, %c0_82] : memref<2x8x128xbf16, #tpu.memory_space<vmem>>, vector<2x8x128xbf16>
      "tpu.trace_start"() <{level = 10 : i32, message = "bth,bsh->bts"}> : () -> ()
      %cst_83 = arith.constant dense<0.000000e+00> : vector<2x8x8xf32>
      %296 = tpu.matmul %294, %295, %cst_83 {dimension_numbers = #tpu.dot_dimension_numbers<[2], [2], [1], [1], [0, 0, 0, 1, 1, 1], [0], [0]>} : vector<2x8x128xbf16>, vector<2x8x128xbf16>, vector<2x8x8xf32> -> vector<2x8x8xf32>
      "tpu.trace_stop"() : () -> ()
      %cst_84 = arith.constant dense<0xFF800000> : vector<2x8xf32>
      %297 = vector.multi_reduction <maximumf>, %296, %cst_84 [2] : vector<2x8x8xf32> to vector<2x8xf32>
      %298 = vector.shape_cast %297 : vector<2x8xf32> to vector<2x8x1xf32>
      %299 = vector.broadcast %298 : vector<2x8x1xf32> to vector<2x8x8xf32>
      %300 = arith.subf %296, %299 : vector<2x8x8xf32>
      %301 = math.exp %300 : vector<2x8x8xf32>
      %cst_85 = arith.constant dense<0.000000e+00> : vector<2x8xf32>
      %302 = vector.multi_reduction <add>, %301, %cst_85 [2] : vector<2x8x8xf32> to vector<2x8xf32>
      %303 = vector.shape_cast %302 : vector<2x8xf32> to vector<2x8x1xf32>
      %304 = tpu.reciprocal %303 {approx = true} : vector<2x8x1xf32> -> vector<2x8x1xf32>
      %305 = vector.broadcast %304 : vector<2x8x1xf32> to vector<2x8x8xf32>
      %306 = arith.mulf %301, %305 : vector<2x8x8xf32>
      %307 = arith.truncf %306 : vector<2x8x8xf32> to vector<2x8x8xbf16>
      "tpu.trace_start"() <{level = 10 : i32, message = "bts,bsh->bth"}> : () -> ()
      %cst_86 = arith.constant dense<0.000000e+00> : vector<2x8x128xf32>
      %308 = tpu.matmul %307, %295, %cst_86 {dimension_numbers = #tpu.dot_dimension_numbers<[2], [1], [1], [2], [0, 0, 0, 1, 1, 2], [0], [0]>} : vector<2x8x8xbf16>, vector<2x8x128xbf16>, vector<2x8x128xf32> -> vector<2x8x128xf32>
      "tpu.trace_stop"() : () -> ()
      %309 = vector.shape_cast %308 : vector<2x8x128xf32> to vector<16x128xf32>
      %310 = arith.truncf %309 : vector<16x128xf32> to vector<16x128xbf16>
      %311 = vector.shape_cast %294 : vector<2x8x128xbf16> to vector<16x128xbf16>
      %c0_87 = arith.constant 0 : index
      %c0_88 = arith.constant 0 : index
      %312 = vector.load %arg9[%c0_87, %c0_88] : memref<128x64xbf16, #tpu.memory_space<vmem>>, vector<128x64xbf16>
      %cst_89 = arith.constant dense<0.000000e+00> : vector<16x64xf32>
      %313 = tpu.matmul %310, %312, %cst_89 {dimension_numbers = #tpu.dot_dimension_numbers<[1], [0], [0], [1], [0, 0, 1, 1], [], []>} : vector<16x128xbf16>, vector<128x64xbf16>, vector<16x64xf32> -> vector<16x64xf32>
      %c0_90 = arith.constant 0 : index
      %c0_91 = arith.constant 0 : index
      %314 = vector.load %arg10[%c0_90, %c0_91] : memref<128x64xbf16, #tpu.memory_space<vmem>>, vector<128x64xbf16>
      %cst_92 = arith.constant dense<0.000000e+00> : vector<16x64xf32>
      %315 = tpu.matmul %311, %314, %cst_92 {dimension_numbers = #tpu.dot_dimension_numbers<[1], [0], [0], [1], [0, 0, 1, 1], [], []>} : vector<16x128xbf16>, vector<128x64xbf16>, vector<16x64xf32> -> vector<16x64xf32>
      %316 = arith.addf %313, %315 : vector<16x64xf32>
      %c0_93 = arith.constant 0 : index
      %c0_94 = arith.constant 0 : index
      %317 = vector.load %arg11[%c0_93, %c0_94] : memref<1x64xf32, #tpu.memory_space<vmem>>, vector<1x64xf32>
      %318 = vector.broadcast %317 : vector<1x64xf32> to vector<16x64xf32>
      %319 = arith.addf %316, %318 : vector<16x64xf32>
      %320 = math.tanh %319 : vector<16x64xf32>
      %321 = arith.truncf %320 : vector<16x64xf32> to vector<16x64xbf16>
      %c0_95 = arith.constant 0 : index
      %c0_96 = arith.constant 0 : index
      %322 = vector.load %arg17[%c0_95, %c0_96] : memref<16x64xbf16, #tpu.memory_space<vmem>>, vector<16x64xbf16>
      tpu.vector_store %arg17[%c0_95, %c0_96], %321 {strides = array<i32>} : memref<16x64xbf16, #tpu.memory_space<vmem>>, vector<16x64xbf16>,
    } else {
    }
    %c7 = arith.constant 7 : index
    %c0 = arith.constant 0 : index
    %c0_1 = arith.constant 0 : index
    %3 = vector.load %arg16[%c7, %c0, %c0_1] : memref<8x2x128xf32, #tpu.memory_space<vmem>>, vector<1x2x128xf32>
    %4 = vector.shape_cast %3 : vector<1x2x128xf32> to vector<2x128xf32>
    %c0_2 = arith.constant 0 : index
    %c0_3 = arith.constant 0 : index
    %5 = vector.load %arg15[%c0_2, %c0_3] : memref<2x128xf32, #tpu.memory_space<vmem>>, vector<2x128xf32>
    tpu.vector_store %arg15[%c0_2, %c0_3], %4 {strides = array<i32>} : memref<2x128xf32, #tpu.memory_space<vmem>>, vector<2x128xf32>,
    %c0_4 = arith.constant 0 : index
    %c0_5 = arith.constant 0 : index
    %6 = vector.load %arg17[%c0_4, %c0_5] : memref<16x64xbf16, #tpu.memory_space<vmem>>, vector<16x64xbf16>
    %c0_6 = arith.constant 0 : index
    %c0_7 = arith.constant 0 : index
    %7 = vector.load %arg12[%c0_6, %c0_7] : memref<64x128xbf16, #tpu.memory_space<vmem>>, vector<64x128xbf16>
    %cst = arith.constant dense<0.000000e+00> : vector<16x128xf32>
    %8 = tpu.matmul %6, %7, %cst {dimension_numbers = #tpu.dot_dimension_numbers<[1], [0], [0], [1], [0, 0, 1, 1], [], []>} : vector<16x64xbf16>, vector<64x128xbf16>, vector<16x128xf32> -> vector<16x128xf32>
    %c0_8 = arith.constant 0 : index
    %c0_9 = arith.constant 0 : index
    %9 = vector.load %arg13[%c0_8, %c0_9] : memref<1x128xf32, #tpu.memory_space<vmem>>, vector<1x128xf32>
    %10 = vector.broadcast %9 : vector<1x128xf32> to vector<16x128xf32>
    %11 = arith.addf %8, %10 : vector<16x128xf32>
    %12 = vector.shape_cast %11 : vector<16x128xf32> to vector<2x8x128xf32>
    %13 = arith.truncf %12 : vector<2x8x128xf32> to vector<2x8x128xbf16>
    %c0_10 = arith.constant 0 : index
    %c0_11 = arith.constant 0 : index
    %c0_12 = arith.constant 0 : index
    %14 = vector.load %arg14[%c0_10, %c0_11, %c0_12] : memref<2x8x128xbf16, #tpu.memory_space<vmem>>, vector<2x8x128xbf16>
    tpu.vector_store %arg14[%c0_10, %c0_11, %c0_12], %13 {strides = array<i32>} : memref<2x8x128xbf16, #tpu.memory_space<vmem>>, vector<2x8x128xbf16>,
    return
  }
  func.func @transform_0(%arg0: i32, %arg1: i32) -> (i32, i32, i32) {
    %c0_i32 = arith.constant 0 : i32
    %c0_i32_0 = arith.constant 0 : i32
    %c0_i32_1 = arith.constant 0 : i32
    return %c0_i32, %arg0, %c0_i32_0 : i32, i32, i32
  }
  func.func @transform_1(%arg0: i32, %arg1: i32) -> (i32, i32) {
    %c0_i32 = arith.constant 0 : i32
    %c0_i32_0 = arith.constant 0 : i32
    return %arg0, %c0_i32 : i32, i32
  }
  func.func @transform_2(%arg0: i32, %arg1: i32) -> (i32, i32, i32) {
    %c0_i32 = arith.constant 0 : i32
    %c0_i32_0 = arith.constant 0 : i32
    %c0_i32_1 = arith.constant 0 : i32
    return %arg0, %c0_i32, %c0_i32_0 : i32, i32, i32
  }
  func.func @transform_3(%arg0: i32, %arg1: i32) -> (i32, i32) {
    %c0_i32 = arith.constant 0 : i32
    %c0_i32_0 = arith.constant 0 : i32
    %c0_i32_1 = arith.constant 0 : i32
    return %c0_i32, %c0_i32_0 : i32, i32
  }
  func.func @transform_4(%arg0: i32, %arg1: i32) -> (i32, i32) {
    %c0_i32 = arith.constant 0 : i32
    %c0_i32_0 = arith.constant 0 : i32
    %c0_i32_1 = arith.constant 0 : i32
    return %c0_i32, %c0_i32_0 : i32, i32
  }
  func.func @transform_5(%arg0: i32, %arg1: i32) -> (i32, i32) {
    %c0_i32 = arith.constant 0 : i32
    %c0_i32_0 = arith.constant 0 : i32
    %c0_i32_1 = arith.constant 0 : i32
    return %c0_i32, %c0_i32_0 : i32, i32
  }
  func.func @transform_6(%arg0: i32, %arg1: i32) -> (i32, i32) {
    %c0_i32 = arith.constant 0 : i32
    %c0_i32_0 = arith.constant 0 : i32
    %c0_i32_1 = arith.constant 0 : i32
    return %c0_i32, %c0_i32_0 : i32, i32
  }
  func.func @transform_7(%arg0: i32, %arg1: i32) -> (i32, i32) {
    %c0_i32 = arith.constant 0 : i32
    %c0_i32_0 = arith.constant 0 : i32
    %c0_i32_1 = arith.constant 0 : i32
    return %c0_i32, %c0_i32_0 : i32, i32
  }
  func.func @transform_8(%arg0: i32, %arg1: i32) -> (i32, i32) {
    %c0_i32 = arith.constant 0 : i32
    %c0_i32_0 = arith.constant 0 : i32
    %c0_i32_1 = arith.constant 0 : i32
    return %c0_i32, %c0_i32_0 : i32, i32
  }
  func.func @transform_9(%arg0: i32, %arg1: i32) -> (i32, i32) {
    %c0_i32 = arith.constant 0 : i32
    %c0_i32_0 = arith.constant 0 : i32
    %c0_i32_1 = arith.constant 0 : i32
    return %c0_i32, %c0_i32_0 : i32, i32
  }
  func.func @transform_10(%arg0: i32, %arg1: i32) -> (i32, i32) {
    %c0_i32 = arith.constant 0 : i32
    %c0_i32_0 = arith.constant 0 : i32
    return %c0_i32, %arg1 : i32, i32
  }
  func.func @transform_11(%arg0: i32, %arg1: i32) -> (i32, i32) {
    %c0_i32 = arith.constant 0 : i32
    %c0_i32_0 = arith.constant 0 : i32
    return %c0_i32, %arg1 : i32, i32
  }
  func.func @transform_12(%arg0: i32, %arg1: i32) -> (i32, i32, i32) {
    %c0_i32 = arith.constant 0 : i32
    %c0_i32_0 = arith.constant 0 : i32
    return %arg0, %c0_i32, %arg1 : i32, i32, i32
  }
  func.func @transform_13(%arg0: i32, %arg1: i32) -> (i32, i32) {
    %c0_i32 = arith.constant 0 : i32
    %c0_i32_0 = arith.constant 0 : i32
    return %arg0, %c0_i32 : i32, i32
  }
}

module attributes {stable_mosaic.version = 11 : i64} {
  func.func @decoder_kernel(%arg0: i32, %arg1: i32, %arg2: memref<8x2x32xbf16, #tpu.memory_space<vmem>>, %arg3: memref<2x128xf32, #tpu.memory_space<vmem>>, %arg4: memref<2x8x128xbf16, #tpu.memory_space<vmem>>, %arg5: memref<32x384xbf16, #tpu.memory_space<vmem>>, %arg6: memref<1x384xf32, #tpu.memory_space<vmem>>, %arg7: memref<128x384xf32, #tpu.memory_space<vmem>>, %arg8: memref<1x128xf32, #tpu.memory_space<vmem>>, %arg9: memref<128x64xbf16, #tpu.memory_space<vmem>>, %arg10: memref<128x64xbf16, #tpu.memory_space<vmem>>, %arg11: memref<1x64xf32, #tpu.memory_space<vmem>>, %arg12: memref<64x128xbf16, #tpu.memory_space<vmem>>, %arg13: memref<1x128xf32, #tpu.memory_space<vmem>>, %arg14: memref<2x8x128xbf16, #tpu.memory_space<vmem>>, %arg15: memref<2x128xf32, #tpu.memory_space<vmem>>, %arg16: memref<8x2x128xf32, #tpu.memory_space<vmem>>, %arg17: memref<16x64xbf16, #tpu.memory_space<vmem>>) attributes {dimension_semantics = [#tpu.dimension_semantics<parallel>, #tpu.dimension_semantics<arbitrary>], iteration_bounds = array<i64: 1, 1>, scalar_prefetch = 0 : i64, scratch_operands = 2 : i64, tpu.core_type = #tpu.core_type<tc>, window_params = [{transform_indices = @transform_0, window_bounds = array<i64: 8, 2, 32>}, {transform_indices = @transform_1, window_bounds = array<i64: 2, 128>}, {transform_indices = @transform_2, window_bounds = array<i64: 2, 8, 128>}, {pipeline_mode = #tpu.pipeline_mode<synchronous>, transform_indices = @transform_3, window_bounds = array<i64: 32, 384>}, {pipeline_mode = #tpu.pipeline_mode<synchronous>, transform_indices = @transform_4, window_bounds = array<i64: 1, 384>}, {pipeline_mode = #tpu.pipeline_mode<synchronous>, transform_indices = @transform_5, window_bounds = array<i64: 128, 384>}, {pipeline_mode = #tpu.pipeline_mode<synchronous>, transform_indices = @transform_6, window_bounds = array<i64: 1, 128>}, {pipeline_mode = #tpu.pipeline_mode<synchronous>, transform_indices = @transform_7, window_bounds = array<i64: 128, 64>}, {pipeline_mode = #tpu.pipeline_mode<synchronous>, transform_indices = @transform_8, window_bounds = array<i64: 128, 64>}, {pipeline_mode = #tpu.pipeline_mode<synchronous>, transform_indices = @transform_9, window_bounds = array<i64: 1, 64>}, {transform_indices = @transform_10, window_bounds = array<i64: 64, 128>}, {transform_indices = @transform_11, window_bounds = array<i64: 1, 128>}, {transform_indices = @transform_12, window_bounds = array<i64: 2, 8, 128>}, {transform_indices = @transform_13, window_bounds = array<i64: 2, 128>}]} {
    %c0_i32 = arith.constant 0 : i32
    %0 = arith.cmpi eq, %arg1, %c0_i32 : i32
    %1 = arith.extui %0 : i1 to i32
    %c0_i32_0 = arith.constant 0 : i32
    %2 = arith.cmpi ne, %1, %c0_i32_0 : i32
    scf.if %2 {
      %c0_13 = arith.constant 0 : index
      %c0_14 = arith.constant 0 : index
      %c0_15 = arith.constant 0 : index
      %15 = vector.load %arg2[%c0_13, %c0_14, %c0_15] : memref<8x2x32xbf16, #tpu.memory_space<vmem>>, vector<8x2x32xbf16>
      %16 = vector.shape_cast %15 : vector<8x2x32xbf16> to vector<16x32xbf16>
      %c0_16 = arith.constant 0 : index
      %c0_17 = arith.constant 0 : index
      %17 = vector.load %arg5[%c0_16, %c0_17] : memref<32x384xbf16, #tpu.memory_space<vmem>>, vector<32x384xbf16>
      %cst_18 = arith.constant dense<0.000000e+00> : vector<16x384xf32>
      %18 = tpu.matmul %16, %17, %cst_18 {dimension_numbers = #tpu.dot_dimension_numbers<[1], [0], [0], [1], [0, 0, 1, 1], [], []>} : vector<16x32xbf16>, vector<32x384xbf16>, vector<16x384xf32> -> vector<16x384xf32>
      %c0_19 = arith.constant 0 : index
      %c0_20 = arith.constant 0 : index
      %19 = vector.load %arg6[%c0_19, %c0_20] : memref<1x384xf32, #tpu.memory_space<vmem>>, vector<1x384xf32>
      %20 = vector.broadcast %19 : vector<1x384xf32> to vector<16x384xf32>
      %21 = arith.addf %18, %20 : vector<16x384xf32>
      %22 = vector.shape_cast %21 : vector<16x384xf32> to vector<8x2x384xf32>
      %c0_21 = arith.constant 0 : index
      %c0_22 = arith.constant 0 : index
      %23 = vector.load %arg7[%c0_21, %c0_22] : memref<128x384xf32, #tpu.memory_space<vmem>>, vector<128x384xf32>
      %c0_23 = arith.constant 0 : index
      %c0_24 = arith.constant 0 : index
      %24 = vector.load %arg8[%c0_23, %c0_24] : memref<1x128xf32, #tpu.memory_space<vmem>>, vector<1x128xf32>
      %25 = vector.shape_cast %24 : vector<1x128xf32> to vector<1x128xf32>
      %26 = vector.broadcast %25 : vector<1x128xf32> to vector<2x128xf32>
      %c0_25 = arith.constant 0 : index
      %c0_26 = arith.constant 0 : index
      %27 = vector.load %arg3[%c0_25, %c0_26] : memref<2x128xf32, #tpu.memory_space<vmem>>, vector<2x128xf32>
      %28 = vector.extract_strided_slice %22 {offsets = [0, 0, 0], sizes = [1, 2, 384], strides = [1, 1, 1]} : vector<8x2x384xf32> to vector<1x2x384xf32>
      %29 = vector.shape_cast %28 : vector<1x2x384xf32> to vector<2x384xf32>
      %cst_27 = arith.constant dense<0.000000e+00> : vector<2x384xf32>
      %30 = tpu.matmul %27, %23, %cst_27 {dimension_numbers = #tpu.dot_dimension_numbers<[1], [0], [0], [1], [0, 0, 1, 1], [], []>} : vector<2x128xf32>, vector<128x384xf32>, vector<2x384xf32> -> vector<2x384xf32>
      %31 = vector.extract_strided_slice %29 {offsets = [0, 0], sizes = [2, 128], strides = [1, 1]} : vector<2x384xf32> to vector<2x128xf32>
      %32 = vector.extract_strided_slice %30 {offsets = [0, 0], sizes = [2, 128], strides = [1, 1]} : vector<2x384xf32> to vector<2x128xf32>
      %33 = arith.addf %31, %32 : vector<2x128xf32>
      %34 = arith.negf %33 : vector<2x128xf32>
      %35 = math.exp %34 : vector<2x128xf32>
      %cst_28 = arith.constant 1.000000e+00 : f32
      %36 = vector.broadcast %cst_28 : f32 to vector<2x128xf32>
      %37 = arith.addf %36, %35 : vector<2x128xf32>
      %38 = arith.divf %36, %37 : vector<2x128xf32>
      %39 = vector.extract_strided_slice %29 {offsets = [0, 128], sizes = [2, 128], strides = [1, 1]} : vector<2x384xf32> to vector<2x128xf32>
      %40 = vector.extract_strided_slice %30 {offsets = [0, 128], sizes = [2, 128], strides = [1, 1]} : vector<2x384xf32> to vector<2x128xf32>
      %41 = arith.addf %39, %40 : vector<2x128xf32>
      %42 = arith.negf %41 : vector<2x128xf32>
      %43 = math.exp %42 : vector<2x128xf32>
      %cst_29 = arith.constant 1.000000e+00 : f32
      %44 = vector.broadcast %cst_29 : f32 to vector<2x128xf32>
      %45 = arith.addf %44, %43 : vector<2x128xf32>
      %46 = arith.divf %44, %45 : vector<2x128xf32>
      %47 = vector.extract_strided_slice %29 {offsets = [0, 256], sizes = [2, 128], strides = [1, 1]} : vector<2x384xf32> to vector<2x128xf32>
      %48 = vector.extract_strided_slice %30 {offsets = [0, 256], sizes = [2, 128], strides = [1, 1]} : vector<2x384xf32> to vector<2x128xf32>
      %49 = arith.addf %48, %26 : vector<2x128xf32>
      %50 = arith.mulf %38, %49 : vector<2x128xf32>
      %51 = arith.addf %47, %50 : vector<2x128xf32>
      %52 = math.tanh %51 : vector<2x128xf32>
      %cst_30 = arith.constant 1.000000e+00 : f32
      %53 = vector.broadcast %cst_30 : f32 to vector<2x128xf32>
      %54 = arith.subf %53, %46 : vector<2x128xf32>
      %55 = arith.mulf %54, %52 : vector<2x128xf32>
      %56 = arith.mulf %46, %27 : vector<2x128xf32>
      %57 = arith.addf %55, %56 : vector<2x128xf32>
      %c0_31 = arith.constant 0 : index
      %c0_32 = arith.constant 0 : index
      %c0_33 = arith.constant 0 : index
      %58 = vector.load %arg16[%c0_31, %c0_32, %c0_33] : memref<8x2x128xf32, #tpu.memory_space<vmem>>, vector<1x2x128xf32>
      %59 = vector.shape_cast %58 : vector<1x2x128xf32> to vector<2x128xf32>
      %60 = vector.shape_cast %57 : vector<2x128xf32> to vector<1x2x128xf32>
      tpu.vector_store %arg16[%c0_31, %c0_32, %c0_33], %60 {strides = array<i32>} : memref<8x2x128xf32, #tpu.memory_space<vmem>>, vector<1x2x128xf32>,
      %61 = vector.extract_strided_slice %22 {offsets = [1, 0, 0], sizes = [1, 2, 384], strides = [1, 1, 1]} : vector<8x2x384xf32> to vector<1x2x384xf32>
      %62 = vector.shape_cast %61 : vector<1x2x384xf32> to vector<2x384xf32>
      %cst_34 = arith.constant dense<0.000000e+00> : vector<2x384xf32>
      %63 = tpu.matmul %57, %23, %cst_34 {dimension_numbers = #tpu.dot_dimension_numbers<[1], [0], [0], [1], [0, 0, 1, 1], [], []>} : vector<2x128xf32>, vector<128x384xf32>, vector<2x384xf32> -> vector<2x384xf32>
      %64 = vector.extract_strided_slice %62 {offsets = [0, 0], sizes = [2, 128], strides = [1, 1]} : vector<2x384xf32> to vector<2x128xf32>
      %65 = vector.extract_strided_slice %63 {offsets = [0, 0], sizes = [2, 128], strides = [1, 1]} : vector<2x384xf32> to vector<2x128xf32>
      %66 = arith.addf %64, %65 : vector<2x128xf32>
      %67 = arith.negf %66 : vector<2x128xf32>
      %68 = math.exp %67 : vector<2x128xf32>
      %cst_35 = arith.constant 1.000000e+00 : f32
      %69 = vector.broadcast %cst_35 : f32 to vector<2x128xf32>
      %70 = arith.addf %69, %68 : vector<2x128xf32>
      %71 = arith.divf %69, %70 : vector<2x128xf32>
      %72 = vector.extract_strided_slice %62 {offsets = [0, 128], sizes = [2, 128], strides = [1, 1]} : vector<2x384xf32> to vector<2x128xf32>
      %73 = vector.extract_strided_slice %63 {offsets = [0, 128], sizes = [2, 128], strides = [1, 1]} : vector<2x384xf32> to vector<2x128xf32>
      %74 = arith.addf %72, %73 : vector<2x128xf32>
      %75 = arith.negf %74 : vector<2x128xf32>
      %76 = math.exp %75 : vector<2x128xf32>
      %cst_36 = arith.constant 1.000000e+00 : f32
      %77 = vector.broadcast %cst_36 : f32 to vector<2x128xf32>
      %78 = arith.addf %77, %76 : vector<2x128xf32>
      %79 = arith.divf %77, %78 : vector<2x128xf32>
      %80 = vector.extract_strided_slice %62 {offsets = [0, 256], sizes = [2, 128], strides = [1, 1]} : vector<2x384xf32> to vector<2x128xf32>
      %81 = vector.extract_strided_slice %63 {offsets = [0, 256], sizes = [2, 128], strides = [1, 1]} : vector<2x384xf32> to vector<2x128xf32>
      %82 = arith.addf %81, %26 : vector<2x128xf32>
      %83 = arith.mulf %71, %82 : vector<2x128xf32>
      %84 = arith.addf %80, %83 : vector<2x128xf32>
      %85 = math.tanh %84 : vector<2x128xf32>
      %cst_37 = arith.constant 1.000000e+00 : f32
      %86 = vector.broadcast %cst_37 : f32 to vector<2x128xf32>
      %87 = arith.subf %86, %79 : vector<2x128xf32>
      %88 = arith.mulf %87, %85 : vector<2x128xf32>
      %89 = arith.mulf %79, %57 : vector<2x128xf32>
      %90 = arith.addf %88, %89 : vector<2x128xf32>
      %c1 = arith.constant 1 : index
      %c0_38 = arith.constant 0 : index
      %c0_39 = arith.constant 0 : index
      %91 = vector.load %arg16[%c1, %c0_38, %c0_39] : memref<8x2x128xf32, #tpu.memory_space<vmem>>, vector<1x2x128xf32>
      %92 = vector.shape_cast %91 : vector<1x2x128xf32> to vector<2x128xf32>
      %93 = vector.shape_cast %90 : vector<2x128xf32> to vector<1x2x128xf32>
      tpu.vector_store %arg16[%c1, %c0_38, %c0_39], %93 {strides = array<i32>} : memref<8x2x128xf32, #tpu.memory_space<vmem>>, vector<1x2x128xf32>,
      %94 = vector.extract_strided_slice %22 {offsets = [2, 0, 0], sizes = [1, 2, 384], strides = [1, 1, 1]} : vector<8x2x384xf32> to vector<1x2x384xf32>
      %95 = vector.shape_cast %94 : vector<1x2x384xf32> to vector<2x384xf32>
      %cst_40 = arith.constant dense<0.000000e+00> : vector<2x384xf32>
      %96 = tpu.matmul %90, %23, %cst_40 {dimension_numbers = #tpu.dot_dimension_numbers<[1], [0], [0], [1], [0, 0, 1, 1], [], []>} : vector<2x128xf32>, vector<128x384xf32>, vector<2x384xf32> -> vector<2x384xf32>
      %97 = vector.extract_strided_slice %95 {offsets = [0, 0], sizes = [2, 128], strides = [1, 1]} : vector<2x384xf32> to vector<2x128xf32>
      %98 = vector.extract_strided_slice %96 {offsets = [0, 0], sizes = [2, 128], strides = [1, 1]} : vector<2x384xf32> to vector<2x128xf32>
      %99 = arith.addf %97, %98 : vector<2x128xf32>
      %100 = arith.negf %99 : vector<2x128xf32>
      %101 = math.exp %100 : vector<2x128xf32>
      %cst_41 = arith.constant 1.000000e+00 : f32
      %102 = vector.broadcast %cst_41 : f32 to vector<2x128xf32>
      %103 = arith.addf %102, %101 : vector<2x128xf32>
      %104 = arith.divf %102, %103 : vector<2x128xf32>
      %105 = vector.extract_strided_slice %95 {offsets = [0, 128], sizes = [2, 128], strides = [1, 1]} : vector<2x384xf32> to vector<2x128xf32>
      %106 = vector.extract_strided_slice %96 {offsets = [0, 128], sizes = [2, 128], strides = [1, 1]} : vector<2x384xf32> to vector<2x128xf32>
      %107 = arith.addf %105, %106 : vector<2x128xf32>
      %108 = arith.negf %107 : vector<2x128xf32>
      %109 = math.exp %108 : vector<2x128xf32>
      %cst_42 = arith.constant 1.000000e+00 : f32
      %110 = vector.broadcast %cst_42 : f32 to vector<2x128xf32>
      %111 = arith.addf %110, %109 : vector<2x128xf32>
      %112 = arith.divf %110, %111 : vector<2x128xf32>
      %113 = vector.extract_strided_slice %95 {offsets = [0, 256], sizes = [2, 128], strides = [1, 1]} : vector<2x384xf32> to vector<2x128xf32>
      %114 = vector.extract_strided_slice %96 {offsets = [0, 256], sizes = [2, 128], strides = [1, 1]} : vector<2x384xf32> to vector<2x128xf32>
      %115 = arith.addf %114, %26 : vector<2x128xf32>
      %116 = arith.mulf %104, %115 : vector<2x128xf32>
      %117 = arith.addf %113, %116 : vector<2x128xf32>
      %118 = math.tanh %117 : vector<2x128xf32>
      %cst_43 = arith.constant 1.000000e+00 : f32
      %119 = vector.broadcast %cst_43 : f32 to vector<2x128xf32>
      %120 = arith.subf %119, %112 : vector<2x128xf32>
      %121 = arith.mulf %120, %118 : vector<2x128xf32>
      %122 = arith.mulf %112, %90 : vector<2x128xf32>
      %123 = arith.addf %121, %122 : vector<2x128xf32>
      %c2 = arith.constant 2 : index
      %c0_44 = arith.constant 0 : index
      %c0_45 = arith.constant 0 : index
      %124 = vector.load %arg16[%c2, %c0_44, %c0_45] : memref<8x2x128xf32, #tpu.memory_space<vmem>>, vector<1x2x128xf32>
      %125 = vector.shape_cast %124 : vector<1x2x128xf32> to vector<2x128xf32>
      %126 = vector.shape_cast %123 : vector<2x128xf32> to vector<1x2x128xf32>
      tpu.vector_store %arg16[%c2, %c0_44, %c0_45], %126 {strides = array<i32>} : memref<8x2x128xf32, #tpu.memory_space<vmem>>, vector<1x2x128xf32>,
      %127 = vector.extract_strided_slice %22 {offsets = [3, 0, 0], sizes = [1, 2, 384], strides = [1, 1, 1]} : vector<8x2x384xf32> to vector<1x2x384xf32>
      %128 = vector.shape_cast %127 : vector<1x2x384xf32> to vector<2x384xf32>
      %cst_46 = arith.constant dense<0.000000e+00> : vector<2x384xf32>
      %129 = tpu.matmul %123, %23, %cst_46 {dimension_numbers = #tpu.dot_dimension_numbers<[1], [0], [0], [1], [0, 0, 1, 1], [], []>} : vector<2x128xf32>, vector<128x384xf32>, vector<2x384xf32> -> vector<2x384xf32>
      %130 = vector.extract_strided_slice %128 {offsets = [0, 0], sizes = [2, 128], strides = [1, 1]} : vector<2x384xf32> to vector<2x128xf32>
      %131 = vector.extract_strided_slice %129 {offsets = [0, 0], sizes = [2, 128], strides = [1, 1]} : vector<2x384xf32> to vector<2x128xf32>
      %132 = arith.addf %130, %131 : vector<2x128xf32>
      %133 = arith.negf %132 : vector<2x128xf32>
      %134 = math.exp %133 : vector<2x128xf32>
      %cst_47 = arith.constant 1.000000e+00 : f32
      %135 = vector.broadcast %cst_47 : f32 to vector<2x128xf32>
      %136 = arith.addf %135, %134 : vector<2x128xf32>
      %137 = arith.divf %135, %136 : vector<2x128xf32>
      %138 = vector.extract_strided_slice %128 {offsets = [0, 128], sizes = [2, 128], strides = [1, 1]} : vector<2x384xf32> to vector<2x128xf32>
      %139 = vector.extract_strided_slice %129 {offsets = [0, 128], sizes = [2, 128], strides = [1, 1]} : vector<2x384xf32> to vector<2x128xf32>
      %140 = arith.addf %138, %139 : vector<2x128xf32>
      %141 = arith.negf %140 : vector<2x128xf32>
      %142 = math.exp %141 : vector<2x128xf32>
      %cst_48 = arith.constant 1.000000e+00 : f32
      %143 = vector.broadcast %cst_48 : f32 to vector<2x128xf32>
      %144 = arith.addf %143, %142 : vector<2x128xf32>
      %145 = arith.divf %143, %144 : vector<2x128xf32>
      %146 = vector.extract_strided_slice %128 {offsets = [0, 256], sizes = [2, 128], strides = [1, 1]} : vector<2x384xf32> to vector<2x128xf32>
      %147 = vector.extract_strided_slice %129 {offsets = [0, 256], sizes = [2, 128], strides = [1, 1]} : vector<2x384xf32> to vector<2x128xf32>
      %148 = arith.addf %147, %26 : vector<2x128xf32>
      %149 = arith.mulf %137, %148 : vector<2x128xf32>
      %150 = arith.addf %146, %149 : vector<2x128xf32>
      %151 = math.tanh %150 : vector<2x128xf32>
      %cst_49 = arith.constant 1.000000e+00 : f32
      %152 = vector.broadcast %cst_49 : f32 to vector<2x128xf32>
      %153 = arith.subf %152, %145 : vector<2x128xf32>
      %154 = arith.mulf %153, %151 : vector<2x128xf32>
      %155 = arith.mulf %145, %123 : vector<2x128xf32>
      %156 = arith.addf %154, %155 : vector<2x128xf32>
      %c3 = arith.constant 3 : index
      %c0_50 = arith.constant 0 : index
      %c0_51 = arith.constant 0 : index
      %157 = vector.load %arg16[%c3, %c0_50, %c0_51] : memref<8x2x128xf32, #tpu.memory_space<vmem>>, vector<1x2x128xf32>
      %158 = vector.shape_cast %157 : vector<1x2x128xf32> to vector<2x128xf32>
      %159 = vector.shape_cast %156 : vector<2x128xf32> to vector<1x2x128xf32>
      tpu.vector_store %arg16[%c3, %c0_50, %c0_51], %159 {strides = array<i32>} : memref<8x2x128xf32, #tpu.memory_space<vmem>>, vector<1x2x128xf32>,
      %160 = vector.extract_strided_slice %22 {offsets = [4, 0, 0], sizes = [1, 2, 384], strides = [1, 1, 1]} : vector<8x2x384xf32> to vector<1x2x384xf32>
      %161 = vector.shape_cast %160 : vector<1x2x384xf32> to vector<2x384xf32>
      %cst_52 = arith.constant dense<0.000000e+00> : vector<2x384xf32>
      %162 = tpu.matmul %156, %23, %cst_52 {dimension_numbers = #tpu.dot_dimension_numbers<[1], [0], [0], [1], [0, 0, 1, 1], [], []>} : vector<2x128xf32>, vector<128x384xf32>, vector<2x384xf32> -> vector<2x384xf32>
      %163 = vector.extract_strided_slice %161 {offsets = [0, 0], sizes = [2, 128], strides = [1, 1]} : vector<2x384xf32> to vector<2x128xf32>
      %164 = vector.extract_strided_slice %162 {offsets = [0, 0], sizes = [2, 128], strides = [1, 1]} : vector<2x384xf32> to vector<2x128xf32>
      %165 = arith.addf %163, %164 : vector<2x128xf32>
      %166 = arith.negf %165 : vector<2x128xf32>
      %167 = math.exp %166 : vector<2x128xf32>
      %cst_53 = arith.constant 1.000000e+00 : f32
      %168 = vector.broadcast %cst_53 : f32 to vector<2x128xf32>
      %169 = arith.addf %168, %167 : vector<2x128xf32>
      %170 = arith.divf %168, %169 : vector<2x128xf32>
      %171 = vector.extract_strided_slice %161 {offsets = [0, 128], sizes = [2, 128], strides = [1, 1]} : vector<2x384xf32> to vector<2x128xf32>
      %172 = vector.extract_strided_slice %162 {offsets = [0, 128], sizes = [2, 128], strides = [1, 1]} : vector<2x384xf32> to vector<2x128xf32>
      %173 = arith.addf %171, %172 : vector<2x128xf32>
      %174 = arith.negf %173 : vector<2x128xf32>
      %175 = math.exp %174 : vector<2x128xf32>
      %cst_54 = arith.constant 1.000000e+00 : f32
      %176 = vector.broadcast %cst_54 : f32 to vector<2x128xf32>
      %177 = arith.addf %176, %175 : vector<2x128xf32>
      %178 = arith.divf %176, %177 : vector<2x128xf32>
      %179 = vector.extract_strided_slice %161 {offsets = [0, 256], sizes = [2, 128], strides = [1, 1]} : vector<2x384xf32> to vector<2x128xf32>
      %180 = vector.extract_strided_slice %162 {offsets = [0, 256], sizes = [2, 128], strides = [1, 1]} : vector<2x384xf32> to vector<2x128xf32>
      %181 = arith.addf %180, %26 : vector<2x128xf32>
      %182 = arith.mulf %170, %181 : vector<2x128xf32>
      %183 = arith.addf %179, %182 : vector<2x128xf32>
      %184 = math.tanh %183 : vector<2x128xf32>
      %cst_55 = arith.constant 1.000000e+00 : f32
      %185 = vector.broadcast %cst_55 : f32 to vector<2x128xf32>
      %186 = arith.subf %185, %178 : vector<2x128xf32>
      %187 = arith.mulf %186, %184 : vector<2x128xf32>
      %188 = arith.mulf %178, %156 : vector<2x128xf32>
      %189 = arith.addf %187, %188 : vector<2x128xf32>
      %c4 = arith.constant 4 : index
      %c0_56 = arith.constant 0 : index
      %c0_57 = arith.constant 0 : index
      %190 = vector.load %arg16[%c4, %c0_56, %c0_57] : memref<8x2x128xf32, #tpu.memory_space<vmem>>, vector<1x2x128xf32>
      %191 = vector.shape_cast %190 : vector<1x2x128xf32> to vector<2x128xf32>
      %192 = vector.shape_cast %189 : vector<2x128xf32> to vector<1x2x128xf32>
      tpu.vector_store %arg16[%c4, %c0_56, %c0_57], %192 {strides = array<i32>} : memref<8x2x128xf32, #tpu.memory_space<vmem>>, vector<1x2x128xf32>,
      %193 = vector.extract_strided_slice %22 {offsets = [5, 0, 0], sizes = [1, 2, 384], strides = [1, 1, 1]} : vector<8x2x384xf32> to vector<1x2x384xf32>
      %194 = vector.shape_cast %193 : vector<1x2x384xf32> to vector<2x384xf32>
      %cst_58 = arith.constant dense<0.000000e+00> : vector<2x384xf32>
      %195 = tpu.matmul %189, %23, %cst_58 {dimension_numbers = #tpu.dot_dimension_numbers<[1], [0], [0], [1], [0, 0, 1, 1], [], []>} : vector<2x128xf32>, vector<128x384xf32>, vector<2x384xf32> -> vector<2x384xf32>
      %196 = vector.extract_strided_slice %194 {offsets = [0, 0], sizes = [2, 128], strides = [1, 1]} : vector<2x384xf32> to vector<2x128xf32>
      %197 = vector.extract_strided_slice %195 {offsets = [0, 0], sizes = [2, 128], strides = [1, 1]} : vector<2x384xf32> to vector<2x128xf32>
      %198 = arith.addf %196, %197 : vector<2x128xf32>
      %199 = arith.negf %198 : vector<2x128xf32>
      %200 = math.exp %199 : vector<2x128xf32>
      %cst_59 = arith.constant 1.000000e+00 : f32
      %201 = vector.broadcast %cst_59 : f32 to vector<2x128xf32>
      %202 = arith.addf %201, %200 : vector<2x128xf32>
      %203 = arith.divf %201, %202 : vector<2x128xf32>
      %204 = vector.extract_strided_slice %194 {offsets = [0, 128], sizes = [2, 128], strides = [1, 1]} : vector<2x384xf32> to vector<2x128xf32>
      %205 = vector.extract_strided_slice %195 {offsets = [0, 128], sizes = [2, 128], strides = [1, 1]} : vector<2x384xf32> to vector<2x128xf32>
      %206 = arith.addf %204, %205 : vector<2x128xf32>
      %207 = arith.negf %206 : vector<2x128xf32>
      %208 = math.exp %207 : vector<2x128xf32>
      %cst_60 = arith.constant 1.000000e+00 : f32
      %209 = vector.broadcast %cst_60 : f32 to vector<2x128xf32>
      %210 = arith.addf %209, %208 : vector<2x128xf32>
      %211 = arith.divf %209, %210 : vector<2x128xf32>
      %212 = vector.extract_strided_slice %194 {offsets = [0, 256], sizes = [2, 128], strides = [1, 1]} : vector<2x384xf32> to vector<2x128xf32>
      %213 = vector.extract_strided_slice %195 {offsets = [0, 256], sizes = [2, 128], strides = [1, 1]} : vector<2x384xf32> to vector<2x128xf32>
      %214 = arith.addf %213, %26 : vector<2x128xf32>
      %215 = arith.mulf %203, %214 : vector<2x128xf32>
      %216 = arith.addf %212, %215 : vector<2x128xf32>
      %217 = math.tanh %216 : vector<2x128xf32>
      %cst_61 = arith.constant 1.000000e+00 : f32
      %218 = vector.broadcast %cst_61 : f32 to vector<2x128xf32>
      %219 = arith.subf %218, %211 : vector<2x128xf32>
      %220 = arith.mulf %219, %217 : vector<2x128xf32>
      %221 = arith.mulf %211, %189 : vector<2x128xf32>
      %222 = arith.addf %220, %221 : vector<2x128xf32>
      %c5 = arith.constant 5 : index
      %c0_62 = arith.constant 0 : index
      %c0_63 = arith.constant 0 : index
      %223 = vector.load %arg16[%c5, %c0_62, %c0_63] : memref<8x2x128xf32, #tpu.memory_space<vmem>>, vector<1x2x128xf32>
      %224 = vector.shape_cast %223 : vector<1x2x128xf32> to vector<2x128xf32>
      %225 = vector.shape_cast %222 : vector<2x128xf32> to vector<1x2x128xf32>
      tpu.vector_store %arg16[%c5, %c0_62, %c0_63], %225 {strides = array<i32>} : memref<8x2x128xf32, #tpu.memory_space<vmem>>, vector<1x2x128xf32>,
      %226 = vector.extract_strided_slice %22 {offsets = [6, 0, 0], sizes = [1, 2, 384], strides = [1, 1, 1]} : vector<8x2x384xf32> to vector<1x2x384xf32>
      %227 = vector.shape_cast %226 : vector<1x2x384xf32> to vector<2x384xf32>
      %cst_64 = arith.constant dense<0.000000e+00> : vector<2x384xf32>
      %228 = tpu.matmul %222, %23, %cst_64 {dimension_numbers = #tpu.dot_dimension_numbers<[1], [0], [0], [1], [0, 0, 1, 1], [], []>} : vector<2x128xf32>, vector<128x384xf32>, vector<2x384xf32> -> vector<2x384xf32>
      %229 = vector.extract_strided_slice %227 {offsets = [0, 0], sizes = [2, 128], strides = [1, 1]} : vector<2x384xf32> to vector<2x128xf32>
      %230 = vector.extract_strided_slice %228 {offsets = [0, 0], sizes = [2, 128], strides = [1, 1]} : vector<2x384xf32> to vector<2x128xf32>
      %231 = arith.addf %229, %230 : vector<2x128xf32>
      %232 = arith.negf %231 : vector<2x128xf32>
      %233 = math.exp %232 : vector<2x128xf32>
      %cst_65 = arith.constant 1.000000e+00 : f32
      %234 = vector.broadcast %cst_65 : f32 to vector<2x128xf32>
      %235 = arith.addf %234, %233 : vector<2x128xf32>
      %236 = arith.divf %234, %235 : vector<2x128xf32>
      %237 = vector.extract_strided_slice %227 {offsets = [0, 128], sizes = [2, 128], strides = [1, 1]} : vector<2x384xf32> to vector<2x128xf32>
      %238 = vector.extract_strided_slice %228 {offsets = [0, 128], sizes = [2, 128], strides = [1, 1]} : vector<2x384xf32> to vector<2x128xf32>
      %239 = arith.addf %237, %238 : vector<2x128xf32>
      %240 = arith.negf %239 : vector<2x128xf32>
      %241 = math.exp %240 : vector<2x128xf32>
      %cst_66 = arith.constant 1.000000e+00 : f32
      %242 = vector.broadcast %cst_66 : f32 to vector<2x128xf32>
      %243 = arith.addf %242, %241 : vector<2x128xf32>
      %244 = arith.divf %242, %243 : vector<2x128xf32>
      %245 = vector.extract_strided_slice %227 {offsets = [0, 256], sizes = [2, 128], strides = [1, 1]} : vector<2x384xf32> to vector<2x128xf32>
      %246 = vector.extract_strided_slice %228 {offsets = [0, 256], sizes = [2, 128], strides = [1, 1]} : vector<2x384xf32> to vector<2x128xf32>
      %247 = arith.addf %246, %26 : vector<2x128xf32>
      %248 = arith.mulf %236, %247 : vector<2x128xf32>
      %249 = arith.addf %245, %248 : vector<2x128xf32>
      %250 = math.tanh %249 : vector<2x128xf32>
      %cst_67 = arith.constant 1.000000e+00 : f32
      %251 = vector.broadcast %cst_67 : f32 to vector<2x128xf32>
      %252 = arith.subf %251, %244 : vector<2x128xf32>
      %253 = arith.mulf %252, %250 : vector<2x128xf32>
      %254 = arith.mulf %244, %222 : vector<2x128xf32>
      %255 = arith.addf %253, %254 : vector<2x128xf32>
      %c6 = arith.constant 6 : index
      %c0_68 = arith.constant 0 : index
      %c0_69 = arith.constant 0 : index
      %256 = vector.load %arg16[%c6, %c0_68, %c0_69] : memref<8x2x128xf32, #tpu.memory_space<vmem>>, vector<1x2x128xf32>
      %257 = vector.shape_cast %256 : vector<1x2x128xf32> to vector<2x128xf32>
      %258 = vector.shape_cast %255 : vector<2x128xf32> to vector<1x2x128xf32>
      tpu.vector_store %arg16[%c6, %c0_68, %c0_69], %258 {strides = array<i32>} : memref<8x2x128xf32, #tpu.memory_space<vmem>>, vector<1x2x128xf32>,
      %259 = vector.extract_strided_slice %22 {offsets = [7, 0, 0], sizes = [1, 2, 384], strides = [1, 1, 1]} : vector<8x2x384xf32> to vector<1x2x384xf32>
      %260 = vector.shape_cast %259 : vector<1x2x384xf32> to vector<2x384xf32>
      %cst_70 = arith.constant dense<0.000000e+00> : vector<2x384xf32>
      %261 = tpu.matmul %255, %23, %cst_70 {dimension_numbers = #tpu.dot_dimension_numbers<[1], [0], [0], [1], [0, 0, 1, 1], [], []>} : vector<2x128xf32>, vector<128x384xf32>, vector<2x384xf32> -> vector<2x384xf32>
      %262 = vector.extract_strided_slice %260 {offsets = [0, 0], sizes = [2, 128], strides = [1, 1]} : vector<2x384xf32> to vector<2x128xf32>
      %263 = vector.extract_strided_slice %261 {offsets = [0, 0], sizes = [2, 128], strides = [1, 1]} : vector<2x384xf32> to vector<2x128xf32>
      %264 = arith.addf %262, %263 : vector<2x128xf32>
      %265 = arith.negf %264 : vector<2x128xf32>
      %266 = math.exp %265 : vector<2x128xf32>
      %cst_71 = arith.constant 1.000000e+00 : f32
      %267 = vector.broadcast %cst_71 : f32 to vector<2x128xf32>
      %268 = arith.addf %267, %266 : vector<2x128xf32>
      %269 = arith.divf %267, %268 : vector<2x128xf32>
      %270 = vector.extract_strided_slice %260 {offsets = [0, 128], sizes = [2, 128], strides = [1, 1]} : vector<2x384xf32> to vector<2x128xf32>
      %271 = vector.extract_strided_slice %261 {offsets = [0, 128], sizes = [2, 128], strides = [1, 1]} : vector<2x384xf32> to vector<2x128xf32>
      %272 = arith.addf %270, %271 : vector<2x128xf32>
      %273 = arith.negf %272 : vector<2x128xf32>
      %274 = math.exp %273 : vector<2x128xf32>
      %cst_72 = arith.constant 1.000000e+00 : f32
      %275 = vector.broadcast %cst_72 : f32 to vector<2x128xf32>
      %276 = arith.addf %275, %274 : vector<2x128xf32>
      %277 = arith.divf %275, %276 : vector<2x128xf32>
      %278 = vector.extract_strided_slice %260 {offsets = [0, 256], sizes = [2, 128], strides = [1, 1]} : vector<2x384xf32> to vector<2x128xf32>
      %279 = vector.extract_strided_slice %261 {offsets = [0, 256], sizes = [2, 128], strides = [1, 1]} : vector<2x384xf32> to vector<2x128xf32>
      %280 = arith.addf %279, %26 : vector<2x128xf32>
      %281 = arith.mulf %269, %280 : vector<2x128xf32>
      %282 = arith.addf %278, %281 : vector<2x128xf32>
      %283 = math.tanh %282 : vector<2x128xf32>
      %cst_73 = arith.constant 1.000000e+00 : f32
      %284 = vector.broadcast %cst_73 : f32 to vector<2x128xf32>
      %285 = arith.subf %284, %277 : vector<2x128xf32>
      %286 = arith.mulf %285, %283 : vector<2x128xf32>
      %287 = arith.mulf %277, %255 : vector<2x128xf32>
      %288 = arith.addf %286, %287 : vector<2x128xf32>
      %c7_74 = arith.constant 7 : index
      %c0_75 = arith.constant 0 : index
      %c0_76 = arith.constant 0 : index
      %289 = vector.load %arg16[%c7_74, %c0_75, %c0_76] : memref<8x2x128xf32, #tpu.memory_space<vmem>>, vector<1x2x128xf32>
      %290 = vector.shape_cast %289 : vector<1x2x128xf32> to vector<2x128xf32>
      %291 = vector.shape_cast %288 : vector<2x128xf32> to vector<1x2x128xf32>
      tpu.vector_store %arg16[%c7_74, %c0_75, %c0_76], %291 {strides = array<i32>} : memref<8x2x128xf32, #tpu.memory_space<vmem>>, vector<1x2x128xf32>,
      %c0_77 = arith.constant 0 : index
      %c0_78 = arith.constant 0 : index
      %c0_79 = arith.constant 0 : index
      %292 = vector.load %arg16[%c0_77, %c0_78, %c0_79] : memref<8x2x128xf32, #tpu.memory_space<vmem>>, vector<8x2x128xf32>
      %293 = tpu.transpose %292, [1, 0, 2] : vector<8x2x128xf32> -> vector<2x8x128xf32>
      %294 = arith.truncf %293 : vector<2x8x128xf32> to vector<2x8x128xbf16>
      %c0_80 = arith.constant 0 : index
      %c0_81 = arith.constant 0 : index
      %c0_82 = arith.constant 0 : index
      %295 = vector.load %arg4[%c0_80, %c0_81, %c0_82] : memref<2x8x128xbf16, #tpu.memory_space<vmem>>, vector<2x8x128xbf16>
      "tpu.trace_start"() <{level = 10 : i32, message = "bth,bsh->bts"}> : () -> ()
      %cst_83 = arith.constant dense<0.000000e+00> : vector<2x8x8xf32>
      %296 = tpu.matmul %294, %295, %cst_83 {dimension_numbers = #tpu.dot_dimension_numbers<[2], [2], [1], [1], [0, 0, 0, 1, 1, 1], [0], [0]>} : vector<2x8x128xbf16>, vector<2x8x128xbf16>, vector<2x8x8xf32> -> vector<2x8x8xf32>
      "tpu.trace_stop"() : () -> ()
      %cst_84 = arith.constant dense<0xFF800000> : vector<2x8xf32>
      %297 = vector.multi_reduction <maximumf>, %296, %cst_84 [2] : vector<2x8x8xf32> to vector<2x8xf32>
      %298 = vector.shape_cast %297 : vector<2x8xf32> to vector<2x8x1xf32>
      %299 = vector.broadcast %298 : vector<2x8x1xf32> to vector<2x8x8xf32>
      %300 = arith.subf %296, %299 : vector<2x8x8xf32>
      %301 = math.exp %300 : vector<2x8x8xf32>
      %cst_85 = arith.constant dense<0.000000e+00> : vector<2x8xf32>
      %302 = vector.multi_reduction <add>, %301, %cst_85 [2] : vector<2x8x8xf32> to vector<2x8xf32>
      %303 = vector.shape_cast %302 : vector<2x8xf32> to vector<2x8x1xf32>
      %304 = tpu.reciprocal %303 {approx = true} : vector<2x8x1xf32> -> vector<2x8x1xf32>
      %305 = vector.broadcast %304 : vector<2x8x1xf32> to vector<2x8x8xf32>
      %306 = arith.mulf %301, %305 : vector<2x8x8xf32>
      %307 = arith.truncf %306 : vector<2x8x8xf32> to vector<2x8x8xbf16>
      "tpu.trace_start"() <{level = 10 : i32, message = "bts,bsh->bth"}> : () -> ()
      %cst_86 = arith.constant dense<0.000000e+00> : vector<2x8x128xf32>
      %308 = tpu.matmul %307, %295, %cst_86 {dimension_numbers = #tpu.dot_dimension_numbers<[2], [1], [1], [2], [0, 0, 0, 1, 1, 2], [0], [0]>} : vector<2x8x8xbf16>, vector<2x8x128xbf16>, vector<2x8x128xf32> -> vector<2x8x128xf32>
      "tpu.trace_stop"() : () -> ()
      %309 = vector.shape_cast %308 : vector<2x8x128xf32> to vector<16x128xf32>
      %310 = arith.truncf %309 : vector<16x128xf32> to vector<16x128xbf16>
      %311 = vector.shape_cast %294 : vector<2x8x128xbf16> to vector<16x128xbf16>
      %c0_87 = arith.constant 0 : index
      %c0_88 = arith.constant 0 : index
      %312 = vector.load %arg9[%c0_87, %c0_88] : memref<128x64xbf16, #tpu.memory_space<vmem>>, vector<128x64xbf16>
      %cst_89 = arith.constant dense<0.000000e+00> : vector<16x64xf32>
      %313 = tpu.matmul %310, %312, %cst_89 {dimension_numbers = #tpu.dot_dimension_numbers<[1], [0], [0], [1], [0, 0, 1, 1], [], []>} : vector<16x128xbf16>, vector<128x64xbf16>, vector<16x64xf32> -> vector<16x64xf32>
      %c0_90 = arith.constant 0 : index
      %c0_91 = arith.constant 0 : index
      %314 = vector.load %arg10[%c0_90, %c0_91] : memref<128x64xbf16, #tpu.memory_space<vmem>>, vector<128x64xbf16>
      %cst_92 = arith.constant dense<0.000000e+00> : vector<16x64xf32>
      %315 = tpu.matmul %311, %314, %cst_92 {dimension_numbers = #tpu.dot_dimension_numbers<[1], [0], [0], [1], [0, 0, 1, 1], [], []>} : vector<16x128xbf16>, vector<128x64xbf16>, vector<16x64xf32> -> vector<16x64xf32>
      %316 = arith.addf %313, %315 : vector<16x64xf32>
      %c0_93 = arith.constant 0 : index
      %c0_94 = arith.constant 0 : index
      %317 = vector.load %arg11[%c0_93, %c0_94] : memref<1x64xf32, #tpu.memory_space<vmem>>, vector<1x64xf32>
      %318 = vector.broadcast %317 : vector<1x64xf32> to vector<16x64xf32>
      %319 = arith.addf %316, %318 : vector<16x64xf32>
      %320 = math.tanh %319 : vector<16x64xf32>
      %321 = arith.truncf %320 : vector<16x64xf32> to vector<16x64xbf16>
      %c0_95 = arith.constant 0 : index
      %c0_96 = arith.constant 0 : index
      %322 = vector.load %arg17[%c0_95, %c0_96] : memref<16x64xbf16, #tpu.memory_space<vmem>>, vector<16x64xbf16>
      tpu.vector_store %arg17[%c0_95, %c0_96], %321 {strides = array<i32>} : memref<16x64xbf16, #tpu.memory_space<vmem>>, vector<16x64xbf16>,
    } else {
    }
    %c7 = arith.constant 7 : index
    %c0 = arith.constant 0 : index
    %c0_1 = arith.constant 0 : index
    %3 = vector.load %arg16[%c7, %c0, %c0_1] : memref<8x2x128xf32, #tpu.memory_space<vmem>>, vector<1x2x128xf32>
    %4 = vector.shape_cast %3 : vector<1x2x128xf32> to vector<2x128xf32>
    %c0_2 = arith.constant 0 : index
    %c0_3 = arith.constant 0 : index
    %5 = vector.load %arg15[%c0_2, %c0_3] : memref<2x128xf32, #tpu.memory_space<vmem>>, vector<2x128xf32>
    tpu.vector_store %arg15[%c0_2, %c0_3], %4 {strides = array<i32>} : memref<2x128xf32, #tpu.memory_space<vmem>>, vector<2x128xf32>,
    %c0_4 = arith.constant 0 : index
    %c0_5 = arith.constant 0 : index
    %6 = vector.load %arg17[%c0_4, %c0_5] : memref<16x64xbf16, #tpu.memory_space<vmem>>, vector<16x64xbf16>
    %c0_6 = arith.constant 0 : index
    %c0_7 = arith.constant 0 : index
    %7 = vector.load %arg12[%c0_6, %c0_7] : memref<64x128xbf16, #tpu.memory_space<vmem>>, vector<64x128xbf16>
    %cst = arith.constant dense<0.000000e+00> : vector<16x128xf32>
    %8 = tpu.matmul %6, %7, %cst {dimension_numbers = #tpu.dot_dimension_numbers<[1], [0], [0], [1], [0, 0, 1, 1], [], []>} : vector<16x64xbf16>, vector<64x128xbf16>, vector<16x128xf32> -> vector<16x128xf32>
    %c0_8 = arith.constant 0 : index
    %c0_9 = arith.constant 0 : index
    %9 = vector.load %arg13[%c0_8, %c0_9] : memref<1x128xf32, #tpu.memory_space<vmem>>, vector<1x128xf32>
    %10 = vector.broadcast %9 : vector<1x128xf32> to vector<16x128xf32>
    %11 = arith.addf %8, %10 : vector<16x128xf32>
    %12 = vector.shape_cast %11 : vector<16x128xf32> to vector<2x8x128xf32>
    %13 = arith.truncf %12 : vector<2x8x128xf32> to vector<2x8x128xbf16>
    %c0_10 = arith.constant 0 : index
    %c0_11 = arith.constant 0 : index
    %c0_12 = arith.constant 0 : index
    %14 = vector.load %arg14[%c0_10, %c0_11, %c0_12] : memref<2x8x128xbf16, #tpu.memory_space<vmem>>, vector<2x8x128xbf16>
    tpu.vector_store %arg14[%c0_10, %c0_11, %c0_12], %13 {strides = array<i32>} : memref<2x8x128xbf16, #tpu.memory_space<vmem>>, vector<2x8x128xbf16>,
    return
  }
  func.func @transform_0(%arg0: i32, %arg1: i32) -> (i32, i32, i32) {
    %c0_i32 = arith.constant 0 : i32
    %c0_i32_0 = arith.constant 0 : i32
    %c0_i32_1 = arith.constant 0 : i32
    return %c0_i32, %arg0, %c0_i32_0 : i32, i32, i32
  }
  func.func @transform_1(%arg0: i32, %arg1: i32) -> (i32, i32) {
    %c0_i32 = arith.constant 0 : i32
    %c0_i32_0 = arith.constant 0 : i32
    return %arg0, %c0_i32 : i32, i32
  }
  func.func @transform_2(%arg0: i32, %arg1: i32) -> (i32, i32, i32) {
    %c0_i32 = arith.constant 0 : i32
    %c0_i32_0 = arith.constant 0 : i32
    %c0_i32_1 = arith.constant 0 : i32
    return %arg0, %c0_i32, %c0_i32_0 : i32, i32, i32
  }
  func.func @transform_3(%arg0: i32, %arg1: i32) -> (i32, i32) {
    %c0_i32 = arith.constant 0 : i32
    %c0_i32_0 = arith.constant 0 : i32
    %c0_i32_1 = arith.constant 0 : i32
    return %c0_i32, %c0_i32_0 : i32, i32
  }
  func.func @transform_4(%arg0: i32, %arg1: i32) -> (i32, i32) {
    %c0_i32 = arith.constant 0 : i32
    %c0_i32_0 = arith.constant 0 : i32
    %c0_i32_1 = arith.constant 0 : i32
    return %c0_i32, %c0_i32_0 : i32, i32
  }
  func.func @transform_5(%arg0: i32, %arg1: i32) -> (i32, i32) {
    %c0_i32 = arith.constant 0 : i32
    %c0_i32_0 = arith.constant 0 : i32
    %c0_i32_1 = arith.constant 0 : i32
    return %c0_i32, %c0_i32_0 : i32, i32
  }
  func.func @transform_6(%arg0: i32, %arg1: i32) -> (i32, i32) {
    %c0_i32 = arith.constant 0 : i32
    %c0_i32_0 = arith.constant 0 : i32
    %c0_i32_1 = arith.constant 0 : i32
    return %c0_i32, %c0_i32_0 : i32, i32
  }
  func.func @transform_7(%arg0: i32, %arg1: i32) -> (i32, i32) {
    %c0_i32 = arith.constant 0 : i32
    %c0_i32_0 = arith.constant 0 : i32
    %c0_i32_1 = arith.constant 0 : i32
    return %c0_i32, %c0_i32_0 : i32, i32
  }
  func.func @transform_8(%arg0: i32, %arg1: i32) -> (i32, i32) {
    %c0_i32 = arith.constant 0 : i32
    %c0_i32_0 = arith.constant 0 : i32
    %c0_i32_1 = arith.constant 0 : i32
    return %c0_i32, %c0_i32_0 : i32, i32
  }
  func.func @transform_9(%arg0: i32, %arg1: i32) -> (i32, i32) {
    %c0_i32 = arith.constant 0 : i32
    %c0_i32_0 = arith.constant 0 : i32
    %c0_i32_1 = arith.constant 0 : i32
    return %c0_i32, %c0_i32_0 : i32, i32
  }
  func.func @transform_10(%arg0: i32, %arg1: i32) -> (i32, i32) {
    %c0_i32 = arith.constant 0 : i32
    %c0_i32_0 = arith.constant 0 : i32
    return %c0_i32, %arg1 : i32, i32
  }
  func.func @transform_11(%arg0: i32, %arg1: i32) -> (i32, i32) {
    %c0_i32 = arith.constant 0 : i32
    %c0_i32_0 = arith.constant 0 : i32
    return %c0_i32, %arg1 : i32, i32
  }
  func.func @transform_12(%arg0: i32, %arg1: i32) -> (i32, i32, i32) {
    %c0_i32 = arith.constant 0 : i32
    %c0_i32_0 = arith.constant 0 : i32
    return %arg0, %c0_i32, %arg1 : i32, i32, i32
  }
  func.func @transform_13(%arg0: i32, %arg1: i32) -> (i32, i32) {
    %c0_i32 = arith.constant 0 : i32
    %c0_i32_0 = arith.constant 0 : i32
    return %arg0, %c0_i32 : i32, i32
  }
}

</mosaic_0001>

<llo_original>
// kernel: _decoder_forward_impl.1
$region0: #{_decoder_forward_impl.1}
  #allocation0 [shape = 'u32[]', space=smem, size = 0x4, offset = 0x4, fixed_abs, tag = 'smem constant byte address 0x4 - core index']
  #allocation1 [shape = 'u32[72,128]{1,0:T(1,128)}', space=vmem, size = 0x9000, scoped, tag = 'internal scratch']
  #allocation2 [shape = 'f32[8,2,128]{2,1,0:T(2,128)}', space=vmem, size = 0x2000, scoped, tag = 'scratch operand']
  #allocation3 [shape = 'bf16[16,64]{1,0:T(8,128)(2,1)}', space=vmem, size = 0x1000, scoped, tag = 'scratch operand']
  %s0 = inlined_call_operand.vmem [shape: bf16[8,2,32], index: 0, kind: input, shape index: {}]
  %s1 = inlined_call_operand.vmem [shape: f32[2,128], index: 1, kind: input, shape index: {}]
  %s2 = inlined_call_operand.vmem [shape: bf16[2,8,128], index: 2, kind: input, shape index: {}]
  %s3 = inlined_call_operand.vmem [shape: bf16[32,384], index: 3, kind: input, shape index: {}]
  %s4 = inlined_call_operand.vmem [shape: f32[1,384], index: 4, kind: input, shape index: {}]
  %s5 = inlined_call_operand.hbm [shape: f32[128,384], index: 5, kind: input, shape index: {}]
  %s6 = inlined_call_operand.vmem [shape: f32[1,128], index: 6, kind: input, shape index: {}]
  %s7 = inlined_call_operand.vmem [shape: bf16[128,64], index: 7, kind: input, shape index: {}]
  %s8 = inlined_call_operand.vmem [shape: bf16[128,64], index: 8, kind: input, shape index: {}]
  %s9 = inlined_call_operand.vmem [shape: f32[1,64], index: 9, kind: input, shape index: {}]
  %s10 = inlined_call_operand.vmem [shape: bf16[64,128], index: 10, kind: input, shape index: {}]
  %s11 = inlined_call_operand.vmem [shape: f32[1,128], index: 11, kind: input, shape index: {}]
  %s12 = inlined_call_operand.vmem [shape: bf16[2,8,128], index: 12, kind: output, shape index: {0}]
  %s13 = inlined_call_operand.vmem [shape: f32[2,128], index: 13, kind: output, shape index: {1}]
  %14 = xla_tuple %s12, %s13
  %s15 = sld [smem:[#allocation0]]
  $region74: #{_decoder_forward_impl.1} parent=0
    _
  %s17 = ssub.s32 1, %s15
  %s18 = scalar_select 0, %s17, %s15
  $region1: #{_decoder_forward_impl.1} parent=0
    #allocation4 [shape = 'u8[196608]{0}', space=vmem, size = 0x30000, scoped, tag = 'input window, operand 5, single buffered']
    #allocation5 [shape = 's32[1]{0}', space=sflag, size = 0x4, scoped, tag = 'scoped memory for _decoder_forward_impl.1']
    %19 = vsyncpa [#allocation5], 0
    // Predicated region
    $region2: #{_decoder_forward_impl.1} parent=1 // pred_check
      _
    $region3: #{_decoder_forward_impl.1} parent=1 // pred_check_branch
      %21 = sbr.rel (0) target = $region5
    $region4: #{_decoder_forward_impl.1} parent=1 // pred_region
      _
    $region5: #{_decoder_forward_impl.1} parent=1 // pred_fallthru
      _
    // Predicated region
    $region6: #{_decoder_forward_impl.1} parent=1 // pred_check
      _
    $region7: #{_decoder_forward_impl.1} parent=1 // pred_check_branch
      %23 = sbr.rel (0) target = $region9
    $region8: #{_decoder_forward_impl.1} parent=1 // pred_region
      _
    $region9: #{_decoder_forward_impl.1} parent=1 // pred_fallthru
      _
    // Predicated region
    $region10: #{_decoder_forward_impl.1} parent=1 // pred_check
      _
    $region11: #{_decoder_forward_impl.1} parent=1 // pred_check_branch
      %25 = sbr.rel (0) target = $region13
    $region12: #{_decoder_forward_impl.1} parent=1 // pred_region
      _
    $region13: #{_decoder_forward_impl.1} parent=1 // pred_fallthru
      _
    // Predicated region
    $region14: #{_decoder_forward_impl.1} parent=1 // pred_check
      _
    $region15: #{_decoder_forward_impl.1} parent=1 // pred_check_branch
      %27 = sbr.rel (0) target = $region17
    $region16: #{_decoder_forward_impl.1} parent=1 // pred_region
      _
    $region17: #{_decoder_forward_impl.1} parent=1 // pred_fallthru
      _
    // Predicated region
    $region18: #{_decoder_forward_impl.1} parent=1 // pred_check
      _
    $region19: #{_decoder_forward_impl.1} parent=1 // pred_check_branch
      %29 = sbr.rel (0) target = $region21
    $region20: #{_decoder_forward_impl.1} parent=1 // pred_region
      _
    $region21: #{_decoder_forward_impl.1} parent=1 // pred_fallthru
      _
    // Predicated region
    $region22: #{_decoder_forward_impl.1} parent=1 // pred_check
      _
    $region23: #{_decoder_forward_impl.1} parent=1 // pred_check_branch
      %31 = sbr.rel (0) target = $region25
    $region24: #{_decoder_forward_impl.1} parent=1 // pred_region
      %33 = vsyncadd [#allocation5], 0
      %s34 = sshll.u32 %s5, 4
      %s35 = int_to_ptr.hbm [resolvable:$true] %s34
      %s36 = sshll.u32 [#allocation4], 4
      %s37 = int_to_ptr.vmem [resolvable:$true] %s36
      %42 = dma.hbm_to_vmem [thread:$0]  %s35, 6144, %s37, [#allocation5], 384, 384, 24
    $region25: #{_decoder_forward_impl.1} parent=1 // pred_fallthru
      _
    // Predicated region
    $region26: #{_decoder_forward_impl.1} parent=1 // pred_check
      _
    $region27: #{_decoder_forward_impl.1} parent=1 // pred_check_branch
      %44 = sbr.rel (0) target = $region29
    $region28: #{_decoder_forward_impl.1} parent=1 // pred_region
      _
    $region29: #{_decoder_forward_impl.1} parent=1 // pred_fallthru
      _
    // Predicated region
    $region30: #{_decoder_forward_impl.1} parent=1 // pred_check
      _
    $region31: #{_decoder_forward_impl.1} parent=1 // pred_check_branch
      %46 = sbr.rel (0) target = $region33
    $region32: #{_decoder_forward_impl.1} parent=1 // pred_region
      _
    $region33: #{_decoder_forward_impl.1} parent=1 // pred_fallthru
      _
    // Predicated region
    $region34: #{_decoder_forward_impl.1} parent=1 // pred_check
      _
    $region35: #{_decoder_forward_impl.1} parent=1 // pred_check_branch
      %48 = sbr.rel (0) target = $region37
    $region36: #{_decoder_forward_impl.1} parent=1 // pred_region
      _
    $region37: #{_decoder_forward_impl.1} parent=1 // pred_fallthru
      _
    // Predicated region
    $region38: #{_decoder_forward_impl.1} parent=1 // pred_check
      _
    $region39: #{_decoder_forward_impl.1} parent=1 // pred_check_branch
      %50 = sbr.rel (0) target = $region41
    $region40: #{_decoder_forward_impl.1} parent=1 // pred_region
      _
    $region41: #{_decoder_forward_impl.1} parent=1 // pred_fallthru
      _
    // Predicated region
    $region42: #{_decoder_forward_impl.1} parent=1 // pred_check
      _
    $region43: #{_decoder_forward_impl.1} parent=1 // pred_check_branch
      %52 = sbr.rel (0) target = $region45
    $region44: #{_decoder_forward_impl.1} parent=1 // pred_region
      _
    $region45: #{_decoder_forward_impl.1} parent=1 // pred_fallthru
      _
    // Predicated region
    $region46: #{_decoder_forward_impl.1} parent=1 // pred_check
      _
    $region47: #{_decoder_forward_impl.1} parent=1 // pred_check_branch
      %54 = sbr.rel (0) target = $region49
    $region48: #{_decoder_forward_impl.1} parent=1 // pred_region
      _
    $region49: #{_decoder_forward_impl.1} parent=1 // pred_fallthru
      _
    // Predicated region
    $region50: #{_decoder_forward_impl.1} parent=1 // pred_check
      _
    $region51: #{_decoder_forward_impl.1} parent=1 // pred_check_branch
      %56 = sbr.rel (0) target = $region53
    $region52: #{_decoder_forward_impl.1} parent=1 // pred_region
      %58 = dma.done [#allocation5], 6144
    $region53: #{_decoder_forward_impl.1} parent=1 // pred_fallthru
      _
    %p60 = scmp.eq.s32.totalorder 0, 0
    // Predicated region
    $region54: #{_decoder_forward_impl.1} parent=1 // pred_check
      %p61 = pneg %p60
    $region55: #{_decoder_forward_impl.1} parent=1 // pred_check_branch
      %63 = sbr.rel (%p61) target = $region57
    $region56: #{_decoder_forward_impl.1} parent=1 // pred_region
      %v64 = vld [vmem:[%s0] sm:$0x1]
      %v65 = vld [vmem:[%s0 + $0x1] sm:$0x1]
      %v66 = vld [vmem:[%s0 + $0x2] sm:$0x1]
      %v67 = vld [vmem:[%s0 + $0x3] sm:$0x1]
      %v68 = vld [vmem:[%s0 + $0x4] sm:$0x1]
      %v69 = vld [vmem:[%s0 + $0x5] sm:$0x1]
      %v70 = vld [vmem:[%s0 + $0x6] sm:$0x1]
      %v71 = vld [vmem:[%s0 + $0x7] sm:$0x1]
      %v72 = vld [vmem:[%s3] sm:$0xff]
      %v73 = vld [vmem:[%s3 + $0x8] sm:$0xf]
      %v74 = vld [vmem:[%s3 + $0xc] sm:$0xff]
      %v75 = vld [vmem:[%s3 + $0x14] sm:$0xf]
      %v76 = vld [vmem:[%s3 + $0x18] sm:$0xff]
      %v77 = vld [vmem:[%s3 + $0x20] sm:$0xf]
      %v78 = vld [vmem:[%s3 + $0x24] sm:$0xff]
      %v79 = vld [vmem:[%s3 + $0x2c] sm:$0xf]
      %v80 = vld [vmem:[%s4] sm:$0x7]
      %v82 = vperm.slane %v80, 0
      %v83 = vperm.slane %v80, 1
      %v84 = vperm.slane %v80, 2
      %89 = vst [vmem:[#allocation1] ss:$9 sm:$0xff] %v64
      %s91 = scalar_lea.vmem [#allocation1], 1
      %92 = vst [vmem:[%s91] ss:$9 sm:$0xff] %v65
      %s94 = scalar_lea.vmem [#allocation1], 2
      %95 = vst [vmem:[%s94] ss:$9 sm:$0xff] %v66
      %s97 = scalar_lea.vmem [#allocation1], 3
      %98 = vst [vmem:[%s97] ss:$9 sm:$0xff] %v67
      %s100 = scalar_lea.vmem [#allocation1], 4
      %101 = vst [vmem:[%s100] ss:$9 sm:$0xff] %v68
      %s103 = scalar_lea.vmem [#allocation1], 5
      %104 = vst [vmem:[%s103] ss:$9 sm:$0xff] %v69
      %s106 = scalar_lea.vmem [#allocation1], 6
      %107 = vst [vmem:[%s106] ss:$9 sm:$0xff] %v70
      %s109 = scalar_lea.vmem [#allocation1], 7
      %110 = vst [vmem:[%s109] ss:$9 sm:$0xff] %v71
      %v111 = vld [vmem:[#allocation1] sm:$0xff]
      %v120 = vunpack.c.l.b16 %v72
      %v121 = vunpack.c.h.b16 %v72
      %v122 = vunpack.c.l.b16 %v73
      %v123 = vunpack.c.l.b16 %v74
      %v124 = vunpack.c.h.b16 %v74
      %v125 = vunpack.c.l.b16 %v75
      %v126 = vunpack.c.l.b16 %v76
      %v127 = vunpack.c.h.b16 %v76
      %v128 = vunpack.c.l.b16 %v77
      %v129 = vunpack.c.l.b16 %v78
      %v130 = vunpack.c.h.b16 %v78
      %v131 = vunpack.c.l.b16 %v79
      %v132 = vpack.c.b16 %v123, %v120
      %v133 = vpack.c.b16 %v124, %v121
      %v134 = vpack.c.b16 %v125, %v122
      %v135 = vpack.c.b16 %v129, %v126
      %v136 = vpack.c.b16 %v130, %v127
      %v137 = vpack.c.b16 %v131, %v128
      %vm144 = vcmask 261120
      %v145 = vsel %vm144, %v111, 0
      %147 = vmatpush.bf16.msra.mxu0 0
      %148 = vmatpush.bf16.msra.mxu0 0
      %149 = vmatpush.bf16.msra.mxu0 0
      %150 = vmatpush.bf16.msra.mxu0 0
      %151 = vmatpush.bf16.msra.mxu0 0
      %152 = vmatpush.bf16.msra.mxu0 0
      %153 = vmatpush.bf16.msra.mxu0 %v135
      %154 = vmatpush.bf16.msra.mxu0 %v132
      %155 = vmatmul.bf16.gmra.mxu0 %v145
      %v156 = vpop.f32.mrf.mxu0
      %v157 = vadd.f32 %v82, %v156
      %v158 = vpop.f32.mrf.mxu0
      %v159 = vadd.f32 %v82, %v158
      %160 = vdwg.mxu0
      %161 = vmatpush.bf16.msra.mxu0 0
      %162 = vmatpush.bf16.msra.mxu0 0
      %163 = vmatpush.bf16.msra.mxu0 0
      %164 = vmatpush.bf16.msra.mxu0 0
      %165 = vmatpush.bf16.msra.mxu0 0
      %166 = vmatpush.bf16.msra.mxu0 0
      %167 = vmatpush.bf16.msra.mxu0 %v136
      %168 = vmatpush.bf16.msra.mxu0 %v133
      %169 = vmatmul.bf16.gmra.mxu0 %v145
      %v170 = vpop.f32.mrf.mxu0
      %v171 = vadd.f32 %v83, %v170
      %v172 = vpop.f32.mrf.mxu0
      %v173 = vadd.f32 %v83, %v172
      %174 = vdwg.mxu0
      %175 = vmatpush.bf16.msra.mxu0 0
      %176 = vmatpush.bf16.msra.mxu0 0
      %177 = vmatpush.bf16.msra.mxu0 0
      %178 = vmatpush.bf16.msra.mxu0 0
      %179 = vmatpush.bf16.msra.mxu0 0
      %180 = vmatpush.bf16.msra.mxu0 0
      %181 = vmatpush.bf16.msra.mxu0 %v137
      %182 = vmatpush.bf16.msra.mxu0 %v134
      %183 = vmatmul.bf16.gmra.mxu0 %v145
      %v184 = vpop.f32.mrf.mxu0
      %v185 = vadd.f32 %v84, %v184
      %v186 = vpop.f32.mrf.mxu0
      %v187 = vadd.f32 %v84, %v186
      %188 = vdwg.mxu0
      %v195 = vrot.slane %v171, 6
      %v196 = vrot.slane %v185, 4
      %v197 = vrot.slane %v173, 6
      %v198 = vrot.slane %v187, 4
      %vm199 = vcmask 1041408
      %v200 = vsel %vm199, %v157, %v195
      %vm201 = vcmask 1043456
      %v202 = vsel %vm201, %v200, %v196
      %vm203 = vcmask 1043458
      %v204 = vsel %vm203, %v157, %v195
      %vm205 = vcmask 1045506
      %v206 = vsel %vm205, %v204, %v196
      %v207 = vrot.slane %v206, 2
      %vm208 = vcmask 1045508
      %v209 = vsel %vm208, %v157, %v195
      %v210 = vsel %vm201, %v196, %v209
      %v211 = vrot.slane %v210, 4
      %vm212 = vcmask 1045504
      %v213 = vsel %vm212, %v195, %v157
      %v214 = vsel %vm205, %v196, %v213
      %v215 = vrot.slane %v214, 6
      %v216 = vsel %vm199, %v159, %v197
      %v217 = vsel %vm201, %v216, %v198
      %v218 = vsel %vm203, %v159, %v197
      %v219 = vsel %vm205, %v218, %v198
      %v220 = vrot.slane %v219, 2
      %v221 = vsel %vm208, %v159, %v197
      %v222 = vsel %vm201, %v198, %v221
      %v223 = vrot.slane %v222, 4
      %v224 = vsel %vm212, %v197, %v159
      %v225 = vsel %vm205, %v198, %v224
      %v226 = vrot.slane %v225, 6
      %v235 = vld [vmem:[#allocation4] sm:$0xff]
      %v236 = vld [vmem:[#allocation4 + $0x8] sm:$0xff]
      %v237 = vld [vmem:[#allocation4 + $0x10] sm:$0xff]
      %v238 = vld [vmem:[#allocation4 + $0x18] sm:$0xff]
      %v239 = vld [vmem:[#allocation4 + $0x20] sm:$0xff]
      %v240 = vld [vmem:[#allocation4 + $0x28] sm:$0xff]
      %v241 = vld [vmem:[#allocation4 + $0x30] sm:$0xff]
      %v242 = vld [vmem:[#allocation4 + $0x38] sm:$0xff]
      %v243 = vld [vmem:[#allocation4 + $0x40] sm:$0xff]
      %v244 = vld [vmem:[#allocation4 + $0x48] sm:$0xff]
      %v245 = vld [vmem:[#allocation4 + $0x50] sm:$0xff]
      %v246 = vld [vmem:[#allocation4 + $0x58] sm:$0xff]
      %v247 = vld [vmem:[#allocation4 + $0x60] sm:$0xff]
      %v248 = vld [vmem:[#allocation4 + $0x68] sm:$0xff]
      %v249 = vld [vmem:[#allocation4 + $0x70] sm:$0xff]
      %v250 = vld [vmem:[#allocation4 + $0x78] sm:$0xff]
      %v251 = vld [vmem:[#allocation4 + $0x80] sm:$0xff]
      %v252 = vld [vmem:[#allocation4 + $0x88] sm:$0xff]
      %v253 = vld [vmem:[#allocation4 + $0x90] sm:$0xff]
      %v254 = vld [vmem:[#allocation4 + $0x98] sm:$0xff]
      %v255 = vld [vmem:[#allocation4 + $0xa0] sm:$0xff]
      %v256 = vld [vmem:[#allocation4 + $0xa8] sm:$0xff]
      %v257 = vld [vmem:[#allocation4 + $0xb0] sm:$0xff]
      %v258 = vld [vmem:[#allocation4 + $0xb8] sm:$0xff]
      %v259 = vld [vmem:[#allocation4 + $0xc0] sm:$0xff]
      %v260 = vld [vmem:[#allocation4 + $0xc8] sm:$0xff]
      %v261 = vld [vmem:[#allocation4 + $0xd0] sm:$0xff]
      %v262 = vld [vmem:[#allocation4 + $0xd8] sm:$0xff]
      %v263 = vld [vmem:[#allocation4 + $0xe0] sm:$0xff]
      %v264 = vld [vmem:[#allocation4 + $0xe8] sm:$0xff]
      %v265 = vld [vmem:[#allocation4 + $0xf0] sm:$0xff]
      %v266 = vld [vmem:[#allocation4 + $0xf8] sm:$0xff]
      %v267 = vld [vmem:[#allocation4 + $0x100] sm:$0xff]
      %v268 = vld [vmem:[#allocation4 + $0x108] sm:$0xff]
      %v269 = vld [vmem:[#allocation4 + $0x110] sm:$0xff]
      %v270 = vld [vmem:[#allocation4 + $0x118] sm:$0xff]
      %v271 = vld [vmem:[#allocation4 + $0x120] sm:$0xff]
      %v272 = vld [vmem:[#allocation4 + $0x128] sm:$0xff]
      %v273 = vld [vmem:[#allocation4 + $0x130] sm:$0xff]
      %v274 = vld [vmem:[#allocation4 + $0x138] sm:$0xff]
      %v275 = vld [vmem:[#allocation4 + $0x140] sm:$0xff]
      %v276 = vld [vmem:[#allocation4 + $0x148] sm:$0xff]
      %v277 = vld [vmem:[#allocation4 + $0x150] sm:$0xff]
      %v278 = vld [vmem:[#allocation4 + $0x158] sm:$0xff]
      %v279 = vld [vmem:[#allocation4 + $0x160] sm:$0xff]
      %v280 = vld [vmem:[#allocation4 + $0x168] sm:$0xff]
      %v281 = vld [vmem:[#allocation4 + $0x170] sm:$0xff]
      %v282 = vld [vmem:[#allocation4 + $0x178] sm:$0xff]
      %v283 = vld [vmem:[%s6] sm:$0x1]
      %v285 = vperm.slane %v283, 0
      %v287 = vld [vmem:[%s1] sm:$0x3]
      %288 = vmatpush.msra.mxu0 %v280
      %289 = vmatpush.msra.mxu0 %v277
      %290 = vmatpush.msra.mxu0 %v274
      %291 = vmatpush.msra.mxu0 %v271
      %292 = vmatpush.msra.mxu0 %v268
      %293 = vmatpush.msra.mxu0 %v265
      %294 = vmatpush.msra.mxu0 %v262
      %295 = vmatpush.msra.mxu0 %v259
      %296 = vmatpush.msra.mxu0 %v256
      %297 = vmatpush.msra.mxu0 %v253
      %298 = vmatpush.msra.mxu0 %v250
      %299 = vmatpush.msra.mxu0 %v247
      %300 = vmatpush.msra.mxu0 %v244
      %301 = vmatpush.msra.mxu0 %v241
      %302 = vmatpush.msra.mxu0 %v238
      %303 = vmatpush.msra.mxu0 %v235
      %304 = vmatmul.f32.gmra.mxu0 %v287
      %v305 = vpop.f32.mrf.mxu0
      %v306 = vadd.f32 0.0, %v305
      %307 = vdwg.mxu0
      %308 = vmatpush.msra.mxu0 %v281
      %309 = vmatpush.msra.mxu0 %v278
      %310 = vmatpush.msra.mxu0 %v275
      %311 = vmatpush.msra.mxu0 %v272
      %312 = vmatpush.msra.mxu0 %v269
      %313 = vmatpush.msra.mxu0 %v266
      %314 = vmatpush.msra.mxu0 %v263
      %315 = vmatpush.msra.mxu0 %v260
      %316 = vmatpush.msra.mxu0 %v257
      %317 = vmatpush.msra.mxu0 %v254
      %318 = vmatpush.msra.mxu0 %v251
      %319 = vmatpush.msra.mxu0 %v248
      %320 = vmatpush.msra.mxu0 %v245
      %321 = vmatpush.msra.mxu0 %v242
      %322 = vmatpush.msra.mxu0 %v239
      %323 = vmatpush.msra.mxu0 %v236
      %324 = vmatmul.f32.gmra.mxu0 %v287
      %v325 = vpop.f32.mrf.mxu0
      %v326 = vadd.f32 0.0, %v325
      %327 = vdwg.mxu0
      %328 = vmatpush.msra.mxu0 %v282
      %329 = vmatpush.msra.mxu0 %v279
      %330 = vmatpush.msra.mxu0 %v276
      %331 = vmatpush.msra.mxu0 %v273
      %332 = vmatpush.msra.mxu0 %v270
      %333 = vmatpush.msra.mxu0 %v267
      %334 = vmatpush.msra.mxu0 %v264
      %335 = vmatpush.msra.mxu0 %v261
      %336 = vmatpush.msra.mxu0 %v258
      %337 = vmatpush.msra.mxu0 %v255
      %338 = vmatpush.msra.mxu0 %v252
      %339 = vmatpush.msra.mxu0 %v249
      %340 = vmatpush.msra.mxu0 %v246
      %341 = vmatpush.msra.mxu0 %v243
      %342 = vmatpush.msra.mxu0 %v240
      %343 = vmatpush.msra.mxu0 %v237
      %344 = vmatmul.f32.gmra.mxu0 %v287
      %v345 = vpop.f32.mrf.mxu0
      %v346 = vadd.f32 0.0, %v345
      %347 = vdwg.mxu0
      %v348 = vadd.f32 %v202, %v306
      %v349 = vxor.u32 %v348, 2147483648
      %v350 = vmul.f32 %v349, 1.442695
      %v351 = vpow.pop %v350
      %v352 = vadd.f32 %v351, 1.0
      %v353 = vrcp.pop %v352
      %v354 = vmul.f32 %v352, %v353
      %v355 = vsub.f32 1.0, %v354
      %v356 = vmul.f32 %v353, %v355
      %v357 = vadd.f32 %v353, %v356
      %vm358 = vweird.f32 %v352
      %vm359 = vweird.f32 %v353
      %vm360 = vmor %vm358, %vm359
      %v361 = vsel %vm360, %v353, %v357
      %v362 = vand.u32 2147483647, %v352
      %vm363 = vcmp.eq.f32.partialorder %v362, 8.507059e+37
      %v364 = vand.u32 %v352, 2147483648
      %v365 = vor.u32 1.1754944e-38, %v364
      %v366 = vsel %vm363, %v365, %v361
      %v367 = vmul.f32 1.0, %v366
      %v368 = vrot.slane %v202, 2
      %v370 = vadd.f32 %v368, %v326
      %v371 = vxor.u32 %v370, 2147483648
      %v372 = vmul.f32 %v371, 1.442695
      %v373 = vpow.pop %v372
      %v374 = vadd.f32 %v373, 1.0
      %v375 = vrcp.pop %v374
      %v376 = vmul.f32 %v374, %v375
      %v377 = vsub.f32 1.0, %v376
      %v378 = vmul.f32 %v375, %v377
      %v379 = vadd.f32 %v375, %v378
      %vm380 = vweird.f32 %v374
      %vm381 = vweird.f32 %v375
      %vm382 = vmor %vm380, %vm381
      %v383 = vsel %vm382, %v375, %v379
      %v384 = vand.u32 2147483647, %v374
      %vm385 = vcmp.eq.f32.partialorder %v384, 8.507059e+37
      %v386 = vand.u32 %v374, 2147483648
      %v387 = vor.u32 1.1754944e-38, %v386
      %v388 = vsel %vm385, %v387, %v383
      %v389 = vmul.f32 1.0, %v388
      %v390 = vadd.f32 %v346, %v285
      %v391 = vmul.f32 %v367, %v390
      %v392 = vrot.slane %v202, 4
      %v394 = vadd.f32 %v392, %v391
      %v395 = vtanh.pop %v394
      %v396 = vsub.f32 1.0, %v389
      %v397 = vmul.f32 %v396, %v395
      %v398 = vmul.f32 %v389, %v287
      %v399 = vadd.f32 %v397, %v398
      %400 = vst [vmem:[#allocation2] sm:$0x3] %v399
      %401 = vmatpush.msra.mxu0 %v280
      %402 = vmatpush.msra.mxu0 %v277
      %403 = vmatpush.msra.mxu0 %v274
      %404 = vmatpush.msra.mxu0 %v271
      %405 = vmatpush.msra.mxu0 %v268
      %406 = vmatpush.msra.mxu0 %v265
      %407 = vmatpush.msra.mxu0 %v262
      %408 = vmatpush.msra.mxu0 %v259
      %409 = vmatpush.msra.mxu0 %v256
      %410 = vmatpush.msra.mxu0 %v253
      %411 = vmatpush.msra.mxu0 %v250
      %412 = vmatpush.msra.mxu0 %v247
      %413 = vmatpush.msra.mxu0 %v244
      %414 = vmatpush.msra.mxu0 %v241
      %415 = vmatpush.msra.mxu0 %v238
      %416 = vmatpush.msra.mxu0 %v235
      %417 = vmatmul.f32.gmra.mxu0 %v399
      %v418 = vpop.f32.mrf.mxu0
      %v419 = vadd.f32 0.0, %v418
      %420 = vdwg.mxu0
      %421 = vmatpush.msra.mxu0 %v281
      %422 = vmatpush.msra.mxu0 %v278
      %423 = vmatpush.msra.mxu0 %v275
      %424 = vmatpush.msra.mxu0 %v272
      %425 = vmatpush.msra.mxu0 %v269
      %426 = vmatpush.msra.mxu0 %v266
      %427 = vmatpush.msra.mxu0 %v263
      %428 = vmatpush.msra.mxu0 %v260
      %429 = vmatpush.msra.mxu0 %v257
      %430 = vmatpush.msra.mxu0 %v254
      %431 = vmatpush.msra.mxu0 %v251
      %432 = vmatpush.msra.mxu0 %v248
      %433 = vmatpush.msra.mxu0 %v245
      %434 = vmatpush.msra.mxu0 %v242
      %435 = vmatpush.msra.mxu0 %v239
      %436 = vmatpush.msra.mxu0 %v236
      %437 = vmatmul.f32.gmra.mxu0 %v399
      %v438 = vpop.f32.mrf.mxu0
      %v439 = vadd.f32 0.0, %v438
      %440 = vdwg.mxu0
      %441 = vmatpush.msra.mxu0 %v282
      %442 = vmatpush.msra.mxu0 %v279
      %443 = vmatpush.msra.mxu0 %v276
      %444 = vmatpush.msra.mxu0 %v273
      %445 = vmatpush.msra.mxu0 %v270
      %446 = vmatpush.msra.mxu0 %v267
      %447 = vmatpush.msra.mxu0 %v264
      %448 = vmatpush.msra.mxu0 %v261
      %449 = vmatpush.msra.mxu0 %v258
      %450 = vmatpush.msra.mxu0 %v255
      %451 = vmatpush.msra.mxu0 %v252
      %452 = vmatpush.msra.mxu0 %v249
      %453 = vmatpush.msra.mxu0 %v246
      %454 = vmatpush.msra.mxu0 %v243
      %455 = vmatpush.msra.mxu0 %v240
      %456 = vmatpush.msra.mxu0 %v237
      %457 = vmatmul.f32.gmra.mxu0 %v399
      %v458 = vpop.f32.mrf.mxu0
      %v459 = vadd.f32 0.0, %v458
      %460 = vdwg.mxu0
      %v461 = vadd.f32 %v207, %v419
      %v462 = vxor.u32 %v461, 2147483648
      %v463 = vmul.f32 %v462, 1.442695
      %v464 = vpow.pop %v463
      %v465 = vadd.f32 %v464, 1.0
      %v466 = vrcp.pop %v465
      %v467 = vmul.f32 %v465, %v466
      %v468 = vsub.f32 1.0, %v467
      %v469 = vmul.f32 %v466, %v468
      %v470 = vadd.f32 %v466, %v469
      %vm471 = vweird.f32 %v465
      %vm472 = vweird.f32 %v466
      %vm473 = vmor %vm471, %vm472
      %v474 = vsel %vm473, %v466, %v470
      %v475 = vand.u32 2147483647, %v465
      %vm476 = vcmp.eq.f32.partialorder %v475, 8.507059e+37
      %v477 = vand.u32 %v465, 2147483648
      %v478 = vor.u32 1.1754944e-38, %v477
      %v479 = vsel %vm476, %v478, %v474
      %v480 = vmul.f32 1.0, %v479
      %v481 = vrot.slane %v207, 2
      %v483 = vadd.f32 %v481, %v439
      %v484 = vxor.u32 %v483, 2147483648
      %v485 = vmul.f32 %v484, 1.442695
      %v486 = vpow.pop %v485
      %v487 = vadd.f32 %v486, 1.0
      %v488 = vrcp.pop %v487
      %v489 = vmul.f32 %v487, %v488
      %v490 = vsub.f32 1.0, %v489
      %v491 = vmul.f32 %v488, %v490
      %v492 = vadd.f32 %v488, %v491
      %vm493 = vweird.f32 %v487
      %vm494 = vweird.f32 %v488
      %vm495 = vmor %vm493, %vm494
      %v496 = vsel %vm495, %v488, %v492
      %v497 = vand.u32 2147483647, %v487
      %vm498 = vcmp.eq.f32.partialorder %v497, 8.507059e+37
      %v499 = vand.u32 %v487, 2147483648
      %v500 = vor.u32 1.1754944e-38, %v499
      %v501 = vsel %vm498, %v500, %v496
      %v502 = vmul.f32 1.0, %v501
      %v503 = vadd.f32 %v459, %v285
      %v504 = vmul.f32 %v480, %v503
      %v505 = vrot.slane %v207, 4
      %v507 = vadd.f32 %v505, %v504
      %v508 = vtanh.pop %v507
      %v509 = vsub.f32 1.0, %v502
      %v510 = vmul.f32 %v509, %v508
      %v511 = vmul.f32 %v502, %v399
      %v512 = vadd.f32 %v510, %v511
      %s513 = scalar_lea.vmem [#allocation2], 2
      %514 = vst [vmem:[%s513] sm:$0x3] %v512
      %515 = vmatpush.msra.mxu0 %v280
      %516 = vmatpush.msra.mxu0 %v277
      %517 = vmatpush.msra.mxu0 %v274
      %518 = vmatpush.msra.mxu0 %v271
      %519 = vmatpush.msra.mxu0 %v268
      %520 = vmatpush.msra.mxu0 %v265
      %521 = vmatpush.msra.mxu0 %v262
      %522 = vmatpush.msra.mxu0 %v259
      %523 = vmatpush.msra.mxu0 %v256
      %524 = vmatpush.msra.mxu0 %v253
      %525 = vmatpush.msra.mxu0 %v250
      %526 = vmatpush.msra.mxu0 %v247
      %527 = vmatpush.msra.mxu0 %v244
      %528 = vmatpush.msra.mxu0 %v241
      %529 = vmatpush.msra.mxu0 %v238
      %530 = vmatpush.msra.mxu0 %v235
      %531 = vmatmul.f32.gmra.mxu0 %v512
      %v532 = vpop.f32.mrf.mxu0
      %v533 = vadd.f32 0.0, %v532
      %534 = vdwg.mxu0
      %535 = vmatpush.msra.mxu0 %v281
      %536 = vmatpush.msra.mxu0 %v278
      %537 = vmatpush.msra.mxu0 %v275
      %538 = vmatpush.msra.mxu0 %v272
      %539 = vmatpush.msra.mxu0 %v269
      %540 = vmatpush.msra.mxu0 %v266
      %541 = vmatpush.msra.mxu0 %v263
      %542 = vmatpush.msra.mxu0 %v260
      %543 = vmatpush.msra.mxu0 %v257
      %544 = vmatpush.msra.mxu0 %v254
      %545 = vmatpush.msra.mxu0 %v251
      %546 = vmatpush.msra.mxu0 %v248
      %547 = vmatpush.msra.mxu0 %v245
      %548 = vmatpush.msra.mxu0 %v242
      %549 = vmatpush.msra.mxu0 %v239
      %550 = vmatpush.msra.mxu0 %v236
      %551 = vmatmul.f32.gmra.mxu0 %v512
      %v552 = vpop.f32.mrf.mxu0
      %v553 = vadd.f32 0.0, %v552
      %554 = vdwg.mxu0
      %555 = vmatpush.msra.mxu0 %v282
      %556 = vmatpush.msra.mxu0 %v279
      %557 = vmatpush.msra.mxu0 %v276
      %558 = vmatpush.msra.mxu0 %v273
      %559 = vmatpush.msra.mxu0 %v270
      %560 = vmatpush.msra.mxu0 %v267
      %561 = vmatpush.msra.mxu0 %v264
      %562 = vmatpush.msra.mxu0 %v261
      %563 = vmatpush.msra.mxu0 %v258
      %564 = vmatpush.msra.mxu0 %v255
      %565 = vmatpush.msra.mxu0 %v252
      %566 = vmatpush.msra.mxu0 %v249
      %567 = vmatpush.msra.mxu0 %v246
      %568 = vmatpush.msra.mxu0 %v243
      %569 = vmatpush.msra.mxu0 %v240
      %570 = vmatpush.msra.mxu0 %v237
      %571 = vmatmul.f32.gmra.mxu0 %v512
      %v572 = vpop.f32.mrf.mxu0
      %v573 = vadd.f32 0.0, %v572
      %574 = vdwg.mxu0
      %v575 = vadd.f32 %v211, %v533
      %v576 = vxor.u32 %v575, 2147483648
      %v577 = vmul.f32 %v576, 1.442695
      %v578 = vpow.pop %v577
      %v579 = vadd.f32 %v578, 1.0
      %v580 = vrcp.pop %v579
      %v581 = vmul.f32 %v579, %v580
      %v582 = vsub.f32 1.0, %v581
      %v583 = vmul.f32 %v580, %v582
      %v584 = vadd.f32 %v580, %v583
      %vm585 = vweird.f32 %v579
      %vm586 = vweird.f32 %v580
      %vm587 = vmor %vm585, %vm586
      %v588 = vsel %vm587, %v580, %v584
      %v589 = vand.u32 2147483647, %v579
      %vm590 = vcmp.eq.f32.partialorder %v589, 8.507059e+37
      %v591 = vand.u32 %v579, 2147483648
      %v592 = vor.u32 1.1754944e-38, %v591
      %v593 = vsel %vm590, %v592, %v588
      %v594 = vmul.f32 1.0, %v593
      %v595 = vrot.slane %v211, 2
      %v597 = vadd.f32 %v595, %v553
      %v598 = vxor.u32 %v597, 2147483648
      %v599 = vmul.f32 %v598, 1.442695
      %v600 = vpow.pop %v599
      %v601 = vadd.f32 %v600, 1.0
      %v602 = vrcp.pop %v601
      %v603 = vmul.f32 %v601, %v602
      %v604 = vsub.f32 1.0, %v603
      %v605 = vmul.f32 %v602, %v604
      %v606 = vadd.f32 %v602, %v605
      %vm607 = vweird.f32 %v601
      %vm608 = vweird.f32 %v602
      %vm609 = vmor %vm607, %vm608
      %v610 = vsel %vm609, %v602, %v606
      %v611 = vand.u32 2147483647, %v601
      %vm612 = vcmp.eq.f32.partialorder %v611, 8.507059e+37
      %v613 = vand.u32 %v601, 2147483648
      %v614 = vor.u32 1.1754944e-38, %v613
      %v615 = vsel %vm612, %v614, %v610
      %v616 = vmul.f32 1.0, %v615
      %v617 = vadd.f32 %v573, %v285
      %v618 = vmul.f32 %v594, %v617
      %v619 = vrot.slane %v211, 4
      %v621 = vadd.f32 %v619, %v618
      %v622 = vtanh.pop %v621
      %v623 = vsub.f32 1.0, %v616
      %v624 = vmul.f32 %v623, %v622
      %v625 = vmul.f32 %v616, %v512
      %v626 = vadd.f32 %v624, %v625
      %s627 = scalar_lea.vmem [#allocation2], 4
      %628 = vst [vmem:[%s627] sm:$0x3] %v626
      %629 = vmatpush.msra.mxu0 %v280
      %630 = vmatpush.msra.mxu0 %v277
      %631 = vmatpush.msra.mxu0 %v274
      %632 = vmatpush.msra.mxu0 %v271
      %633 = vmatpush.msra.mxu0 %v268
      %634 = vmatpush.msra.mxu0 %v265
      %635 = vmatpush.msra.mxu0 %v262
      %636 = vmatpush.msra.mxu0 %v259
      %637 = vmatpush.msra.mxu0 %v256
      %638 = vmatpush.msra.mxu0 %v253
      %639 = vmatpush.msra.mxu0 %v250
      %640 = vmatpush.msra.mxu0 %v247
      %641 = vmatpush.msra.mxu0 %v244
      %642 = vmatpush.msra.mxu0 %v241
      %643 = vmatpush.msra.mxu0 %v238
      %644 = vmatpush.msra.mxu0 %v235
      %645 = vmatmul.f32.gmra.mxu0 %v626
      %v646 = vpop.f32.mrf.mxu0
      %v647 = vadd.f32 0.0, %v646
      %648 = vdwg.mxu0
      %649 = vmatpush.msra.mxu0 %v281
      %650 = vmatpush.msra.mxu0 %v278
      %651 = vmatpush.msra.mxu0 %v275
      %652 = vmatpush.msra.mxu0 %v272
      %653 = vmatpush.msra.mxu0 %v269
      %654 = vmatpush.msra.mxu0 %v266
      %655 = vmatpush.msra.mxu0 %v263
      %656 = vmatpush.msra.mxu0 %v260
      %657 = vmatpush.msra.mxu0 %v257
      %658 = vmatpush.msra.mxu0 %v254
      %659 = vmatpush.msra.mxu0 %v251
      %660 = vmatpush.msra.mxu0 %v248
      %661 = vmatpush.msra.mxu0 %v245
      %662 = vmatpush.msra.mxu0 %v242
      %663 = vmatpush.msra.mxu0 %v239
      %664 = vmatpush.msra.mxu0 %v236
      %665 = vmatmul.f32.gmra.mxu0 %v626
      %v666 = vpop.f32.mrf.mxu0
      %v667 = vadd.f32 0.0, %v666
      %668 = vdwg.mxu0
      %669 = vmatpush.msra.mxu0 %v282
      %670 = vmatpush.msra.mxu0 %v279
      %671 = vmatpush.msra.mxu0 %v276
      %672 = vmatpush.msra.mxu0 %v273
      %673 = vmatpush.msra.mxu0 %v270
      %674 = vmatpush.msra.mxu0 %v267
      %675 = vmatpush.msra.mxu0 %v264
      %676 = vmatpush.msra.mxu0 %v261
      %677 = vmatpush.msra.mxu0 %v258
      %678 = vmatpush.msra.mxu0 %v255
      %679 = vmatpush.msra.mxu0 %v252
      %680 = vmatpush.msra.mxu0 %v249
      %681 = vmatpush.msra.mxu0 %v246
      %682 = vmatpush.msra.mxu0 %v243
      %683 = vmatpush.msra.mxu0 %v240
      %684 = vmatpush.msra.mxu0 %v237
      %685 = vmatmul.f32.gmra.mxu0 %v626
      %v686 = vpop.f32.mrf.mxu0
      %v687 = vadd.f32 0.0, %v686
      %688 = vdwg.mxu0
      %v689 = vadd.f32 %v215, %v647
      %v690 = vxor.u32 %v689, 2147483648
      %v691 = vmul.f32 %v690, 1.442695
      %v692 = vpow.pop %v691
      %v693 = vadd.f32 %v692, 1.0
      %v694 = vrcp.pop %v693
      %v695 = vmul.f32 %v693, %v694
      %v696 = vsub.f32 1.0, %v695
      %v697 = vmul.f32 %v694, %v696
      %v698 = vadd.f32 %v694, %v697
      %vm699 = vweird.f32 %v693
      %vm700 = vweird.f32 %v694
      %vm701 = vmor %vm699, %vm700
      %v702 = vsel %vm701, %v694, %v698
      %v703 = vand.u32 2147483647, %v693
      %vm704 = vcmp.eq.f32.partialorder %v703, 8.507059e+37
      %v705 = vand.u32 %v693, 2147483648
      %v706 = vor.u32 1.1754944e-38, %v705
      %v707 = vsel %vm704, %v706, %v702
      %v708 = vmul.f32 1.0, %v707
      %v709 = vrot.slane %v215, 2
      %v711 = vadd.f32 %v709, %v667
      %v712 = vxor.u32 %v711, 2147483648
      %v713 = vmul.f32 %v712, 1.442695
      %v714 = vpow.pop %v713
      %v715 = vadd.f32 %v714, 1.0
      %v716 = vrcp.pop %v715
      %v717 = vmul.f32 %v715, %v716
      %v718 = vsub.f32 1.0, %v717
      %v719 = vmul.f32 %v716, %v718
      %v720 = vadd.f32 %v716, %v719
      %vm721 = vweird.f32 %v715
      %vm722 = vweird.f32 %v716
      %vm723 = vmor %vm721, %vm722
      %v724 = vsel %vm723, %v716, %v720
      %v725 = vand.u32 2147483647, %v715
      %vm726 = vcmp.eq.f32.partialorder %v725, 8.507059e+37
      %v727 = vand.u32 %v715, 2147483648
      %v728 = vor.u32 1.1754944e-38, %v727
      %v729 = vsel %vm726, %v728, %v724
      %v730 = vmul.f32 1.0, %v729
      %v731 = vadd.f32 %v687, %v285
      %v732 = vmul.f32 %v708, %v731
      %v733 = vrot.slane %v215, 4
      %v735 = vadd.f32 %v733, %v732
      %v736 = vtanh.pop %v735
      %v737 = vsub.f32 1.0, %v730
      %v738 = vmul.f32 %v737, %v736
      %v739 = vmul.f32 %v730, %v626
      %v740 = vadd.f32 %v738, %v739
      %s741 = scalar_lea.vmem [#allocation2], 6
      %742 = vst [vmem:[%s741] sm:$0x3] %v740
      %743 = vmatpush.msra.mxu0 %v280
      %744 = vmatpush.msra.mxu0 %v277
      %745 = vmatpush.msra.mxu0 %v274
      %746 = vmatpush.msra.mxu0 %v271
      %747 = vmatpush.msra.mxu0 %v268
      %748 = vmatpush.msra.mxu0 %v265
      %749 = vmatpush.msra.mxu0 %v262
      %750 = vmatpush.msra.mxu0 %v259
      %751 = vmatpush.msra.mxu0 %v256
      %752 = vmatpush.msra.mxu0 %v253
      %753 = vmatpush.msra.mxu0 %v250
      %754 = vmatpush.msra.mxu0 %v247
      %755 = vmatpush.msra.mxu0 %v244
      %756 = vmatpush.msra.mxu0 %v241
      %757 = vmatpush.msra.mxu0 %v238
      %758 = vmatpush.msra.mxu0 %v235
      %759 = vmatmul.f32.gmra.mxu0 %v740
      %v760 = vpop.f32.mrf.mxu0
      %v761 = vadd.f32 0.0, %v760
      %762 = vdwg.mxu0
      %763 = vmatpush.msra.mxu0 %v281
      %764 = vmatpush.msra.mxu0 %v278
      %765 = vmatpush.msra.mxu0 %v275
      %766 = vmatpush.msra.mxu0 %v272
      %767 = vmatpush.msra.mxu0 %v269
      %768 = vmatpush.msra.mxu0 %v266
      %769 = vmatpush.msra.mxu0 %v263
      %770 = vmatpush.msra.mxu0 %v260
      %771 = vmatpush.msra.mxu0 %v257
      %772 = vmatpush.msra.mxu0 %v254
      %773 = vmatpush.msra.mxu0 %v251
      %774 = vmatpush.msra.mxu0 %v248
      %775 = vmatpush.msra.mxu0 %v245
      %776 = vmatpush.msra.mxu0 %v242
      %777 = vmatpush.msra.mxu0 %v239
      %778 = vmatpush.msra.mxu0 %v236
      %779 = vmatmul.f32.gmra.mxu0 %v740
      %v780 = vpop.f32.mrf.mxu0
      %v781 = vadd.f32 0.0, %v780
      %782 = vdwg.mxu0
      %783 = vmatpush.msra.mxu0 %v282
      %784 = vmatpush.msra.mxu0 %v279
      %785 = vmatpush.msra.mxu0 %v276
      %786 = vmatpush.msra.mxu0 %v273
      %787 = vmatpush.msra.mxu0 %v270
      %788 = vmatpush.msra.mxu0 %v267
      %789 = vmatpush.msra.mxu0 %v264
      %790 = vmatpush.msra.mxu0 %v261
      %791 = vmatpush.msra.mxu0 %v258
      %792 = vmatpush.msra.mxu0 %v255
      %793 = vmatpush.msra.mxu0 %v252
      %794 = vmatpush.msra.mxu0 %v249
      %795 = vmatpush.msra.mxu0 %v246
      %796 = vmatpush.msra.mxu0 %v243
      %797 = vmatpush.msra.mxu0 %v240
      %798 = vmatpush.msra.mxu0 %v237
      %799 = vmatmul.f32.gmra.mxu0 %v740
      %v800 = vpop.f32.mrf.mxu0
      %v801 = vadd.f32 0.0, %v800
      %802 = vdwg.mxu0
      %v803 = vadd.f32 %v217, %v761
      %v804 = vxor.u32 %v803, 2147483648
      %v805 = vmul.f32 %v804, 1.442695
      %v806 = vpow.pop %v805
      %v807 = vadd.f32 %v806, 1.0
      %v808 = vrcp.pop %v807
      %v809 = vmul.f32 %v807, %v808
      %v810 = vsub.f32 1.0, %v809
      %v811 = vmul.f32 %v808, %v810
      %v812 = vadd.f32 %v808, %v811
      %vm813 = vweird.f32 %v807
      %vm814 = vweird.f32 %v808
      %vm815 = vmor %vm813, %vm814
      %v816 = vsel %vm815, %v808, %v812
      %v817 = vand.u32 2147483647, %v807
      %vm818 = vcmp.eq.f32.partialorder %v817, 8.507059e+37
      %v819 = vand.u32 %v807, 2147483648
      %v820 = vor.u32 1.1754944e-38, %v819
      %v821 = vsel %vm818, %v820, %v816
      %v822 = vmul.f32 1.0, %v821
      %v823 = vrot.slane %v217, 2
      %v825 = vadd.f32 %v823, %v781
      %v826 = vxor.u32 %v825, 2147483648
      %v827 = vmul.f32 %v826, 1.442695
      %v828 = vpow.pop %v827
      %v829 = vadd.f32 %v828, 1.0
      %v830 = vrcp.pop %v829
      %v831 = vmul.f32 %v829, %v830
      %v832 = vsub.f32 1.0, %v831
      %v833 = vmul.f32 %v830, %v832
      %v834 = vadd.f32 %v830, %v833
      %vm835 = vweird.f32 %v829
      %vm836 = vweird.f32 %v830
      %vm837 = vmor %vm835, %vm836
      %v838 = vsel %vm837, %v830, %v834
      %v839 = vand.u32 2147483647, %v829
      %vm840 = vcmp.eq.f32.partialorder %v839, 8.507059e+37
      %v841 = vand.u32 %v829, 2147483648
      %v842 = vor.u32 1.1754944e-38, %v841
      %v843 = vsel %vm840, %v842, %v838
      %v844 = vmul.f32 1.0, %v843
      %v845 = vadd.f32 %v801, %v285
      %v846 = vmul.f32 %v822, %v845
      %v847 = vrot.slane %v217, 4
      %v849 = vadd.f32 %v847, %v846
      %v850 = vtanh.pop %v849
      %v851 = vsub.f32 1.0, %v844
      %v852 = vmul.f32 %v851, %v850
      %v853 = vmul.f32 %v844, %v740
      %v854 = vadd.f32 %v852, %v853
      %s855 = scalar_lea.vmem [#allocation2], 8
      %856 = vst [vmem:[%s855] sm:$0x3] %v854
      %857 = vmatpush.msra.mxu0 %v280
      %858 = vmatpush.msra.mxu0 %v277
      %859 = vmatpush.msra.mxu0 %v274
      %860 = vmatpush.msra.mxu0 %v271
      %861 = vmatpush.msra.mxu0 %v268
      %862 = vmatpush.msra.mxu0 %v265
      %863 = vmatpush.msra.mxu0 %v262
      %864 = vmatpush.msra.mxu0 %v259
      %865 = vmatpush.msra.mxu0 %v256
      %866 = vmatpush.msra.mxu0 %v253
      %867 = vmatpush.msra.mxu0 %v250
      %868 = vmatpush.msra.mxu0 %v247
      %869 = vmatpush.msra.mxu0 %v244
      %870 = vmatpush.msra.mxu0 %v241
      %871 = vmatpush.msra.mxu0 %v238
      %872 = vmatpush.msra.mxu0 %v235
      %873 = vmatmul.f32.gmra.mxu0 %v854
      %v874 = vpop.f32.mrf.mxu0
      %v875 = vadd.f32 0.0, %v874
      %876 = vdwg.mxu0
      %877 = vmatpush.msra.mxu0 %v281
      %878 = vmatpush.msra.mxu0 %v278
      %879 = vmatpush.msra.mxu0 %v275
      %880 = vmatpush.msra.mxu0 %v272
      %881 = vmatpush.msra.mxu0 %v269
      %882 = vmatpush.msra.mxu0 %v266
      %883 = vmatpush.msra.mxu0 %v263
      %884 = vmatpush.msra.mxu0 %v260
      %885 = vmatpush.msra.mxu0 %v257
      %886 = vmatpush.msra.mxu0 %v254
      %887 = vmatpush.msra.mxu0 %v251
      %888 = vmatpush.msra.mxu0 %v248
      %889 = vmatpush.msra.mxu0 %v245
      %890 = vmatpush.msra.mxu0 %v242
      %891 = vmatpush.msra.mxu0 %v239
      %892 = vmatpush.msra.mxu0 %v236
      %893 = vmatmul.f32.gmra.mxu0 %v854
      %v894 = vpop.f32.mrf.mxu0
      %v895 = vadd.f32 0.0, %v894
      %896 = vdwg.mxu0
      %897 = vmatpush.msra.mxu0 %v282
      %898 = vmatpush.msra.mxu0 %v279
      %899 = vmatpush.msra.mxu0 %v276
      %900 = vmatpush.msra.mxu0 %v273
      %901 = vmatpush.msra.mxu0 %v270
      %902 = vmatpush.msra.mxu0 %v267
      %903 = vmatpush.msra.mxu0 %v264
      %904 = vmatpush.msra.mxu0 %v261
      %905 = vmatpush.msra.mxu0 %v258
      %906 = vmatpush.msra.mxu0 %v255
      %907 = vmatpush.msra.mxu0 %v252
      %908 = vmatpush.msra.mxu0 %v249
      %909 = vmatpush.msra.mxu0 %v246
      %910 = vmatpush.msra.mxu0 %v243
      %911 = vmatpush.msra.mxu0 %v240
      %912 = vmatpush.msra.mxu0 %v237
      %913 = vmatmul.f32.gmra.mxu0 %v854
      %v914 = vpop.f32.mrf.mxu0
      %v915 = vadd.f32 0.0, %v914
      %916 = vdwg.mxu0
      %v917 = vadd.f32 %v220, %v875
      %v918 = vxor.u32 %v917, 2147483648
      %v919 = vmul.f32 %v918, 1.442695
      %v920 = vpow.pop %v919
      %v921 = vadd.f32 %v920, 1.0
      %v922 = vrcp.pop %v921
      %v923 = vmul.f32 %v921, %v922
      %v924 = vsub.f32 1.0, %v923
      %v925 = vmul.f32 %v922, %v924
      %v926 = vadd.f32 %v922, %v925
      %vm927 = vweird.f32 %v921
      %vm928 = vweird.f32 %v922
      %vm929 = vmor %vm927, %vm928
      %v930 = vsel %vm929, %v922, %v926
      %v931 = vand.u32 2147483647, %v921
      %vm932 = vcmp.eq.f32.partialorder %v931, 8.507059e+37
      %v933 = vand.u32 %v921, 2147483648
      %v934 = vor.u32 1.1754944e-38, %v933
      %v935 = vsel %vm932, %v934, %v930
      %v936 = vmul.f32 1.0, %v935
      %v937 = vrot.slane %v220, 2
      %v939 = vadd.f32 %v937, %v895
      %v940 = vxor.u32 %v939, 2147483648
      %v941 = vmul.f32 %v940, 1.442695
      %v942 = vpow.pop %v941
      %v943 = vadd.f32 %v942, 1.0
      %v944 = vrcp.pop %v943
      %v945 = vmul.f32 %v943, %v944
      %v946 = vsub.f32 1.0, %v945
      %v947 = vmul.f32 %v944, %v946
      %v948 = vadd.f32 %v944, %v947
      %vm949 = vweird.f32 %v943
      %vm950 = vweird.f32 %v944
      %vm951 = vmor %vm949, %vm950
      %v952 = vsel %vm951, %v944, %v948
      %v953 = vand.u32 2147483647, %v943
      %vm954 = vcmp.eq.f32.partialorder %v953, 8.507059e+37
      %v955 = vand.u32 %v943, 2147483648
      %v956 = vor.u32 1.1754944e-38, %v955
      %v957 = vsel %vm954, %v956, %v952
      %v958 = vmul.f32 1.0, %v957
      %v959 = vadd.f32 %v915, %v285
      %v960 = vmul.f32 %v936, %v959
      %v961 = vrot.slane %v220, 4
      %v963 = vadd.f32 %v961, %v960
      %v964 = vtanh.pop %v963
      %v965 = vsub.f32 1.0, %v958
      %v966 = vmul.f32 %v965, %v964
      %v967 = vmul.f32 %v958, %v854
      %v968 = vadd.f32 %v966, %v967
      %s969 = scalar_lea.vmem [#allocation2], 10
      %970 = vst [vmem:[%s969] sm:$0x3] %v968
      %971 = vmatpush.msra.mxu0 %v280
      %972 = vmatpush.msra.mxu0 %v277
      %973 = vmatpush.msra.mxu0 %v274
      %974 = vmatpush.msra.mxu0 %v271
      %975 = vmatpush.msra.mxu0 %v268
      %976 = vmatpush.msra.mxu0 %v265
      %977 = vmatpush.msra.mxu0 %v262
      %978 = vmatpush.msra.mxu0 %v259
      %979 = vmatpush.msra.mxu0 %v256
      %980 = vmatpush.msra.mxu0 %v253
      %981 = vmatpush.msra.mxu0 %v250
      %982 = vmatpush.msra.mxu0 %v247
      %983 = vmatpush.msra.mxu0 %v244
      %984 = vmatpush.msra.mxu0 %v241
      %985 = vmatpush.msra.mxu0 %v238
      %986 = vmatpush.msra.mxu0 %v235
      %987 = vmatmul.f32.gmra.mxu0 %v968
      %v988 = vpop.f32.mrf.mxu0
      %v989 = vadd.f32 0.0, %v988
      %990 = vdwg.mxu0
      %991 = vmatpush.msra.mxu0 %v281
      %992 = vmatpush.msra.mxu0 %v278
      %993 = vmatpush.msra.mxu0 %v275
      %994 = vmatpush.msra.mxu0 %v272
      %995 = vmatpush.msra.mxu0 %v269
      %996 = vmatpush.msra.mxu0 %v266
      %997 = vmatpush.msra.mxu0 %v263
      %998 = vmatpush.msra.mxu0 %v260
      %999 = vmatpush.msra.mxu0 %v257
      %1000 = vmatpush.msra.mxu0 %v254
      %1001 = vmatpush.msra.mxu0 %v251
      %1002 = vmatpush.msra.mxu0 %v248
      %1003 = vmatpush.msra.mxu0 %v245
      %1004 = vmatpush.msra.mxu0 %v242
      %1005 = vmatpush.msra.mxu0 %v239
      %1006 = vmatpush.msra.mxu0 %v236
      %1007 = vmatmul.f32.gmra.mxu0 %v968
      %v1008 = vpop.f32.mrf.mxu0
      %v1009 = vadd.f32 0.0, %v1008
      %1010 = vdwg.mxu0
      %1011 = vmatpush.msra.mxu0 %v282
      %1012 = vmatpush.msra.mxu0 %v279
      %1013 = vmatpush.msra.mxu0 %v276
      %1014 = vmatpush.msra.mxu0 %v273
      %1015 = vmatpush.msra.mxu0 %v270
      %1016 = vmatpush.msra.mxu0 %v267
      %1017 = vmatpush.msra.mxu0 %v264
      %1018 = vmatpush.msra.mxu0 %v261
      %1019 = vmatpush.msra.mxu0 %v258
      %1020 = vmatpush.msra.mxu0 %v255
      %1021 = vmatpush.msra.mxu0 %v252
      %1022 = vmatpush.msra.mxu0 %v249
      %1023 = vmatpush.msra.mxu0 %v246
      %1024 = vmatpush.msra.mxu0 %v243
      %1025 = vmatpush.msra.mxu0 %v240
      %1026 = vmatpush.msra.mxu0 %v237
      %1027 = vmatmul.f32.gmra.mxu0 %v968
      %v1028 = vpop.f32.mrf.mxu0
      %v1029 = vadd.f32 0.0, %v1028
      %1030 = vdwg.mxu0
      %v1031 = vadd.f32 %v223, %v989
      %v1032 = vxor.u32 %v1031, 2147483648
      %v1033 = vmul.f32 %v1032, 1.442695
      %v1034 = vpow.pop %v1033
      %v1035 = vadd.f32 %v1034, 1.0
      %v1036 = vrcp.pop %v1035
      %v1037 = vmul.f32 %v1035, %v1036
      %v1038 = vsub.f32 1.0, %v1037
      %v1039 = vmul.f32 %v1036, %v1038
      %v1040 = vadd.f32 %v1036, %v1039
      %vm1041 = vweird.f32 %v1035
      %vm1042 = vweird.f32 %v1036
      %vm1043 = vmor %vm1041, %vm1042
      %v1044 = vsel %vm1043, %v1036, %v1040
      %v1045 = vand.u32 2147483647, %v1035
      %vm1046 = vcmp.eq.f32.partialorder %v1045, 8.507059e+37
      %v1047 = vand.u32 %v1035, 2147483648
      %v1048 = vor.u32 1.1754944e-38, %v1047
      %v1049 = vsel %vm1046, %v1048, %v1044
      %v1050 = vmul.f32 1.0, %v1049
      %v1051 = vrot.slane %v223, 2
      %v1053 = vadd.f32 %v1051, %v1009
      %v1054 = vxor.u32 %v1053, 2147483648
      %v1055 = vmul.f32 %v1054, 1.442695
      %v1056 = vpow.pop %v1055
      %v1057 = vadd.f32 %v1056, 1.0
      %v1058 = vrcp.pop %v1057
      %v1059 = vmul.f32 %v1057, %v1058
      %v1060 = vsub.f32 1.0, %v1059
      %v1061 = vmul.f32 %v1058, %v1060
      %v1062 = vadd.f32 %v1058, %v1061
      %vm1063 = vweird.f32 %v1057
      %vm1064 = vweird.f32 %v1058
      %vm1065 = vmor %vm1063, %vm1064
      %v1066 = vsel %vm1065, %v1058, %v1062
      %v1067 = vand.u32 2147483647, %v1057
      %vm1068 = vcmp.eq.f32.partialorder %v1067, 8.507059e+37
      %v1069 = vand.u32 %v1057, 2147483648
      %v1070 = vor.u32 1.1754944e-38, %v1069
      %v1071 = vsel %vm1068, %v1070, %v1066
      %v1072 = vmul.f32 1.0, %v1071
      %v1073 = vadd.f32 %v1029, %v285
      %v1074 = vmul.f32 %v1050, %v1073
      %v1075 = vrot.slane %v223, 4
      %v1077 = vadd.f32 %v1075, %v1074
      %v1078 = vtanh.pop %v1077
      %v1079 = vsub.f32 1.0, %v1072
      %v1080 = vmul.f32 %v1079, %v1078
      %v1081 = vmul.f32 %v1072, %v968
      %v1082 = vadd.f32 %v1080, %v1081
      %s1083 = scalar_lea.vmem [#allocation2], 12
      %1084 = vst [vmem:[%s1083] sm:$0x3] %v1082
      %1085 = vmatpush.msra.mxu0 %v280
      %1086 = vmatpush.msra.mxu0 %v277
      %1087 = vmatpush.msra.mxu0 %v274
      %1088 = vmatpush.msra.mxu0 %v271
      %1089 = vmatpush.msra.mxu0 %v268
      %1090 = vmatpush.msra.mxu0 %v265
      %1091 = vmatpush.msra.mxu0 %v262
      %1092 = vmatpush.msra.mxu0 %v259
      %1093 = vmatpush.msra.mxu0 %v256
      %1094 = vmatpush.msra.mxu0 %v253
      %1095 = vmatpush.msra.mxu0 %v250
      %1096 = vmatpush.msra.mxu0 %v247
      %1097 = vmatpush.msra.mxu0 %v244
      %1098 = vmatpush.msra.mxu0 %v241
      %1099 = vmatpush.msra.mxu0 %v238
      %1100 = vmatpush.msra.mxu0 %v235
      %1101 = vmatmul.f32.gmra.mxu0 %v1082
      %v1102 = vpop.f32.mrf.mxu0
      %v1103 = vadd.f32 0.0, %v1102
      %1104 = vdwg.mxu0
      %1105 = vmatpush.msra.mxu0 %v281
      %1106 = vmatpush.msra.mxu0 %v278
      %1107 = vmatpush.msra.mxu0 %v275
      %1108 = vmatpush.msra.mxu0 %v272
      %1109 = vmatpush.msra.mxu0 %v269
      %1110 = vmatpush.msra.mxu0 %v266
      %1111 = vmatpush.msra.mxu0 %v263
      %1112 = vmatpush.msra.mxu0 %v260
      %1113 = vmatpush.msra.mxu0 %v257
      %1114 = vmatpush.msra.mxu0 %v254
      %1115 = vmatpush.msra.mxu0 %v251
      %1116 = vmatpush.msra.mxu0 %v248
      %1117 = vmatpush.msra.mxu0 %v245
      %1118 = vmatpush.msra.mxu0 %v242
      %1119 = vmatpush.msra.mxu0 %v239
      %1120 = vmatpush.msra.mxu0 %v236
      %1121 = vmatmul.f32.gmra.mxu0 %v1082
      %v1122 = vpop.f32.mrf.mxu0
      %v1123 = vadd.f32 0.0, %v1122
      %1124 = vdwg.mxu0
      %1125 = vmatpush.msra.mxu0 %v282
      %1126 = vmatpush.msra.mxu0 %v279
      %1127 = vmatpush.msra.mxu0 %v276
      %1128 = vmatpush.msra.mxu0 %v273
      %1129 = vmatpush.msra.mxu0 %v270
      %1130 = vmatpush.msra.mxu0 %v267
      %1131 = vmatpush.msra.mxu0 %v264
      %1132 = vmatpush.msra.mxu0 %v261
      %1133 = vmatpush.msra.mxu0 %v258
      %1134 = vmatpush.msra.mxu0 %v255
      %1135 = vmatpush.msra.mxu0 %v252
      %1136 = vmatpush.msra.mxu0 %v249
      %1137 = vmatpush.msra.mxu0 %v246
      %1138 = vmatpush.msra.mxu0 %v243
      %1139 = vmatpush.msra.mxu0 %v240
      %1140 = vmatpush.msra.mxu0 %v237
      %1141 = vmatmul.f32.gmra.mxu0 %v1082
      %v1142 = vpop.f32.mrf.mxu0
      %v1143 = vadd.f32 0.0, %v1142
      %1144 = vdwg.mxu0
      %v1145 = vadd.f32 %v226, %v1103
      %v1146 = vxor.u32 %v1145, 2147483648
      %v1147 = vmul.f32 %v1146, 1.442695
      %v1148 = vpow.pop %v1147
      %v1149 = vadd.f32 %v1148, 1.0
      %v1150 = vrcp.pop %v1149
      %v1151 = vmul.f32 %v1149, %v1150
      %v1152 = vsub.f32 1.0, %v1151
      %v1153 = vmul.f32 %v1150, %v1152
      %v1154 = vadd.f32 %v1150, %v1153
      %vm1155 = vweird.f32 %v1149
      %vm1156 = vweird.f32 %v1150
      %vm1157 = vmor %vm1155, %vm1156
      %v1158 = vsel %vm1157, %v1150, %v1154
      %v1159 = vand.u32 2147483647, %v1149
      %vm1160 = vcmp.eq.f32.partialorder %v1159, 8.507059e+37
      %v1161 = vand.u32 %v1149, 2147483648
      %v1162 = vor.u32 1.1754944e-38, %v1161
      %v1163 = vsel %vm1160, %v1162, %v1158
      %v1164 = vmul.f32 1.0, %v1163
      %v1165 = vrot.slane %v226, 2
      %v1167 = vadd.f32 %v1165, %v1123
      %v1168 = vxor.u32 %v1167, 2147483648
      %v1169 = vmul.f32 %v1168, 1.442695
      %v1170 = vpow.pop %v1169
      %v1171 = vadd.f32 %v1170, 1.0
      %v1172 = vrcp.pop %v1171
      %v1173 = vmul.f32 %v1171, %v1172
      %v1174 = vsub.f32 1.0, %v1173
      %v1175 = vmul.f32 %v1172, %v1174
      %v1176 = vadd.f32 %v1172, %v1175
      %vm1177 = vweird.f32 %v1171
      %vm1178 = vweird.f32 %v1172
      %vm1179 = vmor %vm1177, %vm1178
      %v1180 = vsel %vm1179, %v1172, %v1176
      %v1181 = vand.u32 2147483647, %v1171
      %vm1182 = vcmp.eq.f32.partialorder %v1181, 8.507059e+37
      %v1183 = vand.u32 %v1171, 2147483648
      %v1184 = vor.u32 1.1754944e-38, %v1183
      %v1185 = vsel %vm1182, %v1184, %v1180
      %v1186 = vmul.f32 1.0, %v1185
      %v1187 = vadd.f32 %v1143, %v285
      %v1188 = vmul.f32 %v1164, %v1187
      %v1189 = vrot.slane %v226, 4
      %v1191 = vadd.f32 %v1189, %v1188
      %v1192 = vtanh.pop %v1191
      %v1193 = vsub.f32 1.0, %v1186
      %v1194 = vmul.f32 %v1193, %v1192
      %v1195 = vmul.f32 %v1186, %v1082
      %v1196 = vadd.f32 %v1194, %v1195
      %s1197 = scalar_lea.vmem [#allocation2], 14
      %1198 = vst [vmem:[%s1197] sm:$0x3] %v1196
      %v1199 = vld [vmem:[#allocation2] sm:$0x3]
      %v1200 = vld [vmem:[#allocation2 + $0x2] sm:$0x3]
      %v1201 = vld [vmem:[#allocation2 + $0x4] sm:$0x3]
      %v1202 = vld [vmem:[#allocation2 + $0x6] sm:$0x3]
      %v1203 = vld [vmem:[#allocation2 + $0x8] sm:$0x3]
      %v1204 = vld [vmem:[#allocation2 + $0xa] sm:$0x3]
      %v1205 = vld [vmem:[#allocation2 + $0xc] sm:$0x3]
      %v1206 = vld [vmem:[#allocation2 + $0xe] sm:$0x3]
      %v1207 = vrot.slane %v1201, 4
      %vm1208 = vcmask 1047556
      %v1209 = vsel %vm1208, %v1207, %v1199
      %v1211 = vunpack.c.l.s4 1983009808
      %v1212 = vunpack.c.0.s8 %v1211
      %v1213 = vperm.slane %v1209, %v1212
      %v1214 = vrot.slane %v1202, 4
      %v1215 = vsel %vm1208, %v1214, %v1200
      %v1217 = vunpack.c.l.s4 1983009808
      %v1218 = vunpack.c.0.s8 %v1217
      %v1219 = vperm.slane %v1215, %v1218
      %v1220 = vrot.slane %v1205, 4
      %v1221 = vsel %vm1208, %v1220, %v1203
      %v1223 = vunpack.c.l.s4 1983009808
      %v1224 = vunpack.c.0.s8 %v1223
      %v1225 = vperm.slane %v1221, %v1224
      %v1226 = vrot.slane %v1206, 4
      %v1227 = vsel %vm1208, %v1226, %v1204
      %v1229 = vunpack.c.l.s4 1983009808
      %v1230 = vunpack.c.0.s8 %v1229
      %v1231 = vperm.slane %v1227, %v1230
      %v1232 = vrot.slane %v1219, 4
      %v1233 = vsel %vm1208, %v1232, %v1213
      %v1235 = vunpack.c.l.s4 1934713408
      %v1236 = vunpack.c.0.s8 %v1235
      %v1237 = vperm.slane %v1233, %v1236
      %v1238 = vrot.slane %v1231, 4
      %v1239 = vsel %vm1208, %v1238, %v1225
      %v1241 = vunpack.c.l.s4 1934713408
      %v1242 = vunpack.c.0.s8 %v1241
      %v1243 = vperm.slane %v1239, %v1242
      %v1244 = vrot.slane %v1243, 4
      %v1245 = vsel %vm1208, %v1244, %v1237
      %v1246 = vrot.slane %v1237, 4
      %v1247 = vsel %vm1208, %v1243, %v1246
      %v1248 = vpack.c.bf16 %v1245, %v1245
      %v1249 = vpack.c.bf16 %v1247, %v1247
      %v1250 = vld [vmem:[%s2] sm:$0xf]
      %v1251 = vld [vmem:[%s2 + $0x4] sm:$0xf]
      %1252 = vmatpush.bf16.xpose.msra.mxu0 0
      %1253 = vmatpush.bf16.xpose.msra.mxu0 0
      %1254 = vmatpush.bf16.xpose.msra.mxu0 0
      %1255 = vmatpush.bf16.xpose.msra.mxu0 0
      %1256 = vmatpush.bf16.xpose.msra.mxu0 0
      %1257 = vmatpush.bf16.xpose.msra.mxu0 0
      %1258 = vmatpush.bf16.xpose.msra.mxu0 0
      %1259 = vmatpush.bf16.xpose.msra.mxu0 %v1250
      %1260 = vmatmul.bf16.gmra.mxu0 %v1248
      %v1261 = vpop.f32.mrf.mxu0
      %v1262 = vadd.f32 0.0, %v1261
      %v1263 = vpop.f32.mrf.mxu0
      %1264 = vdwg.mxu0
      %1265 = vmatpush.bf16.xpose.msra.mxu0 0
      %1266 = vmatpush.bf16.xpose.msra.mxu0 0
      %1267 = vmatpush.bf16.xpose.msra.mxu0 0
      %1268 = vmatpush.bf16.xpose.msra.mxu0 0
      %1269 = vmatpush.bf16.xpose.msra.mxu0 0
      %1270 = vmatpush.bf16.xpose.msra.mxu0 0
      %1271 = vmatpush.bf16.xpose.msra.mxu0 0
      %1272 = vmatpush.bf16.xpose.msra.mxu0 %v1251
      %1273 = vmatmul.bf16.gmra.mxu0 %v1249
      %v1274 = vpop.f32.mrf.mxu0
      %v1275 = vadd.f32 0.0, %v1274
      %v1276 = vpop.f32.mrf.mxu0
      %1277 = vdwg.mxu0
      %vm1278 = vcmask 64512
      %v1279 = vsel %vm1278, %v1262, -inf
      %1280 = vmax.xlane.f32.xlu0 %v1279
      %v1281 = vpop.xlane.xlu0 %1280
      %v1282 = vsel %vm1278, %v1275, -inf
      %1283 = vmax.xlane.f32.xlu0 %v1282
      %v1284 = vpop.xlane.xlu0 %1283
      %v1285 = vsub.f32 %v1262, %v1281
      %v1286 = vsub.f32 %v1275, %v1284
      %v1287 = vmul.f32 %v1285, 1.442695
      %v1288 = vpow.pop %v1287
      %v1289 = vmul.f32 %v1286, 1.442695
      %v1290 = vpow.pop %v1289
      %v1291 = vsel %vm1278, %v1288, 0.0
      %1292 = vadd.xlane.f32.xlu0 %v1291
      %v1293 = vpop.xlane.xlu0 %1292
      %v1294 = vsel %vm1278, %v1290, 0.0
      %1295 = vadd.xlane.f32.xlu0 %v1294
      %v1296 = vpop.xlane.xlu0 %1295
      %v1297 = vrcp.pop %v1293
      %v1298 = vrcp.pop %v1296
      %v1299 = vmul.f32 %v1288, %v1297
      %v1300 = vmul.f32 %v1290, %v1298
      %v1301 = vpack.c.bf16 %v1299, %v1299
      %v1302 = vpack.c.bf16 %v1300, %v1300
      %v1304 = vsel %vm1278, %v1301, 0
      %v1307 = vsel %vm201, %v1250, 0
      %1309 = vmatpush.bf16.msra.mxu0 0
      %1310 = vmatpush.bf16.msra.mxu0 0
      %1311 = vmatpush.bf16.msra.mxu0 0
      %1312 = vmatpush.bf16.msra.mxu0 0
      %1313 = vmatpush.bf16.msra.mxu0 0
      %1314 = vmatpush.bf16.msra.mxu0 0
      %1315 = vmatpush.bf16.msra.mxu0 0
      %1316 = vmatpush.bf16.msra.mxu0 %v1307
      %1317 = vmatmul.bf16.gmra.mxu0 %v1304
      %v1318 = vpop.f32.mrf.mxu0
      %v1319 = vadd.f32 0.0, %v1318
      %v1320 = vpop.f32.mrf.mxu0
      %1321 = vdwg.mxu0
      %v1323 = vsel %vm1278, %v1302, 0
      %v1326 = vsel %vm201, %v1251, 0
      %1328 = vmatpush.bf16.msra.mxu0 0
      %1329 = vmatpush.bf16.msra.mxu0 0
      %1330 = vmatpush.bf16.msra.mxu0 0
      %1331 = vmatpush.bf16.msra.mxu0 0
      %1332 = vmatpush.bf16.msra.mxu0 0
      %1333 = vmatpush.bf16.msra.mxu0 0
      %1334 = vmatpush.bf16.msra.mxu0 0
      %1335 = vmatpush.bf16.msra.mxu0 %v1326
      %1336 = vmatmul.bf16.gmra.mxu0 %v1323
      %v1337 = vpop.f32.mrf.mxu0
      %v1338 = vadd.f32 0.0, %v1337
      %v1339 = vpop.f32.mrf.mxu0
      %1340 = vdwg.mxu0
      %v1341 = vpack.c.bf16 %v1338, %v1319
      %v1342 = vld [vmem:[%s7] sm:$0xf]
      %v1343 = vld [vmem:[%s7 + $0x4] sm:$0xf]
      %v1344 = vld [vmem:[%s7 + $0x8] sm:$0xf]
      %v1345 = vld [vmem:[%s7 + $0xc] sm:$0xf]
      %v1346 = vld [vmem:[%s7 + $0x10] sm:$0xf]
      %v1347 = vld [vmem:[%s7 + $0x14] sm:$0xf]
      %v1348 = vld [vmem:[%s7 + $0x18] sm:$0xf]
      %v1349 = vld [vmem:[%s7 + $0x1c] sm:$0xf]
      %v1350 = vld [vmem:[%s7 + $0x20] sm:$0xf]
      %v1351 = vld [vmem:[%s7 + $0x24] sm:$0xf]
      %v1352 = vld [vmem:[%s7 + $0x28] sm:$0xf]
      %v1353 = vld [vmem:[%s7 + $0x2c] sm:$0xf]
      %v1354 = vld [vmem:[%s7 + $0x30] sm:$0xf]
      %v1355 = vld [vmem:[%s7 + $0x34] sm:$0xf]
      %v1356 = vld [vmem:[%s7 + $0x38] sm:$0xf]
      %v1357 = vld [vmem:[%s7 + $0x3c] sm:$0xf]
      %v1358 = vld [vmem:[%s8] sm:$0xf]
      %v1359 = vld [vmem:[%s8 + $0x4] sm:$0xf]
      %v1360 = vld [vmem:[%s8 + $0x8] sm:$0xf]
      %v1361 = vld [vmem:[%s8 + $0xc] sm:$0xf]
      %v1362 = vld [vmem:[%s8 + $0x10] sm:$0xf]
      %v1363 = vld [vmem:[%s8 + $0x14] sm:$0xf]
      %v1364 = vld [vmem:[%s8 + $0x18] sm:$0xf]
      %v1365 = vld [vmem:[%s8 + $0x1c] sm:$0xf]
      %v1366 = vld [vmem:[%s8 + $0x20] sm:$0xf]
      %v1367 = vld [vmem:[%s8 + $0x24] sm:$0xf]
      %v1368 = vld [vmem:[%s8 + $0x28] sm:$0xf]
      %v1369 = vld [vmem:[%s8 + $0x2c] sm:$0xf]
      %v1370 = vld [vmem:[%s8 + $0x30] sm:$0xf]
      %v1371 = vld [vmem:[%s8 + $0x34] sm:$0xf]
      %v1372 = vld [vmem:[%s8 + $0x38] sm:$0xf]
      %v1373 = vld [vmem:[%s8 + $0x3c] sm:$0xf]
      %v1376 = vunpack.c.l.b16 %v1248
      %v1377 = vunpack.c.l.b16 %v1249
      %v1378 = vpack.c.b16 %v1377, %v1376
      %v1396 = vunpack.c.l.b16 %v1358
      %v1397 = vunpack.c.l.b16 %v1359
      %v1398 = vunpack.c.l.b16 %v1360
      %v1399 = vunpack.c.l.b16 %v1361
      %v1400 = vunpack.c.l.b16 %v1362
      %v1401 = vunpack.c.l.b16 %v1363
      %v1402 = vunpack.c.l.b16 %v1364
      %v1403 = vunpack.c.l.b16 %v1365
      %v1404 = vunpack.c.l.b16 %v1366
      %v1405 = vunpack.c.l.b16 %v1367
      %v1406 = vunpack.c.l.b16 %v1368
      %v1407 = vunpack.c.l.b16 %v1369
      %v1408 = vunpack.c.l.b16 %v1370
      %v1409 = vunpack.c.l.b16 %v1371
      %v1410 = vunpack.c.l.b16 %v1372
      %v1411 = vunpack.c.l.b16 %v1373
      %v1412 = vpack.c.b16 %v1397, %v1396
      %v1413 = vpack.c.b16 %v1399, %v1398
      %v1414 = vpack.c.b16 %v1401, %v1400
      %v1415 = vpack.c.b16 %v1403, %v1402
      %v1416 = vpack.c.b16 %v1405, %v1404
      %v1417 = vpack.c.b16 %v1407, %v1406
      %v1418 = vpack.c.b16 %v1409, %v1408
      %v1419 = vpack.c.b16 %v1411, %v1410
      %1428 = vmatpush.bf16.msra.mxu0 %v1419
      %1429 = vmatpush.bf16.msra.mxu0 %v1418
      %1430 = vmatpush.bf16.msra.mxu0 %v1417
      %1431 = vmatpush.bf16.msra.mxu0 %v1416
      %1432 = vmatpush.bf16.msra.mxu0 %v1415
      %1433 = vmatpush.bf16.msra.mxu0 %v1414
      %1434 = vmatpush.bf16.msra.mxu0 %v1413
      %1435 = vmatpush.bf16.msra.mxu0 %v1412
      %1436 = vmatmul.bf16.gmra.mxu0 %v1378
      %v1437 = vpop.f32.mrf.mxu0
      %v1438 = vadd.f32 0.0, %v1437
      %v1439 = vpop.f32.mrf.mxu0
      %v1440 = vadd.f32 0.0, %v1439
      %1441 = vdwg.mxu0
      %v1458 = vunpack.c.l.b16 %v1342
      %v1459 = vunpack.c.l.b16 %v1343
      %v1460 = vunpack.c.l.b16 %v1344
      %v1461 = vunpack.c.l.b16 %v1345
      %v1462 = vunpack.c.l.b16 %v1346
      %v1463 = vunpack.c.l.b16 %v1347
      %v1464 = vunpack.c.l.b16 %v1348
      %v1465 = vunpack.c.l.b16 %v1349
      %v1466 = vunpack.c.l.b16 %v1350
      %v1467 = vunpack.c.l.b16 %v1351
      %v1468 = vunpack.c.l.b16 %v1352
      %v1469 = vunpack.c.l.b16 %v1353
      %v1470 = vunpack.c.l.b16 %v1354
      %v1471 = vunpack.c.l.b16 %v1355
      %v1472 = vunpack.c.l.b16 %v1356
      %v1473 = vunpack.c.l.b16 %v1357
      %v1474 = vpack.c.b16 %v1459, %v1458
      %v1475 = vpack.c.b16 %v1461, %v1460
      %v1476 = vpack.c.b16 %v1463, %v1462
      %v1477 = vpack.c.b16 %v1465, %v1464
      %v1478 = vpack.c.b16 %v1467, %v1466
      %v1479 = vpack.c.b16 %v1469, %v1468
      %v1480 = vpack.c.b16 %v1471, %v1470
      %v1481 = vpack.c.b16 %v1473, %v1472
      %1490 = vmatpush.bf16.msra.mxu0 %v1481
      %1491 = vmatpush.bf16.msra.mxu0 %v1480
      %1492 = vmatpush.bf16.msra.mxu0 %v1479
      %1493 = vmatpush.bf16.msra.mxu0 %v1478
      %1494 = vmatpush.bf16.msra.mxu0 %v1477
      %1495 = vmatpush.bf16.msra.mxu0 %v1476
      %1496 = vmatpush.bf16.msra.mxu0 %v1475
      %1497 = vmatpush.bf16.msra.mxu0 %v1474
      %1498 = vmatmul.bf16.gmra.mxu0 %v1341
      %v1499 = vpop.f32.mrf.mxu0
      %v1500 = vadd.f32 %v1438, %v1499
      %v1501 = vpop.f32.mrf.mxu0
      %v1502 = vadd.f32 %v1440, %v1501
      %1503 = vdwg.mxu0
      %v1504 = vld [vmem:[%s9] sm:$0x1]
      %v1506 = vperm.slane %v1504, 0
      %v1508 = vadd.f32 %v1500, %v1506
      %v1509 = vadd.f32 %v1502, %v1506
      %v1510 = vtanh.pop %v1508
      %v1511 = vtanh.pop %v1509
      %v1512 = vpack.c.bf16 %v1510, %v1510
      %v1513 = vpack.c.bf16 %v1511, %v1511
      %vm1514 = vcmask 519168
      %1515 = vst.msk [vmem:[#allocation3] sm:$0xf] %vm1514, %v1512
      %1516 = vst.msk [vmem:[#allocation3 + $0x4] sm:$0xf] %vm1514, %v1513
    $region57: #{_decoder_forward_impl.1} parent=1 // pred_fallthru
      _
    %s1517 = scalar_lea.vmem [#allocation2], 14
    %v1518 = vld [vmem:[%s1517] sm:$0x3]
    %1519 = vst [vmem:[%s13] sm:$0x3] %v1518
    %v1520 = vld [vmem:[#allocation3] sm:$0xf]
    %v1521 = vld [vmem:[#allocation3 + $0x4] sm:$0xf]
    %v1522 = vld [vmem:[%s10] sm:$0xf]
    %v1523 = vld [vmem:[%s10 + $0x4] sm:$0xf]
    %v1524 = vld [vmem:[%s10 + $0x8] sm:$0xf]
    %v1525 = vld [vmem:[%s10 + $0xc] sm:$0xf]
    %v1526 = vld [vmem:[%s10 + $0x10] sm:$0xf]
    %v1527 = vld [vmem:[%s10 + $0x14] sm:$0xf]
    %v1528 = vld [vmem:[%s10 + $0x18] sm:$0xf]
    %v1529 = vld [vmem:[%s10 + $0x1c] sm:$0xf]
    %v1530 = vld [vmem:[%s11] sm:$0x1]
    %v1532 = vperm.slane %v1530, 0
    %v1536 = vunpack.c.l.b16 %v1520
    %v1537 = vunpack.c.l.b16 %v1521
    %v1538 = vpack.c.b16 %v1537, %v1536
    %v1547 = vunpack.c.l.b16 %v1522
    %v1548 = vunpack.c.l.b16 %v1523
    %v1549 = vunpack.c.l.b16 %v1524
    %v1550 = vunpack.c.l.b16 %v1525
    %v1551 = vunpack.c.l.b16 %v1526
    %v1552 = vunpack.c.l.b16 %v1527
    %v1553 = vunpack.c.l.b16 %v1528
    %v1554 = vunpack.c.l.b16 %v1529
    %v1555 = vpack.c.b16 %v1548, %v1547
    %v1556 = vpack.c.b16 %v1550, %v1549
    %v1557 = vpack.c.b16 %v1552, %v1551
    %v1558 = vpack.c.b16 %v1554, %v1553
    %vm1563 = vcmask 523264
    %v1565 = vsel %vm1563, %v1538, 0
    %1567 = vmatpush.bf16.msra.mxu0 0
    %1568 = vmatpush.bf16.msra.mxu0 0
    %1569 = vmatpush.bf16.msra.mxu0 0
    %1570 = vmatpush.bf16.msra.mxu0 0
    %1571 = vmatpush.bf16.msra.mxu0 %v1558
    %1572 = vmatpush.bf16.msra.mxu0 %v1557
    %1573 = vmatpush.bf16.msra.mxu0 %v1556
    %1574 = vmatpush.bf16.msra.mxu0 %v1555
    %1575 = vmatmul.bf16.gmra.mxu0 %v1565
    %v1576 = vpop.f32.mrf.mxu0
    %v1577 = vadd.f32 %v1532, %v1576
    %v1578 = vpop.f32.mrf.mxu0
    %v1579 = vadd.f32 %v1532, %v1578
    %1580 = vdwg.mxu0
    %v1581 = vpack.c.bf16 %v1577, %v1577
    %v1582 = vpack.c.bf16 %v1579, %v1579
    %1583 = vst [vmem:[%s12] sm:$0xf] %v1581
    %1584 = vst [vmem:[%s12 + $0x4] sm:$0xf] %v1582
    // Predicated region
    $region58: #{_decoder_forward_impl.1} parent=1 // pred_check
      _
    $region59: #{_decoder_forward_impl.1} parent=1 // pred_check_branch
      %1586 = sbr.rel (0) target = $region61
    $region60: #{_decoder_forward_impl.1} parent=1 // pred_region
      _
    $region61: #{_decoder_forward_impl.1} parent=1 // pred_fallthru
      _
    // Predicated region
    $region62: #{_decoder_forward_impl.1} parent=1 // pred_check
      _
    $region63: #{_decoder_forward_impl.1} parent=1 // pred_check_branch
      %1588 = sbr.rel (0) target = $region65
    $region64: #{_decoder_forward_impl.1} parent=1 // pred_region
      _
    $region65: #{_decoder_forward_impl.1} parent=1 // pred_fallthru
      _
    // Predicated region
    $region66: #{_decoder_forward_impl.1} parent=1 // pred_check
      _
    $region67: #{_decoder_forward_impl.1} parent=1 // pred_check_branch
      %1590 = sbr.rel (0) target = $region69
    $region68: #{_decoder_forward_impl.1} parent=1 // pred_region
      _
    $region69: #{_decoder_forward_impl.1} parent=1 // pred_fallthru
      _
    // Predicated region
    $region70: #{_decoder_forward_impl.1} parent=1 // pred_check
      _
    $region71: #{_decoder_forward_impl.1} parent=1 // pred_check_branch
      %1592 = sbr.rel (0) target = $region73
    $region72: #{_decoder_forward_impl.1} parent=1 // pred_region
      _
    $region73: #{_decoder_forward_impl.1} parent=1 // pred_fallthru
      _
    %1593 = vsyncpa [#allocation5], 1

// kernel: _decoder_forward_impl.1
$region0: #{_decoder_forward_impl.1}
  #allocation0 [shape = 'u32[]', space=smem, size = 0x4, offset = 0x4, fixed_abs, tag = 'smem constant byte address 0x4 - core index']
  #allocation1 [shape = 'u32[72,128]{1,0:T(1,128)}', space=vmem, size = 0x9000, scoped, tag = 'internal scratch']
  #allocation2 [shape = 'f32[8,2,128]{2,1,0:T(2,128)}', space=vmem, size = 0x2000, scoped, tag = 'scratch operand']
  #allocation3 [shape = 'bf16[16,64]{1,0:T(8,128)(2,1)}', space=vmem, size = 0x1000, scoped, tag = 'scratch operand']
  %s0 = inlined_call_operand.vmem [shape: bf16[8,2,32], index: 0, kind: input, shape index: {}]
  %s1 = inlined_call_operand.vmem [shape: f32[2,128], index: 1, kind: input, shape index: {}]
  %s2 = inlined_call_operand.vmem [shape: bf16[2,8,128], index: 2, kind: input, shape index: {}]
  %s3 = inlined_call_operand.vmem [shape: bf16[32,384], index: 3, kind: input, shape index: {}]
  %s4 = inlined_call_operand.vmem [shape: f32[1,384], index: 4, kind: input, shape index: {}]
  %s5 = inlined_call_operand.hbm [shape: f32[128,384], index: 5, kind: input, shape index: {}]
  %s6 = inlined_call_operand.vmem [shape: f32[1,128], index: 6, kind: input, shape index: {}]
  %s7 = inlined_call_operand.vmem [shape: bf16[128,64], index: 7, kind: input, shape index: {}]
  %s8 = inlined_call_operand.vmem [shape: bf16[128,64], index: 8, kind: input, shape index: {}]
  %s9 = inlined_call_operand.vmem [shape: f32[1,64], index: 9, kind: input, shape index: {}]
  %s10 = inlined_call_operand.vmem [shape: bf16[64,128], index: 10, kind: input, shape index: {}]
  %s11 = inlined_call_operand.vmem [shape: f32[1,128], index: 11, kind: input, shape index: {}]
  %s12 = inlined_call_operand.vmem [shape: bf16[2,8,128], index: 12, kind: output, shape index: {0}]
  %s13 = inlined_call_operand.vmem [shape: f32[2,128], index: 13, kind: output, shape index: {1}]
  %14 = xla_tuple %s12, %s13
  %s15 = sld [smem:[#allocation0]]
  $region74: #{_decoder_forward_impl.1} parent=0
    _
  %s17 = ssub.s32 1, %s15
  %s18 = scalar_select 0, %s17, %s15
  $region1: #{_decoder_forward_impl.1} parent=0
    #allocation4 [shape = 'u8[196608]{0}', space=vmem, size = 0x30000, scoped, tag = 'input window, operand 5, single buffered']
    #allocation5 [shape = 's32[1]{0}', space=sflag, size = 0x4, scoped, tag = 'scoped memory for _decoder_forward_impl.1']
    %19 = vsyncpa [#allocation5], 0
    // Predicated region
    $region2: #{_decoder_forward_impl.1} parent=1 // pred_check
      _
    $region3: #{_decoder_forward_impl.1} parent=1 // pred_check_branch
      %21 = sbr.rel (0) target = $region5
    $region4: #{_decoder_forward_impl.1} parent=1 // pred_region
      _
    $region5: #{_decoder_forward_impl.1} parent=1 // pred_fallthru
      _
    // Predicated region
    $region6: #{_decoder_forward_impl.1} parent=1 // pred_check
      _
    $region7: #{_decoder_forward_impl.1} parent=1 // pred_check_branch
      %23 = sbr.rel (0) target = $region9
    $region8: #{_decoder_forward_impl.1} parent=1 // pred_region
      _
    $region9: #{_decoder_forward_impl.1} parent=1 // pred_fallthru
      _
    // Predicated region
    $region10: #{_decoder_forward_impl.1} parent=1 // pred_check
      _
    $region11: #{_decoder_forward_impl.1} parent=1 // pred_check_branch
      %25 = sbr.rel (0) target = $region13
    $region12: #{_decoder_forward_impl.1} parent=1 // pred_region
      _
    $region13: #{_decoder_forward_impl.1} parent=1 // pred_fallthru
      _
    // Predicated region
    $region14: #{_decoder_forward_impl.1} parent=1 // pred_check
      _
    $region15: #{_decoder_forward_impl.1} parent=1 // pred_check_branch
      %27 = sbr.rel (0) target = $region17
    $region16: #{_decoder_forward_impl.1} parent=1 // pred_region
      _
    $region17: #{_decoder_forward_impl.1} parent=1 // pred_fallthru
      _
    // Predicated region
    $region18: #{_decoder_forward_impl.1} parent=1 // pred_check
      _
    $region19: #{_decoder_forward_impl.1} parent=1 // pred_check_branch
      %29 = sbr.rel (0) target = $region21
    $region20: #{_decoder_forward_impl.1} parent=1 // pred_region
      _
    $region21: #{_decoder_forward_impl.1} parent=1 // pred_fallthru
      _
    // Predicated region
    $region22: #{_decoder_forward_impl.1} parent=1 // pred_check
      _
    $region23: #{_decoder_forward_impl.1} parent=1 // pred_check_branch
      %31 = sbr.rel (0) target = $region25
    $region24: #{_decoder_forward_impl.1} parent=1 // pred_region
      %33 = vsyncadd [#allocation5], 0
      %s34 = sshll.u32 %s5, 4
      %s35 = int_to_ptr.hbm [resolvable:$true] %s34
      %s36 = sshll.u32 [#allocation4], 4
      %s37 = int_to_ptr.vmem [resolvable:$true] %s36
      %42 = dma.hbm_to_vmem [thread:$0]  %s35, 6144, %s37, [#allocation5], 384, 384, 24
    $region25: #{_decoder_forward_impl.1} parent=1 // pred_fallthru
      _
    // Predicated region
    $region26: #{_decoder_forward_impl.1} parent=1 // pred_check
      _
    $region27: #{_decoder_forward_impl.1} parent=1 // pred_check_branch
      %44 = sbr.rel (0) target = $region29
    $region28: #{_decoder_forward_impl.1} parent=1 // pred_region
      _
    $region29: #{_decoder_forward_impl.1} parent=1 // pred_fallthru
      _
    // Predicated region
    $region30: #{_decoder_forward_impl.1} parent=1 // pred_check
      _
    $region31: #{_decoder_forward_impl.1} parent=1 // pred_check_branch
      %46 = sbr.rel (0) target = $region33
    $region32: #{_decoder_forward_impl.1} parent=1 // pred_region
      _
    $region33: #{_decoder_forward_impl.1} parent=1 // pred_fallthru
      _
    // Predicated region
    $region34: #{_decoder_forward_impl.1} parent=1 // pred_check
      _
    $region35: #{_decoder_forward_impl.1} parent=1 // pred_check_branch
      %48 = sbr.rel (0) target = $region37
    $region36: #{_decoder_forward_impl.1} parent=1 // pred_region
      _
    $region37: #{_decoder_forward_impl.1} parent=1 // pred_fallthru
      _
    // Predicated region
    $region38: #{_decoder_forward_impl.1} parent=1 // pred_check
      _
    $region39: #{_decoder_forward_impl.1} parent=1 // pred_check_branch
      %50 = sbr.rel (0) target = $region41
    $region40: #{_decoder_forward_impl.1} parent=1 // pred_region
      _
    $region41: #{_decoder_forward_impl.1} parent=1 // pred_fallthru
      _
    // Predicated region
    $region42: #{_decoder_forward_impl.1} parent=1 // pred_check
      _
    $region43: #{_decoder_forward_impl.1} parent=1 // pred_check_branch
      %52 = sbr.rel (0) target = $region45
    $region44: #{_decoder_forward_impl.1} parent=1 // pred_region
      _
    $region45: #{_decoder_forward_impl.1} parent=1 // pred_fallthru
      _
    // Predicated region
    $region46: #{_decoder_forward_impl.1} parent=1 // pred_check
      _
    $region47: #{_decoder_forward_impl.1} parent=1 // pred_check_branch
      %54 = sbr.rel (0) target = $region49
    $region48: #{_decoder_forward_impl.1} parent=1 // pred_region
      _
    $region49: #{_decoder_forward_impl.1} parent=1 // pred_fallthru
      _
    // Predicated region
    $region50: #{_decoder_forward_impl.1} parent=1 // pred_check
      _
    $region51: #{_decoder_forward_impl.1} parent=1 // pred_check_branch
      %56 = sbr.rel (0) target = $region53
    $region52: #{_decoder_forward_impl.1} parent=1 // pred_region
      %58 = dma.done [#allocation5], 6144
    $region53: #{_decoder_forward_impl.1} parent=1 // pred_fallthru
      _
    %p60 = scmp.eq.s32.totalorder 0, 0
    // Predicated region
    $region54: #{_decoder_forward_impl.1} parent=1 // pred_check
      %p61 = pneg %p60
    $region55: #{_decoder_forward_impl.1} parent=1 // pred_check_branch
      %63 = sbr.rel (%p61) target = $region57
    $region56: #{_decoder_forward_impl.1} parent=1 // pred_region
      %v64 = vld [vmem:[%s0] sm:$0x1]
      %v65 = vld [vmem:[%s0 + $0x1] sm:$0x1]
      %v66 = vld [vmem:[%s0 + $0x2] sm:$0x1]
      %v67 = vld [vmem:[%s0 + $0x3] sm:$0x1]
      %v68 = vld [vmem:[%s0 + $0x4] sm:$0x1]
      %v69 = vld [vmem:[%s0 + $0x5] sm:$0x1]
      %v70 = vld [vmem:[%s0 + $0x6] sm:$0x1]
      %v71 = vld [vmem:[%s0 + $0x7] sm:$0x1]
      %v72 = vld [vmem:[%s3] sm:$0xff]
      %v73 = vld [vmem:[%s3 + $0x8] sm:$0xf]
      %v74 = vld [vmem:[%s3 + $0xc] sm:$0xff]
      %v75 = vld [vmem:[%s3 + $0x14] sm:$0xf]
      %v76 = vld [vmem:[%s3 + $0x18] sm:$0xff]
      %v77 = vld [vmem:[%s3 + $0x20] sm:$0xf]
      %v78 = vld [vmem:[%s3 + $0x24] sm:$0xff]
      %v79 = vld [vmem:[%s3 + $0x2c] sm:$0xf]
      %v80 = vld [vmem:[%s4] sm:$0x7]
      %v82 = vperm.slane %v80, 0
      %v83 = vperm.slane %v80, 1
      %v84 = vperm.slane %v80, 2
      %89 = vst [vmem:[#allocation1] ss:$9 sm:$0xff] %v64
      %s91 = scalar_lea.vmem [#allocation1], 1
      %92 = vst [vmem:[%s91] ss:$9 sm:$0xff] %v65
      %s94 = scalar_lea.vmem [#allocation1], 2
      %95 = vst [vmem:[%s94] ss:$9 sm:$0xff] %v66
      %s97 = scalar_lea.vmem [#allocation1], 3
      %98 = vst [vmem:[%s97] ss:$9 sm:$0xff] %v67
      %s100 = scalar_lea.vmem [#allocation1], 4
      %101 = vst [vmem:[%s100] ss:$9 sm:$0xff] %v68
      %s103 = scalar_lea.vmem [#allocation1], 5
      %104 = vst [vmem:[%s103] ss:$9 sm:$0xff] %v69
      %s106 = scalar_lea.vmem [#allocation1], 6
      %107 = vst [vmem:[%s106] ss:$9 sm:$0xff] %v70
      %s109 = scalar_lea.vmem [#allocation1], 7
      %110 = vst [vmem:[%s109] ss:$9 sm:$0xff] %v71
      %v111 = vld [vmem:[#allocation1] sm:$0xff]
      %v120 = vunpack.c.l.b16 %v72
      %v121 = vunpack.c.h.b16 %v72
      %v122 = vunpack.c.l.b16 %v73
      %v123 = vunpack.c.l.b16 %v74
      %v124 = vunpack.c.h.b16 %v74
      %v125 = vunpack.c.l.b16 %v75
      %v126 = vunpack.c.l.b16 %v76
      %v127 = vunpack.c.h.b16 %v76
      %v128 = vunpack.c.l.b16 %v77
      %v129 = vunpack.c.l.b16 %v78
      %v130 = vunpack.c.h.b16 %v78
      %v131 = vunpack.c.l.b16 %v79
      %v132 = vpack.c.b16 %v123, %v120
      %v133 = vpack.c.b16 %v124, %v121
      %v134 = vpack.c.b16 %v125, %v122
      %v135 = vpack.c.b16 %v129, %v126
      %v136 = vpack.c.b16 %v130, %v127
      %v137 = vpack.c.b16 %v131, %v128
      %vm144 = vcmask 261120
      %v145 = vsel %vm144, %v111, 0
      %147 = vmatpush.bf16.msra.mxu0 0
      %148 = vmatpush.bf16.msra.mxu0 0
      %149 = vmatpush.bf16.msra.mxu0 0
      %150 = vmatpush.bf16.msra.mxu0 0
      %151 = vmatpush.bf16.msra.mxu0 0
      %152 = vmatpush.bf16.msra.mxu0 0
      %153 = vmatpush.bf16.msra.mxu0 %v135
      %154 = vmatpush.bf16.msra.mxu0 %v132
      %155 = vmatmul.bf16.gmra.mxu0 %v145
      %v156 = vpop.f32.mrf.mxu0
      %v157 = vadd.f32 %v82, %v156
      %v158 = vpop.f32.mrf.mxu0
      %v159 = vadd.f32 %v82, %v158
      %160 = vdwg.mxu0
      %161 = vmatpush.bf16.msra.mxu0 0
      %162 = vmatpush.bf16.msra.mxu0 0
      %163 = vmatpush.bf16.msra.mxu0 0
      %164 = vmatpush.bf16.msra.mxu0 0
      %165 = vmatpush.bf16.msra.mxu0 0
      %166 = vmatpush.bf16.msra.mxu0 0
      %167 = vmatpush.bf16.msra.mxu0 %v136
      %168 = vmatpush.bf16.msra.mxu0 %v133
      %169 = vmatmul.bf16.gmra.mxu0 %v145
      %v170 = vpop.f32.mrf.mxu0
      %v171 = vadd.f32 %v83, %v170
      %v172 = vpop.f32.mrf.mxu0
      %v173 = vadd.f32 %v83, %v172
      %174 = vdwg.mxu0
      %175 = vmatpush.bf16.msra.mxu0 0
      %176 = vmatpush.bf16.msra.mxu0 0
      %177 = vmatpush.bf16.msra.mxu0 0
      %178 = vmatpush.bf16.msra.mxu0 0
      %179 = vmatpush.bf16.msra.mxu0 0
      %180 = vmatpush.bf16.msra.mxu0 0
      %181 = vmatpush.bf16.msra.mxu0 %v137
      %182 = vmatpush.bf16.msra.mxu0 %v134
      %183 = vmatmul.bf16.gmra.mxu0 %v145
      %v184 = vpop.f32.mrf.mxu0
      %v185 = vadd.f32 %v84, %v184
      %v186 = vpop.f32.mrf.mxu0
      %v187 = vadd.f32 %v84, %v186
      %188 = vdwg.mxu0
      %v195 = vrot.slane %v171, 6
      %v196 = vrot.slane %v185, 4
      %v197 = vrot.slane %v173, 6
      %v198 = vrot.slane %v187, 4
      %vm199 = vcmask 1041408
      %v200 = vsel %vm199, %v157, %v195
      %vm201 = vcmask 1043456
      %v202 = vsel %vm201, %v200, %v196
      %vm203 = vcmask 1043458
      %v204 = vsel %vm203, %v157, %v195
      %vm205 = vcmask 1045506
      %v206 = vsel %vm205, %v204, %v196
      %v207 = vrot.slane %v206, 2
      %vm208 = vcmask 1045508
      %v209 = vsel %vm208, %v157, %v195
      %v210 = vsel %vm201, %v196, %v209
      %v211 = vrot.slane %v210, 4
      %vm212 = vcmask 1045504
      %v213 = vsel %vm212, %v195, %v157
      %v214 = vsel %vm205, %v196, %v213
      %v215 = vrot.slane %v214, 6
      %v216 = vsel %vm199, %v159, %v197
      %v217 = vsel %vm201, %v216, %v198
      %v218 = vsel %vm203, %v159, %v197
      %v219 = vsel %vm205, %v218, %v198
      %v220 = vrot.slane %v219, 2
      %v221 = vsel %vm208, %v159, %v197
      %v222 = vsel %vm201, %v198, %v221
      %v223 = vrot.slane %v222, 4
      %v224 = vsel %vm212, %v197, %v159
      %v225 = vsel %vm205, %v198, %v224
      %v226 = vrot.slane %v225, 6
      %v235 = vld [vmem:[#allocation4] sm:$0xff]
      %v236 = vld [vmem:[#allocation4 + $0x8] sm:$0xff]
      %v237 = vld [vmem:[#allocation4 + $0x10] sm:$0xff]
      %v238 = vld [vmem:[#allocation4 + $0x18] sm:$0xff]
      %v239 = vld [vmem:[#allocation4 + $0x20] sm:$0xff]
      %v240 = vld [vmem:[#allocation4 + $0x28] sm:$0xff]
      %v241 = vld [vmem:[#allocation4 + $0x30] sm:$0xff]
      %v242 = vld [vmem:[#allocation4 + $0x38] sm:$0xff]
      %v243 = vld [vmem:[#allocation4 + $0x40] sm:$0xff]
      %v244 = vld [vmem:[#allocation4 + $0x48] sm:$0xff]
      %v245 = vld [vmem:[#allocation4 + $0x50] sm:$0xff]
      %v246 = vld [vmem:[#allocation4 + $0x58] sm:$0xff]
      %v247 = vld [vmem:[#allocation4 + $0x60] sm:$0xff]
      %v248 = vld [vmem:[#allocation4 + $0x68] sm:$0xff]
      %v249 = vld [vmem:[#allocation4 + $0x70] sm:$0xff]
      %v250 = vld [vmem:[#allocation4 + $0x78] sm:$0xff]
      %v251 = vld [vmem:[#allocation4 + $0x80] sm:$0xff]
      %v252 = vld [vmem:[#allocation4 + $0x88] sm:$0xff]
      %v253 = vld [vmem:[#allocation4 + $0x90] sm:$0xff]
      %v254 = vld [vmem:[#allocation4 + $0x98] sm:$0xff]
      %v255 = vld [vmem:[#allocation4 + $0xa0] sm:$0xff]
      %v256 = vld [vmem:[#allocation4 + $0xa8] sm:$0xff]
      %v257 = vld [vmem:[#allocation4 + $0xb0] sm:$0xff]
      %v258 = vld [vmem:[#allocation4 + $0xb8] sm:$0xff]
      %v259 = vld [vmem:[#allocation4 + $0xc0] sm:$0xff]
      %v260 = vld [vmem:[#allocation4 + $0xc8] sm:$0xff]
      %v261 = vld [vmem:[#allocation4 + $0xd0] sm:$0xff]
      %v262 = vld [vmem:[#allocation4 + $0xd8] sm:$0xff]
      %v263 = vld [vmem:[#allocation4 + $0xe0] sm:$0xff]
      %v264 = vld [vmem:[#allocation4 + $0xe8] sm:$0xff]
      %v265 = vld [vmem:[#allocation4 + $0xf0] sm:$0xff]
      %v266 = vld [vmem:[#allocation4 + $0xf8] sm:$0xff]
      %v267 = vld [vmem:[#allocation4 + $0x100] sm:$0xff]
      %v268 = vld [vmem:[#allocation4 + $0x108] sm:$0xff]
      %v269 = vld [vmem:[#allocation4 + $0x110] sm:$0xff]
      %v270 = vld [vmem:[#allocation4 + $0x118] sm:$0xff]
      %v271 = vld [vmem:[#allocation4 + $0x120] sm:$0xff]
      %v272 = vld [vmem:[#allocation4 + $0x128] sm:$0xff]
      %v273 = vld [vmem:[#allocation4 + $0x130] sm:$0xff]
      %v274 = vld [vmem:[#allocation4 + $0x138] sm:$0xff]
      %v275 = vld [vmem:[#allocation4 + $0x140] sm:$0xff]
      %v276 = vld [vmem:[#allocation4 + $0x148] sm:$0xff]
      %v277 = vld [vmem:[#allocation4 + $0x150] sm:$0xff]
      %v278 = vld [vmem:[#allocation4 + $0x158] sm:$0xff]
      %v279 = vld [vmem:[#allocation4 + $0x160] sm:$0xff]
      %v280 = vld [vmem:[#allocation4 + $0x168] sm:$0xff]
      %v281 = vld [vmem:[#allocation4 + $0x170] sm:$0xff]
      %v282 = vld [vmem:[#allocation4 + $0x178] sm:$0xff]
      %v283 = vld [vmem:[%s6] sm:$0x1]
      %v285 = vperm.slane %v283, 0
      %v287 = vld [vmem:[%s1] sm:$0x3]
      %288 = vmatpush.msra.mxu0 %v280
      %289 = vmatpush.msra.mxu0 %v277
      %290 = vmatpush.msra.mxu0 %v274
      %291 = vmatpush.msra.mxu0 %v271
      %292 = vmatpush.msra.mxu0 %v268
      %293 = vmatpush.msra.mxu0 %v265
      %294 = vmatpush.msra.mxu0 %v262
      %295 = vmatpush.msra.mxu0 %v259
      %296 = vmatpush.msra.mxu0 %v256
      %297 = vmatpush.msra.mxu0 %v253
      %298 = vmatpush.msra.mxu0 %v250
      %299 = vmatpush.msra.mxu0 %v247
      %300 = vmatpush.msra.mxu0 %v244
      %301 = vmatpush.msra.mxu0 %v241
      %302 = vmatpush.msra.mxu0 %v238
      %303 = vmatpush.msra.mxu0 %v235
      %304 = vmatmul.f32.gmra.mxu0 %v287
      %v305 = vpop.f32.mrf.mxu0
      %v306 = vadd.f32 0.0, %v305
      %307 = vdwg.mxu0
      %308 = vmatpush.msra.mxu0 %v281
      %309 = vmatpush.msra.mxu0 %v278
      %310 = vmatpush.msra.mxu0 %v275
      %311 = vmatpush.msra.mxu0 %v272
      %312 = vmatpush.msra.mxu0 %v269
      %313 = vmatpush.msra.mxu0 %v266
      %314 = vmatpush.msra.mxu0 %v263
      %315 = vmatpush.msra.mxu0 %v260
      %316 = vmatpush.msra.mxu0 %v257
      %317 = vmatpush.msra.mxu0 %v254
      %318 = vmatpush.msra.mxu0 %v251
      %319 = vmatpush.msra.mxu0 %v248
      %320 = vmatpush.msra.mxu0 %v245
      %321 = vmatpush.msra.mxu0 %v242
      %322 = vmatpush.msra.mxu0 %v239
      %323 = vmatpush.msra.mxu0 %v236
      %324 = vmatmul.f32.gmra.mxu0 %v287
      %v325 = vpop.f32.mrf.mxu0
      %v326 = vadd.f32 0.0, %v325
      %327 = vdwg.mxu0
      %328 = vmatpush.msra.mxu0 %v282
      %329 = vmatpush.msra.mxu0 %v279
      %330 = vmatpush.msra.mxu0 %v276
      %331 = vmatpush.msra.mxu0 %v273
      %332 = vmatpush.msra.mxu0 %v270
      %333 = vmatpush.msra.mxu0 %v267
      %334 = vmatpush.msra.mxu0 %v264
      %335 = vmatpush.msra.mxu0 %v261
      %336 = vmatpush.msra.mxu0 %v258
      %337 = vmatpush.msra.mxu0 %v255
      %338 = vmatpush.msra.mxu0 %v252
      %339 = vmatpush.msra.mxu0 %v249
      %340 = vmatpush.msra.mxu0 %v246
      %341 = vmatpush.msra.mxu0 %v243
      %342 = vmatpush.msra.mxu0 %v240
      %343 = vmatpush.msra.mxu0 %v237
      %344 = vmatmul.f32.gmra.mxu0 %v287
      %v345 = vpop.f32.mrf.mxu0
      %v346 = vadd.f32 0.0, %v345
      %347 = vdwg.mxu0
      %v348 = vadd.f32 %v202, %v306
      %v349 = vxor.u32 %v348, 2147483648
      %v350 = vmul.f32 %v349, 1.442695
      %v351 = vpow.pop %v350
      %v352 = vadd.f32 %v351, 1.0
      %v353 = vrcp.pop %v352
      %v354 = vmul.f32 %v352, %v353
      %v355 = vsub.f32 1.0, %v354
      %v356 = vmul.f32 %v353, %v355
      %v357 = vadd.f32 %v353, %v356
      %vm358 = vweird.f32 %v352
      %vm359 = vweird.f32 %v353
      %vm360 = vmor %vm358, %vm359
      %v361 = vsel %vm360, %v353, %v357
      %v362 = vand.u32 2147483647, %v352
      %vm363 = vcmp.eq.f32.partialorder %v362, 8.507059e+37
      %v364 = vand.u32 %v352, 2147483648
      %v365 = vor.u32 1.1754944e-38, %v364
      %v366 = vsel %vm363, %v365, %v361
      %v367 = vmul.f32 1.0, %v366
      %v368 = vrot.slane %v202, 2
      %v370 = vadd.f32 %v368, %v326
      %v371 = vxor.u32 %v370, 2147483648
      %v372 = vmul.f32 %v371, 1.442695
      %v373 = vpow.pop %v372
      %v374 = vadd.f32 %v373, 1.0
      %v375 = vrcp.pop %v374
      %v376 = vmul.f32 %v374, %v375
      %v377 = vsub.f32 1.0, %v376
      %v378 = vmul.f32 %v375, %v377
      %v379 = vadd.f32 %v375, %v378
      %vm380 = vweird.f32 %v374
      %vm381 = vweird.f32 %v375
      %vm382 = vmor %vm380, %vm381
      %v383 = vsel %vm382, %v375, %v379
      %v384 = vand.u32 2147483647, %v374
      %vm385 = vcmp.eq.f32.partialorder %v384, 8.507059e+37
      %v386 = vand.u32 %v374, 2147483648
      %v387 = vor.u32 1.1754944e-38, %v386
      %v388 = vsel %vm385, %v387, %v383
      %v389 = vmul.f32 1.0, %v388
      %v390 = vadd.f32 %v346, %v285
      %v391 = vmul.f32 %v367, %v390
      %v392 = vrot.slane %v202, 4
      %v394 = vadd.f32 %v392, %v391
      %v395 = vtanh.pop %v394
      %v396 = vsub.f32 1.0, %v389
      %v397 = vmul.f32 %v396, %v395
      %v398 = vmul.f32 %v389, %v287
      %v399 = vadd.f32 %v397, %v398
      %400 = vst [vmem:[#allocation2] sm:$0x3] %v399
      %401 = vmatpush.msra.mxu0 %v280
      %402 = vmatpush.msra.mxu0 %v277
      %403 = vmatpush.msra.mxu0 %v274
      %404 = vmatpush.msra.mxu0 %v271
      %405 = vmatpush.msra.mxu0 %v268
      %406 = vmatpush.msra.mxu0 %v265
      %407 = vmatpush.msra.mxu0 %v262
      %408 = vmatpush.msra.mxu0 %v259
      %409 = vmatpush.msra.mxu0 %v256
      %410 = vmatpush.msra.mxu0 %v253
      %411 = vmatpush.msra.mxu0 %v250
      %412 = vmatpush.msra.mxu0 %v247
      %413 = vmatpush.msra.mxu0 %v244
      %414 = vmatpush.msra.mxu0 %v241
      %415 = vmatpush.msra.mxu0 %v238
      %416 = vmatpush.msra.mxu0 %v235
      %417 = vmatmul.f32.gmra.mxu0 %v399
      %v418 = vpop.f32.mrf.mxu0
      %v419 = vadd.f32 0.0, %v418
      %420 = vdwg.mxu0
      %421 = vmatpush.msra.mxu0 %v281
      %422 = vmatpush.msra.mxu0 %v278
      %423 = vmatpush.msra.mxu0 %v275
      %424 = vmatpush.msra.mxu0 %v272
      %425 = vmatpush.msra.mxu0 %v269
      %426 = vmatpush.msra.mxu0 %v266
      %427 = vmatpush.msra.mxu0 %v263
      %428 = vmatpush.msra.mxu0 %v260
      %429 = vmatpush.msra.mxu0 %v257
      %430 = vmatpush.msra.mxu0 %v254
      %431 = vmatpush.msra.mxu0 %v251
      %432 = vmatpush.msra.mxu0 %v248
      %433 = vmatpush.msra.mxu0 %v245
      %434 = vmatpush.msra.mxu0 %v242
      %435 = vmatpush.msra.mxu0 %v239
      %436 = vmatpush.msra.mxu0 %v236
      %437 = vmatmul.f32.gmra.mxu0 %v399
      %v438 = vpop.f32.mrf.mxu0
      %v439 = vadd.f32 0.0, %v438
      %440 = vdwg.mxu0
      %441 = vmatpush.msra.mxu0 %v282
      %442 = vmatpush.msra.mxu0 %v279
      %443 = vmatpush.msra.mxu0 %v276
      %444 = vmatpush.msra.mxu0 %v273
      %445 = vmatpush.msra.mxu0 %v270
      %446 = vmatpush.msra.mxu0 %v267
      %447 = vmatpush.msra.mxu0 %v264
      %448 = vmatpush.msra.mxu0 %v261
      %449 = vmatpush.msra.mxu0 %v258
      %450 = vmatpush.msra.mxu0 %v255
      %451 = vmatpush.msra.mxu0 %v252
      %452 = vmatpush.msra.mxu0 %v249
      %453 = vmatpush.msra.mxu0 %v246
      %454 = vmatpush.msra.mxu0 %v243
      %455 = vmatpush.msra.mxu0 %v240
      %456 = vmatpush.msra.mxu0 %v237
      %457 = vmatmul.f32.gmra.mxu0 %v399
      %v458 = vpop.f32.mrf.mxu0
      %v459 = vadd.f32 0.0, %v458
      %460 = vdwg.mxu0
      %v461 = vadd.f32 %v207, %v419
      %v462 = vxor.u32 %v461, 2147483648
      %v463 = vmul.f32 %v462, 1.442695
      %v464 = vpow.pop %v463
      %v465 = vadd.f32 %v464, 1.0
      %v466 = vrcp.pop %v465
      %v467 = vmul.f32 %v465, %v466
      %v468 = vsub.f32 1.0, %v467
      %v469 = vmul.f32 %v466, %v468
      %v470 = vadd.f32 %v466, %v469
      %vm471 = vweird.f32 %v465
      %vm472 = vweird.f32 %v466
      %vm473 = vmor %vm471, %vm472
      %v474 = vsel %vm473, %v466, %v470
      %v475 = vand.u32 2147483647, %v465
      %vm476 = vcmp.eq.f32.partialorder %v475, 8.507059e+37
      %v477 = vand.u32 %v465, 2147483648
      %v478 = vor.u32 1.1754944e-38, %v477
      %v479 = vsel %vm476, %v478, %v474
      %v480 = vmul.f32 1.0, %v479
      %v481 = vrot.slane %v207, 2
      %v483 = vadd.f32 %v481, %v439
      %v484 = vxor.u32 %v483, 2147483648
      %v485 = vmul.f32 %v484, 1.442695
      %v486 = vpow.pop %v485
      %v487 = vadd.f32 %v486, 1.0
      %v488 = vrcp.pop %v487
      %v489 = vmul.f32 %v487, %v488
      %v490 = vsub.f32 1.0, %v489
      %v491 = vmul.f32 %v488, %v490
      %v492 = vadd.f32 %v488, %v491
      %vm493 = vweird.f32 %v487
      %vm494 = vweird.f32 %v488
      %vm495 = vmor %vm493, %vm494
      %v496 = vsel %vm495, %v488, %v492
      %v497 = vand.u32 2147483647, %v487
      %vm498 = vcmp.eq.f32.partialorder %v497, 8.507059e+37
      %v499 = vand.u32 %v487, 2147483648
      %v500 = vor.u32 1.1754944e-38, %v499
      %v501 = vsel %vm498, %v500, %v496
      %v502 = vmul.f32 1.0, %v501
      %v503 = vadd.f32 %v459, %v285
      %v504 = vmul.f32 %v480, %v503
      %v505 = vrot.slane %v207, 4
      %v507 = vadd.f32 %v505, %v504
      %v508 = vtanh.pop %v507
      %v509 = vsub.f32 1.0, %v502
      %v510 = vmul.f32 %v509, %v508
      %v511 = vmul.f32 %v502, %v399
      %v512 = vadd.f32 %v510, %v511
      %s513 = scalar_lea.vmem [#allocation2], 2
      %514 = vst [vmem:[%s513] sm:$0x3] %v512
      %515 = vmatpush.msra.mxu0 %v280
      %516 = vmatpush.msra.mxu0 %v277
      %517 = vmatpush.msra.mxu0 %v274
      %518 = vmatpush.msra.mxu0 %v271
      %519 = vmatpush.msra.mxu0 %v268
      %520 = vmatpush.msra.mxu0 %v265
      %521 = vmatpush.msra.mxu0 %v262
      %522 = vmatpush.msra.mxu0 %v259
      %523 = vmatpush.msra.mxu0 %v256
      %524 = vmatpush.msra.mxu0 %v253
      %525 = vmatpush.msra.mxu0 %v250
      %526 = vmatpush.msra.mxu0 %v247
      %527 = vmatpush.msra.mxu0 %v244
      %528 = vmatpush.msra.mxu0 %v241
      %529 = vmatpush.msra.mxu0 %v238
      %530 = vmatpush.msra.mxu0 %v235
      %531 = vmatmul.f32.gmra.mxu0 %v512
      %v532 = vpop.f32.mrf.mxu0
      %v533 = vadd.f32 0.0, %v532
      %534 = vdwg.mxu0
      %535 = vmatpush.msra.mxu0 %v281
      %536 = vmatpush.msra.mxu0 %v278
      %537 = vmatpush.msra.mxu0 %v275
      %538 = vmatpush.msra.mxu0 %v272
      %539 = vmatpush.msra.mxu0 %v269
      %540 = vmatpush.msra.mxu0 %v266
      %541 = vmatpush.msra.mxu0 %v263
      %542 = vmatpush.msra.mxu0 %v260
      %543 = vmatpush.msra.mxu0 %v257
      %544 = vmatpush.msra.mxu0 %v254
      %545 = vmatpush.msra.mxu0 %v251
      %546 = vmatpush.msra.mxu0 %v248
      %547 = vmatpush.msra.mxu0 %v245
      %548 = vmatpush.msra.mxu0 %v242
      %549 = vmatpush.msra.mxu0 %v239
      %550 = vmatpush.msra.mxu0 %v236
      %551 = vmatmul.f32.gmra.mxu0 %v512
      %v552 = vpop.f32.mrf.mxu0
      %v553 = vadd.f32 0.0, %v552
      %554 = vdwg.mxu0
      %555 = vmatpush.msra.mxu0 %v282
      %556 = vmatpush.msra.mxu0 %v279
      %557 = vmatpush.msra.mxu0 %v276
      %558 = vmatpush.msra.mxu0 %v273
      %559 = vmatpush.msra.mxu0 %v270
      %560 = vmatpush.msra.mxu0 %v267
      %561 = vmatpush.msra.mxu0 %v264
      %562 = vmatpush.msra.mxu0 %v261
      %563 = vmatpush.msra.mxu0 %v258
      %564 = vmatpush.msra.mxu0 %v255
      %565 = vmatpush.msra.mxu0 %v252
      %566 = vmatpush.msra.mxu0 %v249
      %567 = vmatpush.msra.mxu0 %v246
      %568 = vmatpush.msra.mxu0 %v243
      %569 = vmatpush.msra.mxu0 %v240
      %570 = vmatpush.msra.mxu0 %v237
      %571 = vmatmul.f32.gmra.mxu0 %v512
      %v572 = vpop.f32.mrf.mxu0
      %v573 = vadd.f32 0.0, %v572
      %574 = vdwg.mxu0
      %v575 = vadd.f32 %v211, %v533
      %v576 = vxor.u32 %v575, 2147483648
      %v577 = vmul.f32 %v576, 1.442695
      %v578 = vpow.pop %v577
      %v579 = vadd.f32 %v578, 1.0
      %v580 = vrcp.pop %v579
      %v581 = vmul.f32 %v579, %v580
      %v582 = vsub.f32 1.0, %v581
      %v583 = vmul.f32 %v580, %v582
      %v584 = vadd.f32 %v580, %v583
      %vm585 = vweird.f32 %v579
      %vm586 = vweird.f32 %v580
      %vm587 = vmor %vm585, %vm586
      %v588 = vsel %vm587, %v580, %v584
      %v589 = vand.u32 2147483647, %v579
      %vm590 = vcmp.eq.f32.partialorder %v589, 8.507059e+37
      %v591 = vand.u32 %v579, 2147483648
      %v592 = vor.u32 1.1754944e-38, %v591
      %v593 = vsel %vm590, %v592, %v588
      %v594 = vmul.f32 1.0, %v593
      %v595 = vrot.slane %v211, 2
      %v597 = vadd.f32 %v595, %v553
      %v598 = vxor.u32 %v597, 2147483648
      %v599 = vmul.f32 %v598, 1.442695
      %v600 = vpow.pop %v599
      %v601 = vadd.f32 %v600, 1.0
      %v602 = vrcp.pop %v601
      %v603 = vmul.f32 %v601, %v602
      %v604 = vsub.f32 1.0, %v603
      %v605 = vmul.f32 %v602, %v604
      %v606 = vadd.f32 %v602, %v605
      %vm607 = vweird.f32 %v601
      %vm608 = vweird.f32 %v602
      %vm609 = vmor %vm607, %vm608
      %v610 = vsel %vm609, %v602, %v606
      %v611 = vand.u32 2147483647, %v601
      %vm612 = vcmp.eq.f32.partialorder %v611, 8.507059e+37
      %v613 = vand.u32 %v601, 2147483648
      %v614 = vor.u32 1.1754944e-38, %v613
      %v615 = vsel %vm612, %v614, %v610
      %v616 = vmul.f32 1.0, %v615
      %v617 = vadd.f32 %v573, %v285
      %v618 = vmul.f32 %v594, %v617
      %v619 = vrot.slane %v211, 4
      %v621 = vadd.f32 %v619, %v618
      %v622 = vtanh.pop %v621
      %v623 = vsub.f32 1.0, %v616
      %v624 = vmul.f32 %v623, %v622
      %v625 = vmul.f32 %v616, %v512
      %v626 = vadd.f32 %v624, %v625
      %s627 = scalar_lea.vmem [#allocation2], 4
      %628 = vst [vmem:[%s627] sm:$0x3] %v626
      %629 = vmatpush.msra.mxu0 %v280
      %630 = vmatpush.msra.mxu0 %v277
      %631 = vmatpush.msra.mxu0 %v274
      %632 = vmatpush.msra.mxu0 %v271
      %633 = vmatpush.msra.mxu0 %v268
      %634 = vmatpush.msra.mxu0 %v265
      %635 = vmatpush.msra.mxu0 %v262
      %636 = vmatpush.msra.mxu0 %v259
      %637 = vmatpush.msra.mxu0 %v256
      %638 = vmatpush.msra.mxu0 %v253
      %639 = vmatpush.msra.mxu0 %v250
      %640 = vmatpush.msra.mxu0 %v247
      %641 = vmatpush.msra.mxu0 %v244
      %642 = vmatpush.msra.mxu0 %v241
      %643 = vmatpush.msra.mxu0 %v238
      %644 = vmatpush.msra.mxu0 %v235
      %645 = vmatmul.f32.gmra.mxu0 %v626
      %v646 = vpop.f32.mrf.mxu0
      %v647 = vadd.f32 0.0, %v646
      %648 = vdwg.mxu0
      %649 = vmatpush.msra.mxu0 %v281
      %650 = vmatpush.msra.mxu0 %v278
      %651 = vmatpush.msra.mxu0 %v275
      %652 = vmatpush.msra.mxu0 %v272
      %653 = vmatpush.msra.mxu0 %v269
      %654 = vmatpush.msra.mxu0 %v266
      %655 = vmatpush.msra.mxu0 %v263
      %656 = vmatpush.msra.mxu0 %v260
      %657 = vmatpush.msra.mxu0 %v257
      %658 = vmatpush.msra.mxu0 %v254
      %659 = vmatpush.msra.mxu0 %v251
      %660 = vmatpush.msra.mxu0 %v248
      %661 = vmatpush.msra.mxu0 %v245
      %662 = vmatpush.msra.mxu0 %v242
      %663 = vmatpush.msra.mxu0 %v239
      %664 = vmatpush.msra.mxu0 %v236
      %665 = vmatmul.f32.gmra.mxu0 %v626
      %v666 = vpop.f32.mrf.mxu0
      %v667 = vadd.f32 0.0, %v666
      %668 = vdwg.mxu0
      %669 = vmatpush.msra.mxu0 %v282
      %670 = vmatpush.msra.mxu0 %v279
      %671 = vmatpush.msra.mxu0 %v276
      %672 = vmatpush.msra.mxu0 %v273
      %673 = vmatpush.msra.mxu0 %v270
      %674 = vmatpush.msra.mxu0 %v267
      %675 = vmatpush.msra.mxu0 %v264
      %676 = vmatpush.msra.mxu0 %v261
      %677 = vmatpush.msra.mxu0 %v258
      %678 = vmatpush.msra.mxu0 %v255
      %679 = vmatpush.msra.mxu0 %v252
      %680 = vmatpush.msra.mxu0 %v249
      %681 = vmatpush.msra.mxu0 %v246
      %682 = vmatpush.msra.mxu0 %v243
      %683 = vmatpush.msra.mxu0 %v240
      %684 = vmatpush.msra.mxu0 %v237
      %685 = vmatmul.f32.gmra.mxu0 %v626
      %v686 = vpop.f32.mrf.mxu0
      %v687 = vadd.f32 0.0, %v686
      %688 = vdwg.mxu0
      %v689 = vadd.f32 %v215, %v647
      %v690 = vxor.u32 %v689, 2147483648
      %v691 = vmul.f32 %v690, 1.442695
      %v692 = vpow.pop %v691
      %v693 = vadd.f32 %v692, 1.0
      %v694 = vrcp.pop %v693
      %v695 = vmul.f32 %v693, %v694
      %v696 = vsub.f32 1.0, %v695
      %v697 = vmul.f32 %v694, %v696
      %v698 = vadd.f32 %v694, %v697
      %vm699 = vweird.f32 %v693
      %vm700 = vweird.f32 %v694
      %vm701 = vmor %vm699, %vm700
      %v702 = vsel %vm701, %v694, %v698
      %v703 = vand.u32 2147483647, %v693
      %vm704 = vcmp.eq.f32.partialorder %v703, 8.507059e+37
      %v705 = vand.u32 %v693, 2147483648
      %v706 = vor.u32 1.1754944e-38, %v705
      %v707 = vsel %vm704, %v706, %v702
      %v708 = vmul.f32 1.0, %v707
      %v709 = vrot.slane %v215, 2
      %v711 = vadd.f32 %v709, %v667
      %v712 = vxor.u32 %v711, 2147483648
      %v713 = vmul.f32 %v712, 1.442695
      %v714 = vpow.pop %v713
      %v715 = vadd.f32 %v714, 1.0
      %v716 = vrcp.pop %v715
      %v717 = vmul.f32 %v715, %v716
      %v718 = vsub.f32 1.0, %v717
      %v719 = vmul.f32 %v716, %v718
      %v720 = vadd.f32 %v716, %v719
      %vm721 = vweird.f32 %v715
      %vm722 = vweird.f32 %v716
      %vm723 = vmor %vm721, %vm722
      %v724 = vsel %vm723, %v716, %v720
      %v725 = vand.u32 2147483647, %v715
      %vm726 = vcmp.eq.f32.partialorder %v725, 8.507059e+37
      %v727 = vand.u32 %v715, 2147483648
      %v728 = vor.u32 1.1754944e-38, %v727
      %v729 = vsel %vm726, %v728, %v724
      %v730 = vmul.f32 1.0, %v729
      %v731 = vadd.f32 %v687, %v285
      %v732 = vmul.f32 %v708, %v731
      %v733 = vrot.slane %v215, 4
      %v735 = vadd.f32 %v733, %v732
      %v736 = vtanh.pop %v735
      %v737 = vsub.f32 1.0, %v730
      %v738 = vmul.f32 %v737, %v736
      %v739 = vmul.f32 %v730, %v626
      %v740 = vadd.f32 %v738, %v739
      %s741 = scalar_lea.vmem [#allocation2], 6
      %742 = vst [vmem:[%s741] sm:$0x3] %v740
      %743 = vmatpush.msra.mxu0 %v280
      %744 = vmatpush.msra.mxu0 %v277
      %745 = vmatpush.msra.mxu0 %v274
      %746 = vmatpush.msra.mxu0 %v271
      %747 = vmatpush.msra.mxu0 %v268
      %748 = vmatpush.msra.mxu0 %v265
      %749 = vmatpush.msra.mxu0 %v262
      %750 = vmatpush.msra.mxu0 %v259
      %751 = vmatpush.msra.mxu0 %v256
      %752 = vmatpush.msra.mxu0 %v253
      %753 = vmatpush.msra.mxu0 %v250
      %754 = vmatpush.msra.mxu0 %v247
      %755 = vmatpush.msra.mxu0 %v244
      %756 = vmatpush.msra.mxu0 %v241
      %757 = vmatpush.msra.mxu0 %v238
      %758 = vmatpush.msra.mxu0 %v235
      %759 = vmatmul.f32.gmra.mxu0 %v740
      %v760 = vpop.f32.mrf.mxu0
      %v761 = vadd.f32 0.0, %v760
      %762 = vdwg.mxu0
      %763 = vmatpush.msra.mxu0 %v281
      %764 = vmatpush.msra.mxu0 %v278
      %765 = vmatpush.msra.mxu0 %v275
      %766 = vmatpush.msra.mxu0 %v272
      %767 = vmatpush.msra.mxu0 %v269
      %768 = vmatpush.msra.mxu0 %v266
      %769 = vmatpush.msra.mxu0 %v263
      %770 = vmatpush.msra.mxu0 %v260
      %771 = vmatpush.msra.mxu0 %v257
      %772 = vmatpush.msra.mxu0 %v254
      %773 = vmatpush.msra.mxu0 %v251
      %774 = vmatpush.msra.mxu0 %v248
      %775 = vmatpush.msra.mxu0 %v245
      %776 = vmatpush.msra.mxu0 %v242
      %777 = vmatpush.msra.mxu0 %v239
      %778 = vmatpush.msra.mxu0 %v236
      %779 = vmatmul.f32.gmra.mxu0 %v740
      %v780 = vpop.f32.mrf.mxu0
      %v781 = vadd.f32 0.0, %v780
      %782 = vdwg.mxu0
      %783 = vmatpush.msra.mxu0 %v282
      %784 = vmatpush.msra.mxu0 %v279
      %785 = vmatpush.msra.mxu0 %v276
      %786 = vmatpush.msra.mxu0 %v273
      %787 = vmatpush.msra.mxu0 %v270
      %788 = vmatpush.msra.mxu0 %v267
      %789 = vmatpush.msra.mxu0 %v264
      %790 = vmatpush.msra.mxu0 %v261
      %791 = vmatpush.msra.mxu0 %v258
      %792 = vmatpush.msra.mxu0 %v255
      %793 = vmatpush.msra.mxu0 %v252
      %794 = vmatpush.msra.mxu0 %v249
      %795 = vmatpush.msra.mxu0 %v246
      %796 = vmatpush.msra.mxu0 %v243
      %797 = vmatpush.msra.mxu0 %v240
      %798 = vmatpush.msra.mxu0 %v237
      %799 = vmatmul.f32.gmra.mxu0 %v740
      %v800 = vpop.f32.mrf.mxu0
      %v801 = vadd.f32 0.0, %v800
      %802 = vdwg.mxu0
      %v803 = vadd.f32 %v217, %v761
      %v804 = vxor.u32 %v803, 2147483648
      %v805 = vmul.f32 %v804, 1.442695
      %v806 = vpow.pop %v805
      %v807 = vadd.f32 %v806, 1.0
      %v808 = vrcp.pop %v807
      %v809 = vmul.f32 %v807, %v808
      %v810 = vsub.f32 1.0, %v809
      %v811 = vmul.f32 %v808, %v810
      %v812 = vadd.f32 %v808, %v811
      %vm813 = vweird.f32 %v807
      %vm814 = vweird.f32 %v808
      %vm815 = vmor %vm813, %vm814
      %v816 = vsel %vm815, %v808, %v812
      %v817 = vand.u32 2147483647, %v807
      %vm818 = vcmp.eq.f32.partialorder %v817, 8.507059e+37
      %v819 = vand.u32 %v807, 2147483648
      %v820 = vor.u32 1.1754944e-38, %v819
      %v821 = vsel %vm818, %v820, %v816
      %v822 = vmul.f32 1.0, %v821
      %v823 = vrot.slane %v217, 2
      %v825 = vadd.f32 %v823, %v781
      %v826 = vxor.u32 %v825, 2147483648
      %v827 = vmul.f32 %v826, 1.442695
      %v828 = vpow.pop %v827
      %v829 = vadd.f32 %v828, 1.0
      %v830 = vrcp.pop %v829
      %v831 = vmul.f32 %v829, %v830
      %v832 = vsub.f32 1.0, %v831
      %v833 = vmul.f32 %v830, %v832
      %v834 = vadd.f32 %v830, %v833
      %vm835 = vweird.f32 %v829
      %vm836 = vweird.f32 %v830
      %vm837 = vmor %vm835, %vm836
      %v838 = vsel %vm837, %v830, %v834
      %v839 = vand.u32 2147483647, %v829
      %vm840 = vcmp.eq.f32.partialorder %v839, 8.507059e+37
      %v841 = vand.u32 %v829, 2147483648
      %v842 = vor.u32 1.1754944e-38, %v841
      %v843 = vsel %vm840, %v842, %v838
      %v844 = vmul.f32 1.0, %v843
      %v845 = vadd.f32 %v801, %v285
      %v846 = vmul.f32 %v822, %v845
      %v847 = vrot.slane %v217, 4
      %v849 = vadd.f32 %v847, %v846
      %v850 = vtanh.pop %v849
      %v851 = vsub.f32 1.0, %v844
      %v852 = vmul.f32 %v851, %v850
      %v853 = vmul.f32 %v844, %v740
      %v854 = vadd.f32 %v852, %v853
      %s855 = scalar_lea.vmem [#allocation2], 8
      %856 = vst [vmem:[%s855] sm:$0x3] %v854
      %857 = vmatpush.msra.mxu0 %v280
      %858 = vmatpush.msra.mxu0 %v277
      %859 = vmatpush.msra.mxu0 %v274
      %860 = vmatpush.msra.mxu0 %v271
      %861 = vmatpush.msra.mxu0 %v268
      %862 = vmatpush.msra.mxu0 %v265
      %863 = vmatpush.msra.mxu0 %v262
      %864 = vmatpush.msra.mxu0 %v259
      %865 = vmatpush.msra.mxu0 %v256
      %866 = vmatpush.msra.mxu0 %v253
      %867 = vmatpush.msra.mxu0 %v250
      %868 = vmatpush.msra.mxu0 %v247
      %869 = vmatpush.msra.mxu0 %v244
      %870 = vmatpush.msra.mxu0 %v241
      %871 = vmatpush.msra.mxu0 %v238
      %872 = vmatpush.msra.mxu0 %v235
      %873 = vmatmul.f32.gmra.mxu0 %v854
      %v874 = vpop.f32.mrf.mxu0
      %v875 = vadd.f32 0.0, %v874
      %876 = vdwg.mxu0
      %877 = vmatpush.msra.mxu0 %v281
      %878 = vmatpush.msra.mxu0 %v278
      %879 = vmatpush.msra.mxu0 %v275
      %880 = vmatpush.msra.mxu0 %v272
      %881 = vmatpush.msra.mxu0 %v269
      %882 = vmatpush.msra.mxu0 %v266
      %883 = vmatpush.msra.mxu0 %v263
      %884 = vmatpush.msra.mxu0 %v260
      %885 = vmatpush.msra.mxu0 %v257
      %886 = vmatpush.msra.mxu0 %v254
      %887 = vmatpush.msra.mxu0 %v251
      %888 = vmatpush.msra.mxu0 %v248
      %889 = vmatpush.msra.mxu0 %v245
      %890 = vmatpush.msra.mxu0 %v242
      %891 = vmatpush.msra.mxu0 %v239
      %892 = vmatpush.msra.mxu0 %v236
      %893 = vmatmul.f32.gmra.mxu0 %v854
      %v894 = vpop.f32.mrf.mxu0
      %v895 = vadd.f32 0.0, %v894
      %896 = vdwg.mxu0
      %897 = vmatpush.msra.mxu0 %v282
      %898 = vmatpush.msra.mxu0 %v279
      %899 = vmatpush.msra.mxu0 %v276
      %900 = vmatpush.msra.mxu0 %v273
      %901 = vmatpush.msra.mxu0 %v270
      %902 = vmatpush.msra.mxu0 %v267
      %903 = vmatpush.msra.mxu0 %v264
      %904 = vmatpush.msra.mxu0 %v261
      %905 = vmatpush.msra.mxu0 %v258
      %906 = vmatpush.msra.mxu0 %v255
      %907 = vmatpush.msra.mxu0 %v252
      %908 = vmatpush.msra.mxu0 %v249
      %909 = vmatpush.msra.mxu0 %v246
      %910 = vmatpush.msra.mxu0 %v243
      %911 = vmatpush.msra.mxu0 %v240
      %912 = vmatpush.msra.mxu0 %v237
      %913 = vmatmul.f32.gmra.mxu0 %v854
      %v914 = vpop.f32.mrf.mxu0
      %v915 = vadd.f32 0.0, %v914
      %916 = vdwg.mxu0
      %v917 = vadd.f32 %v220, %v875
      %v918 = vxor.u32 %v917, 2147483648
      %v919 = vmul.f32 %v918, 1.442695
      %v920 = vpow.pop %v919
      %v921 = vadd.f32 %v920, 1.0
      %v922 = vrcp.pop %v921
      %v923 = vmul.f32 %v921, %v922
      %v924 = vsub.f32 1.0, %v923
      %v925 = vmul.f32 %v922, %v924
      %v926 = vadd.f32 %v922, %v925
      %vm927 = vweird.f32 %v921
      %vm928 = vweird.f32 %v922
      %vm929 = vmor %vm927, %vm928
      %v930 = vsel %vm929, %v922, %v926
      %v931 = vand.u32 2147483647, %v921
      %vm932 = vcmp.eq.f32.partialorder %v931, 8.507059e+37
      %v933 = vand.u32 %v921, 2147483648
      %v934 = vor.u32 1.1754944e-38, %v933
      %v935 = vsel %vm932, %v934, %v930
      %v936 = vmul.f32 1.0, %v935
      %v937 = vrot.slane %v220, 2
      %v939 = vadd.f32 %v937, %v895
      %v940 = vxor.u32 %v939, 2147483648
      %v941 = vmul.f32 %v940, 1.442695
      %v942 = vpow.pop %v941
      %v943 = vadd.f32 %v942, 1.0
      %v944 = vrcp.pop %v943
      %v945 = vmul.f32 %v943, %v944
      %v946 = vsub.f32 1.0, %v945
      %v947 = vmul.f32 %v944, %v946
      %v948 = vadd.f32 %v944, %v947
      %vm949 = vweird.f32 %v943
      %vm950 = vweird.f32 %v944
      %vm951 = vmor %vm949, %vm950
      %v952 = vsel %vm951, %v944, %v948
      %v953 = vand.u32 2147483647, %v943
      %vm954 = vcmp.eq.f32.partialorder %v953, 8.507059e+37
      %v955 = vand.u32 %v943, 2147483648
      %v956 = vor.u32 1.1754944e-38, %v955
      %v957 = vsel %vm954, %v956, %v952
      %v958 = vmul.f32 1.0, %v957
      %v959 = vadd.f32 %v915, %v285
      %v960 = vmul.f32 %v936, %v959
      %v961 = vrot.slane %v220, 4
      %v963 = vadd.f32 %v961, %v960
      %v964 = vtanh.pop %v963
      %v965 = vsub.f32 1.0, %v958
      %v966 = vmul.f32 %v965, %v964
      %v967 = vmul.f32 %v958, %v854
      %v968 = vadd.f32 %v966, %v967
      %s969 = scalar_lea.vmem [#allocation2], 10
      %970 = vst [vmem:[%s969] sm:$0x3] %v968
      %971 = vmatpush.msra.mxu0 %v280
      %972 = vmatpush.msra.mxu0 %v277
      %973 = vmatpush.msra.mxu0 %v274
      %974 = vmatpush.msra.mxu0 %v271
      %975 = vmatpush.msra.mxu0 %v268
      %976 = vmatpush.msra.mxu0 %v265
      %977 = vmatpush.msra.mxu0 %v262
      %978 = vmatpush.msra.mxu0 %v259
      %979 = vmatpush.msra.mxu0 %v256
      %980 = vmatpush.msra.mxu0 %v253
      %981 = vmatpush.msra.mxu0 %v250
      %982 = vmatpush.msra.mxu0 %v247
      %983 = vmatpush.msra.mxu0 %v244
      %984 = vmatpush.msra.mxu0 %v241
      %985 = vmatpush.msra.mxu0 %v238
      %986 = vmatpush.msra.mxu0 %v235
      %987 = vmatmul.f32.gmra.mxu0 %v968
      %v988 = vpop.f32.mrf.mxu0
      %v989 = vadd.f32 0.0, %v988
      %990 = vdwg.mxu0
      %991 = vmatpush.msra.mxu0 %v281
      %992 = vmatpush.msra.mxu0 %v278
      %993 = vmatpush.msra.mxu0 %v275
      %994 = vmatpush.msra.mxu0 %v272
      %995 = vmatpush.msra.mxu0 %v269
      %996 = vmatpush.msra.mxu0 %v266
      %997 = vmatpush.msra.mxu0 %v263
      %998 = vmatpush.msra.mxu0 %v260
      %999 = vmatpush.msra.mxu0 %v257
      %1000 = vmatpush.msra.mxu0 %v254
      %1001 = vmatpush.msra.mxu0 %v251
      %1002 = vmatpush.msra.mxu0 %v248
      %1003 = vmatpush.msra.mxu0 %v245
      %1004 = vmatpush.msra.mxu0 %v242
      %1005 = vmatpush.msra.mxu0 %v239
      %1006 = vmatpush.msra.mxu0 %v236
      %1007 = vmatmul.f32.gmra.mxu0 %v968
      %v1008 = vpop.f32.mrf.mxu0
      %v1009 = vadd.f32 0.0, %v1008
      %1010 = vdwg.mxu0
      %1011 = vmatpush.msra.mxu0 %v282
      %1012 = vmatpush.msra.mxu0 %v279
      %1013 = vmatpush.msra.mxu0 %v276
      %1014 = vmatpush.msra.mxu0 %v273
      %1015 = vmatpush.msra.mxu0 %v270
      %1016 = vmatpush.msra.mxu0 %v267
      %1017 = vmatpush.msra.mxu0 %v264
      %1018 = vmatpush.msra.mxu0 %v261
      %1019 = vmatpush.msra.mxu0 %v258
      %1020 = vmatpush.msra.mxu0 %v255
      %1021 = vmatpush.msra.mxu0 %v252
      %1022 = vmatpush.msra.mxu0 %v249
      %1023 = vmatpush.msra.mxu0 %v246
      %1024 = vmatpush.msra.mxu0 %v243
      %1025 = vmatpush.msra.mxu0 %v240
      %1026 = vmatpush.msra.mxu0 %v237
      %1027 = vmatmul.f32.gmra.mxu0 %v968
      %v1028 = vpop.f32.mrf.mxu0
      %v1029 = vadd.f32 0.0, %v1028
      %1030 = vdwg.mxu0
      %v1031 = vadd.f32 %v223, %v989
      %v1032 = vxor.u32 %v1031, 2147483648
      %v1033 = vmul.f32 %v1032, 1.442695
      %v1034 = vpow.pop %v1033
      %v1035 = vadd.f32 %v1034, 1.0
      %v1036 = vrcp.pop %v1035
      %v1037 = vmul.f32 %v1035, %v1036
      %v1038 = vsub.f32 1.0, %v1037
      %v1039 = vmul.f32 %v1036, %v1038
      %v1040 = vadd.f32 %v1036, %v1039
      %vm1041 = vweird.f32 %v1035
      %vm1042 = vweird.f32 %v1036
      %vm1043 = vmor %vm1041, %vm1042
      %v1044 = vsel %vm1043, %v1036, %v1040
      %v1045 = vand.u32 2147483647, %v1035
      %vm1046 = vcmp.eq.f32.partialorder %v1045, 8.507059e+37
      %v1047 = vand.u32 %v1035, 2147483648
      %v1048 = vor.u32 1.1754944e-38, %v1047
      %v1049 = vsel %vm1046, %v1048, %v1044
      %v1050 = vmul.f32 1.0, %v1049
      %v1051 = vrot.slane %v223, 2
      %v1053 = vadd.f32 %v1051, %v1009
      %v1054 = vxor.u32 %v1053, 2147483648
      %v1055 = vmul.f32 %v1054, 1.442695
      %v1056 = vpow.pop %v1055
      %v1057 = vadd.f32 %v1056, 1.0
      %v1058 = vrcp.pop %v1057
      %v1059 = vmul.f32 %v1057, %v1058
      %v1060 = vsub.f32 1.0, %v1059
      %v1061 = vmul.f32 %v1058, %v1060
      %v1062 = vadd.f32 %v1058, %v1061
      %vm1063 = vweird.f32 %v1057
      %vm1064 = vweird.f32 %v1058
      %vm1065 = vmor %vm1063, %vm1064
      %v1066 = vsel %vm1065, %v1058, %v1062
      %v1067 = vand.u32 2147483647, %v1057
      %vm1068 = vcmp.eq.f32.partialorder %v1067, 8.507059e+37
      %v1069 = vand.u32 %v1057, 2147483648
      %v1070 = vor.u32 1.1754944e-38, %v1069
      %v1071 = vsel %vm1068, %v1070, %v1066
      %v1072 = vmul.f32 1.0, %v1071
      %v1073 = vadd.f32 %v1029, %v285
      %v1074 = vmul.f32 %v1050, %v1073
      %v1075 = vrot.slane %v223, 4
      %v1077 = vadd.f32 %v1075, %v1074
      %v1078 = vtanh.pop %v1077
      %v1079 = vsub.f32 1.0, %v1072
      %v1080 = vmul.f32 %v1079, %v1078
      %v1081 = vmul.f32 %v1072, %v968
      %v1082 = vadd.f32 %v1080, %v1081
      %s1083 = scalar_lea.vmem [#allocation2], 12
      %1084 = vst [vmem:[%s1083] sm:$0x3] %v1082
      %1085 = vmatpush.msra.mxu0 %v280
      %1086 = vmatpush.msra.mxu0 %v277
      %1087 = vmatpush.msra.mxu0 %v274
      %1088 = vmatpush.msra.mxu0 %v271
      %1089 = vmatpush.msra.mxu0 %v268
      %1090 = vmatpush.msra.mxu0 %v265
      %1091 = vmatpush.msra.mxu0 %v262
      %1092 = vmatpush.msra.mxu0 %v259
      %1093 = vmatpush.msra.mxu0 %v256
      %1094 = vmatpush.msra.mxu0 %v253
      %1095 = vmatpush.msra.mxu0 %v250
      %1096 = vmatpush.msra.mxu0 %v247
      %1097 = vmatpush.msra.mxu0 %v244
      %1098 = vmatpush.msra.mxu0 %v241
      %1099 = vmatpush.msra.mxu0 %v238
      %1100 = vmatpush.msra.mxu0 %v235
      %1101 = vmatmul.f32.gmra.mxu0 %v1082
      %v1102 = vpop.f32.mrf.mxu0
      %v1103 = vadd.f32 0.0, %v1102
      %1104 = vdwg.mxu0
      %1105 = vmatpush.msra.mxu0 %v281
      %1106 = vmatpush.msra.mxu0 %v278
      %1107 = vmatpush.msra.mxu0 %v275
      %1108 = vmatpush.msra.mxu0 %v272
      %1109 = vmatpush.msra.mxu0 %v269
      %1110 = vmatpush.msra.mxu0 %v266
      %1111 = vmatpush.msra.mxu0 %v263
      %1112 = vmatpush.msra.mxu0 %v260
      %1113 = vmatpush.msra.mxu0 %v257
      %1114 = vmatpush.msra.mxu0 %v254
      %1115 = vmatpush.msra.mxu0 %v251
      %1116 = vmatpush.msra.mxu0 %v248
      %1117 = vmatpush.msra.mxu0 %v245
      %1118 = vmatpush.msra.mxu0 %v242
      %1119 = vmatpush.msra.mxu0 %v239
      %1120 = vmatpush.msra.mxu0 %v236
      %1121 = vmatmul.f32.gmra.mxu0 %v1082
      %v1122 = vpop.f32.mrf.mxu0
      %v1123 = vadd.f32 0.0, %v1122
      %1124 = vdwg.mxu0
      %1125 = vmatpush.msra.mxu0 %v282
      %1126 = vmatpush.msra.mxu0 %v279
      %1127 = vmatpush.msra.mxu0 %v276
      %1128 = vmatpush.msra.mxu0 %v273
      %1129 = vmatpush.msra.mxu0 %v270
      %1130 = vmatpush.msra.mxu0 %v267
      %1131 = vmatpush.msra.mxu0 %v264
      %1132 = vmatpush.msra.mxu0 %v261
      %1133 = vmatpush.msra.mxu0 %v258
      %1134 = vmatpush.msra.mxu0 %v255
      %1135 = vmatpush.msra.mxu0 %v252
      %1136 = vmatpush.msra.mxu0 %v249
      %1137 = vmatpush.msra.mxu0 %v246
      %1138 = vmatpush.msra.mxu0 %v243
      %1139 = vmatpush.msra.mxu0 %v240
      %1140 = vmatpush.msra.mxu0 %v237
      %1141 = vmatmul.f32.gmra.mxu0 %v1082
      %v1142 = vpop.f32.mrf.mxu0
      %v1143 = vadd.f32 0.0, %v1142
      %1144 = vdwg.mxu0
      %v1145 = vadd.f32 %v226, %v1103
      %v1146 = vxor.u32 %v1145, 2147483648
      %v1147 = vmul.f32 %v1146, 1.442695
      %v1148 = vpow.pop %v1147
      %v1149 = vadd.f32 %v1148, 1.0
      %v1150 = vrcp.pop %v1149
      %v1151 = vmul.f32 %v1149, %v1150
      %v1152 = vsub.f32 1.0, %v1151
      %v1153 = vmul.f32 %v1150, %v1152
      %v1154 = vadd.f32 %v1150, %v1153
      %vm1155 = vweird.f32 %v1149
      %vm1156 = vweird.f32 %v1150
      %vm1157 = vmor %vm1155, %vm1156
      %v1158 = vsel %vm1157, %v1150, %v1154
      %v1159 = vand.u32 2147483647, %v1149
      %vm1160 = vcmp.eq.f32.partialorder %v1159, 8.507059e+37
      %v1161 = vand.u32 %v1149, 2147483648
      %v1162 = vor.u32 1.1754944e-38, %v1161
      %v1163 = vsel %vm1160, %v1162, %v1158
      %v1164 = vmul.f32 1.0, %v1163
      %v1165 = vrot.slane %v226, 2
      %v1167 = vadd.f32 %v1165, %v1123
      %v1168 = vxor.u32 %v1167, 2147483648
      %v1169 = vmul.f32 %v1168, 1.442695
      %v1170 = vpow.pop %v1169
      %v1171 = vadd.f32 %v1170, 1.0
      %v1172 = vrcp.pop %v1171
      %v1173 = vmul.f32 %v1171, %v1172
      %v1174 = vsub.f32 1.0, %v1173
      %v1175 = vmul.f32 %v1172, %v1174
      %v1176 = vadd.f32 %v1172, %v1175
      %vm1177 = vweird.f32 %v1171
      %vm1178 = vweird.f32 %v1172
      %vm1179 = vmor %vm1177, %vm1178
      %v1180 = vsel %vm1179, %v1172, %v1176
      %v1181 = vand.u32 2147483647, %v1171
      %vm1182 = vcmp.eq.f32.partialorder %v1181, 8.507059e+37
      %v1183 = vand.u32 %v1171, 2147483648
      %v1184 = vor.u32 1.1754944e-38, %v1183
      %v1185 = vsel %vm1182, %v1184, %v1180
      %v1186 = vmul.f32 1.0, %v1185
      %v1187 = vadd.f32 %v1143, %v285
      %v1188 = vmul.f32 %v1164, %v1187
      %v1189 = vrot.slane %v226, 4
      %v1191 = vadd.f32 %v1189, %v1188
      %v1192 = vtanh.pop %v1191
      %v1193 = vsub.f32 1.0, %v1186
      %v1194 = vmul.f32 %v1193, %v1192
      %v1195 = vmul.f32 %v1186, %v1082
      %v1196 = vadd.f32 %v1194, %v1195
      %s1197 = scalar_lea.vmem [#allocation2], 14
      %1198 = vst [vmem:[%s1197] sm:$0x3] %v1196
      %v1199 = vld [vmem:[#allocation2] sm:$0x3]
      %v1200 = vld [vmem:[#allocation2 + $0x2] sm:$0x3]
      %v1201 = vld [vmem:[#allocation2 + $0x4] sm:$0x3]
      %v1202 = vld [vmem:[#allocation2 + $0x6] sm:$0x3]
      %v1203 = vld [vmem:[#allocation2 + $0x8] sm:$0x3]
      %v1204 = vld [vmem:[#allocation2 + $0xa] sm:$0x3]
      %v1205 = vld [vmem:[#allocation2 + $0xc] sm:$0x3]
      %v1206 = vld [vmem:[#allocation2 + $0xe] sm:$0x3]
      %v1207 = vrot.slane %v1201, 4
      %vm1208 = vcmask 1047556
      %v1209 = vsel %vm1208, %v1207, %v1199
      %v1211 = vunpack.c.l.s4 1983009808
      %v1212 = vunpack.c.0.s8 %v1211
      %v1213 = vperm.slane %v1209, %v1212
      %v1214 = vrot.slane %v1202, 4
      %v1215 = vsel %vm1208, %v1214, %v1200
      %v1217 = vunpack.c.l.s4 1983009808
      %v1218 = vunpack.c.0.s8 %v1217
      %v1219 = vperm.slane %v1215, %v1218
      %v1220 = vrot.slane %v1205, 4
      %v1221 = vsel %vm1208, %v1220, %v1203
      %v1223 = vunpack.c.l.s4 1983009808
      %v1224 = vunpack.c.0.s8 %v1223
      %v1225 = vperm.slane %v1221, %v1224
      %v1226 = vrot.slane %v1206, 4
      %v1227 = vsel %vm1208, %v1226, %v1204
      %v1229 = vunpack.c.l.s4 1983009808
      %v1230 = vunpack.c.0.s8 %v1229
      %v1231 = vperm.slane %v1227, %v1230
      %v1232 = vrot.slane %v1219, 4
      %v1233 = vsel %vm1208, %v1232, %v1213
      %v1235 = vunpack.c.l.s4 1934713408
      %v1236 = vunpack.c.0.s8 %v1235
      %v1237 = vperm.slane %v1233, %v1236
      %v1238 = vrot.slane %v1231, 4
      %v1239 = vsel %vm1208, %v1238, %v1225
      %v1241 = vunpack.c.l.s4 1934713408
      %v1242 = vunpack.c.0.s8 %v1241
      %v1243 = vperm.slane %v1239, %v1242
      %v1244 = vrot.slane %v1243, 4
      %v1245 = vsel %vm1208, %v1244, %v1237
      %v1246 = vrot.slane %v1237, 4
      %v1247 = vsel %vm1208, %v1243, %v1246
      %v1248 = vpack.c.bf16 %v1245, %v1245
      %v1249 = vpack.c.bf16 %v1247, %v1247
      %v1250 = vld [vmem:[%s2] sm:$0xf]
      %v1251 = vld [vmem:[%s2 + $0x4] sm:$0xf]
      %1252 = vmatpush.bf16.xpose.msra.mxu0 0
      %1253 = vmatpush.bf16.xpose.msra.mxu0 0
      %1254 = vmatpush.bf16.xpose.msra.mxu0 0
      %1255 = vmatpush.bf16.xpose.msra.mxu0 0
      %1256 = vmatpush.bf16.xpose.msra.mxu0 0
      %1257 = vmatpush.bf16.xpose.msra.mxu0 0
      %1258 = vmatpush.bf16.xpose.msra.mxu0 0
      %1259 = vmatpush.bf16.xpose.msra.mxu0 %v1250
      %1260 = vmatmul.bf16.gmra.mxu0 %v1248
      %v1261 = vpop.f32.mrf.mxu0
      %v1262 = vadd.f32 0.0, %v1261
      %v1263 = vpop.f32.mrf.mxu0
      %1264 = vdwg.mxu0
      %1265 = vmatpush.bf16.xpose.msra.mxu0 0
      %1266 = vmatpush.bf16.xpose.msra.mxu0 0
      %1267 = vmatpush.bf16.xpose.msra.mxu0 0
      %1268 = vmatpush.bf16.xpose.msra.mxu0 0
      %1269 = vmatpush.bf16.xpose.msra.mxu0 0
      %1270 = vmatpush.bf16.xpose.msra.mxu0 0
      %1271 = vmatpush.bf16.xpose.msra.mxu0 0
      %1272 = vmatpush.bf16.xpose.msra.mxu0 %v1251
      %1273 = vmatmul.bf16.gmra.mxu0 %v1249
      %v1274 = vpop.f32.mrf.mxu0
      %v1275 = vadd.f32 0.0, %v1274
      %v1276 = vpop.f32.mrf.mxu0
      %1277 = vdwg.mxu0
      %vm1278 = vcmask 64512
      %v1279 = vsel %vm1278, %v1262, -inf
      %1280 = vmax.xlane.f32.xlu0 %v1279
      %v1281 = vpop.xlane.xlu0 %1280
      %v1282 = vsel %vm1278, %v1275, -inf
      %1283 = vmax.xlane.f32.xlu0 %v1282
      %v1284 = vpop.xlane.xlu0 %1283
      %v1285 = vsub.f32 %v1262, %v1281
      %v1286 = vsub.f32 %v1275, %v1284
      %v1287 = vmul.f32 %v1285, 1.442695
      %v1288 = vpow.pop %v1287
      %v1289 = vmul.f32 %v1286, 1.442695
      %v1290 = vpow.pop %v1289
      %v1291 = vsel %vm1278, %v1288, 0.0
      %1292 = vadd.xlane.f32.xlu0 %v1291
      %v1293 = vpop.xlane.xlu0 %1292
      %v1294 = vsel %vm1278, %v1290, 0.0
      %1295 = vadd.xlane.f32.xlu0 %v1294
      %v1296 = vpop.xlane.xlu0 %1295
      %v1297 = vrcp.pop %v1293
      %v1298 = vrcp.pop %v1296
      %v1299 = vmul.f32 %v1288, %v1297
      %v1300 = vmul.f32 %v1290, %v1298
      %v1301 = vpack.c.bf16 %v1299, %v1299
      %v1302 = vpack.c.bf16 %v1300, %v1300
      %v1304 = vsel %vm1278, %v1301, 0
      %v1307 = vsel %vm201, %v1250, 0
      %1309 = vmatpush.bf16.msra.mxu0 0
      %1310 = vmatpush.bf16.msra.mxu0 0
      %1311 = vmatpush.bf16.msra.mxu0 0
      %1312 = vmatpush.bf16.msra.mxu0 0
      %1313 = vmatpush.bf16.msra.mxu0 0
      %1314 = vmatpush.bf16.msra.mxu0 0
      %1315 = vmatpush.bf16.msra.mxu0 0
      %1316 = vmatpush.bf16.msra.mxu0 %v1307
      %1317 = vmatmul.bf16.gmra.mxu0 %v1304
      %v1318 = vpop.f32.mrf.mxu0
      %v1319 = vadd.f32 0.0, %v1318
      %v1320 = vpop.f32.mrf.mxu0
      %1321 = vdwg.mxu0
      %v1323 = vsel %vm1278, %v1302, 0
      %v1326 = vsel %vm201, %v1251, 0
      %1328 = vmatpush.bf16.msra.mxu0 0
      %1329 = vmatpush.bf16.msra.mxu0 0
      %1330 = vmatpush.bf16.msra.mxu0 0
      %1331 = vmatpush.bf16.msra.mxu0 0
      %1332 = vmatpush.bf16.msra.mxu0 0
      %1333 = vmatpush.bf16.msra.mxu0 0
      %1334 = vmatpush.bf16.msra.mxu0 0
      %1335 = vmatpush.bf16.msra.mxu0 %v1326
      %1336 = vmatmul.bf16.gmra.mxu0 %v1323
      %v1337 = vpop.f32.mrf.mxu0
      %v1338 = vadd.f32 0.0, %v1337
      %v1339 = vpop.f32.mrf.mxu0
      %1340 = vdwg.mxu0
      %v1341 = vpack.c.bf16 %v1338, %v1319
      %v1342 = vld [vmem:[%s7] sm:$0xf]
      %v1343 = vld [vmem:[%s7 + $0x4] sm:$0xf]
      %v1344 = vld [vmem:[%s7 + $0x8] sm:$0xf]
      %v1345 = vld [vmem:[%s7 + $0xc] sm:$0xf]
      %v1346 = vld [vmem:[%s7 + $0x10] sm:$0xf]
      %v1347 = vld [vmem:[%s7 + $0x14] sm:$0xf]
      %v1348 = vld [vmem:[%s7 + $0x18] sm:$0xf]
      %v1349 = vld [vmem:[%s7 + $0x1c] sm:$0xf]
      %v1350 = vld [vmem:[%s7 + $0x20] sm:$0xf]
      %v1351 = vld [vmem:[%s7 + $0x24] sm:$0xf]
      %v1352 = vld [vmem:[%s7 + $0x28] sm:$0xf]
      %v1353 = vld [vmem:[%s7 + $0x2c] sm:$0xf]
      %v1354 = vld [vmem:[%s7 + $0x30] sm:$0xf]
      %v1355 = vld [vmem:[%s7 + $0x34] sm:$0xf]
      %v1356 = vld [vmem:[%s7 + $0x38] sm:$0xf]
      %v1357 = vld [vmem:[%s7 + $0x3c] sm:$0xf]
      %v1358 = vld [vmem:[%s8] sm:$0xf]
      %v1359 = vld [vmem:[%s8 + $0x4] sm:$0xf]
      %v1360 = vld [vmem:[%s8 + $0x8] sm:$0xf]
      %v1361 = vld [vmem:[%s8 + $0xc] sm:$0xf]
      %v1362 = vld [vmem:[%s8 + $0x10] sm:$0xf]
      %v1363 = vld [vmem:[%s8 + $0x14] sm:$0xf]
      %v1364 = vld [vmem:[%s8 + $0x18] sm:$0xf]
      %v1365 = vld [vmem:[%s8 + $0x1c] sm:$0xf]
      %v1366 = vld [vmem:[%s8 + $0x20] sm:$0xf]
      %v1367 = vld [vmem:[%s8 + $0x24] sm:$0xf]
      %v1368 = vld [vmem:[%s8 + $0x28] sm:$0xf]
      %v1369 = vld [vmem:[%s8 + $0x2c] sm:$0xf]
      %v1370 = vld [vmem:[%s8 + $0x30] sm:$0xf]
      %v1371 = vld [vmem:[%s8 + $0x34] sm:$0xf]
      %v1372 = vld [vmem:[%s8 + $0x38] sm:$0xf]
      %v1373 = vld [vmem:[%s8 + $0x3c] sm:$0xf]
      %v1376 = vunpack.c.l.b16 %v1248
      %v1377 = vunpack.c.l.b16 %v1249
      %v1378 = vpack.c.b16 %v1377, %v1376
      %v1396 = vunpack.c.l.b16 %v1358
      %v1397 = vunpack.c.l.b16 %v1359
      %v1398 = vunpack.c.l.b16 %v1360
      %v1399 = vunpack.c.l.b16 %v1361
      %v1400 = vunpack.c.l.b16 %v1362
      %v1401 = vunpack.c.l.b16 %v1363
      %v1402 = vunpack.c.l.b16 %v1364
      %v1403 = vunpack.c.l.b16 %v1365
      %v1404 = vunpack.c.l.b16 %v1366
      %v1405 = vunpack.c.l.b16 %v1367
      %v1406 = vunpack.c.l.b16 %v1368
      %v1407 = vunpack.c.l.b16 %v1369
      %v1408 = vunpack.c.l.b16 %v1370
      %v1409 = vunpack.c.l.b16 %v1371
      %v1410 = vunpack.c.l.b16 %v1372
      %v1411 = vunpack.c.l.b16 %v1373
      %v1412 = vpack.c.b16 %v1397, %v1396
      %v1413 = vpack.c.b16 %v1399, %v1398
      %v1414 = vpack.c.b16 %v1401, %v1400
      %v1415 = vpack.c.b16 %v1403, %v1402
      %v1416 = vpack.c.b16 %v1405, %v1404
      %v1417 = vpack.c.b16 %v1407, %v1406
      %v1418 = vpack.c.b16 %v1409, %v1408
      %v1419 = vpack.c.b16 %v1411, %v1410
      %1428 = vmatpush.bf16.msra.mxu0 %v1419
      %1429 = vmatpush.bf16.msra.mxu0 %v1418
      %1430 = vmatpush.bf16.msra.mxu0 %v1417
      %1431 = vmatpush.bf16.msra.mxu0 %v1416
      %1432 = vmatpush.bf16.msra.mxu0 %v1415
      %1433 = vmatpush.bf16.msra.mxu0 %v1414
      %1434 = vmatpush.bf16.msra.mxu0 %v1413
      %1435 = vmatpush.bf16.msra.mxu0 %v1412
      %1436 = vmatmul.bf16.gmra.mxu0 %v1378
      %v1437 = vpop.f32.mrf.mxu0
      %v1438 = vadd.f32 0.0, %v1437
      %v1439 = vpop.f32.mrf.mxu0
      %v1440 = vadd.f32 0.0, %v1439
      %1441 = vdwg.mxu0
      %v1458 = vunpack.c.l.b16 %v1342
      %v1459 = vunpack.c.l.b16 %v1343
      %v1460 = vunpack.c.l.b16 %v1344
      %v1461 = vunpack.c.l.b16 %v1345
      %v1462 = vunpack.c.l.b16 %v1346
      %v1463 = vunpack.c.l.b16 %v1347
      %v1464 = vunpack.c.l.b16 %v1348
      %v1465 = vunpack.c.l.b16 %v1349
      %v1466 = vunpack.c.l.b16 %v1350
      %v1467 = vunpack.c.l.b16 %v1351
      %v1468 = vunpack.c.l.b16 %v1352
      %v1469 = vunpack.c.l.b16 %v1353
      %v1470 = vunpack.c.l.b16 %v1354
      %v1471 = vunpack.c.l.b16 %v1355
      %v1472 = vunpack.c.l.b16 %v1356
      %v1473 = vunpack.c.l.b16 %v1357
      %v1474 = vpack.c.b16 %v1459, %v1458
      %v1475 = vpack.c.b16 %v1461, %v1460
      %v1476 = vpack.c.b16 %v1463, %v1462
      %v1477 = vpack.c.b16 %v1465, %v1464
      %v1478 = vpack.c.b16 %v1467, %v1466
      %v1479 = vpack.c.b16 %v1469, %v1468
      %v1480 = vpack.c.b16 %v1471, %v1470
      %v1481 = vpack.c.b16 %v1473, %v1472
      %1490 = vmatpush.bf16.msra.mxu0 %v1481
      %1491 = vmatpush.bf16.msra.mxu0 %v1480
      %1492 = vmatpush.bf16.msra.mxu0 %v1479
      %1493 = vmatpush.bf16.msra.mxu0 %v1478
      %1494 = vmatpush.bf16.msra.mxu0 %v1477
      %1495 = vmatpush.bf16.msra.mxu0 %v1476
      %1496 = vmatpush.bf16.msra.mxu0 %v1475
      %1497 = vmatpush.bf16.msra.mxu0 %v1474
      %1498 = vmatmul.bf16.gmra.mxu0 %v1341
      %v1499 = vpop.f32.mrf.mxu0
      %v1500 = vadd.f32 %v1438, %v1499
      %v1501 = vpop.f32.mrf.mxu0
      %v1502 = vadd.f32 %v1440, %v1501
      %1503 = vdwg.mxu0
      %v1504 = vld [vmem:[%s9] sm:$0x1]
      %v1506 = vperm.slane %v1504, 0
      %v1508 = vadd.f32 %v1500, %v1506
      %v1509 = vadd.f32 %v1502, %v1506
      %v1510 = vtanh.pop %v1508
      %v1511 = vtanh.pop %v1509
      %v1512 = vpack.c.bf16 %v1510, %v1510
      %v1513 = vpack.c.bf16 %v1511, %v1511
      %vm1514 = vcmask 519168
      %1515 = vst.msk [vmem:[#allocation3] sm:$0xf] %vm1514, %v1512
      %1516 = vst.msk [vmem:[#allocation3 + $0x4] sm:$0xf] %vm1514, %v1513
    $region57: #{_decoder_forward_impl.1} parent=1 // pred_fallthru
      _
    %s1517 = scalar_lea.vmem [#allocation2], 14
    %v1518 = vld [vmem:[%s1517] sm:$0x3]
    %1519 = vst [vmem:[%s13] sm:$0x3] %v1518
    %v1520 = vld [vmem:[#allocation3] sm:$0xf]
    %v1521 = vld [vmem:[#allocation3 + $0x4] sm:$0xf]
    %v1522 = vld [vmem:[%s10] sm:$0xf]
    %v1523 = vld [vmem:[%s10 + $0x4] sm:$0xf]
    %v1524 = vld [vmem:[%s10 + $0x8] sm:$0xf]
    %v1525 = vld [vmem:[%s10 + $0xc] sm:$0xf]
    %v1526 = vld [vmem:[%s10 + $0x10] sm:$0xf]
    %v1527 = vld [vmem:[%s10 + $0x14] sm:$0xf]
    %v1528 = vld [vmem:[%s10 + $0x18] sm:$0xf]
    %v1529 = vld [vmem:[%s10 + $0x1c] sm:$0xf]
    %v1530 = vld [vmem:[%s11] sm:$0x1]
    %v1532 = vperm.slane %v1530, 0
    %v1536 = vunpack.c.l.b16 %v1520
    %v1537 = vunpack.c.l.b16 %v1521
    %v1538 = vpack.c.b16 %v1537, %v1536
    %v1547 = vunpack.c.l.b16 %v1522
    %v1548 = vunpack.c.l.b16 %v1523
    %v1549 = vunpack.c.l.b16 %v1524
    %v1550 = vunpack.c.l.b16 %v1525
    %v1551 = vunpack.c.l.b16 %v1526
    %v1552 = vunpack.c.l.b16 %v1527
    %v1553 = vunpack.c.l.b16 %v1528
    %v1554 = vunpack.c.l.b16 %v1529
    %v1555 = vpack.c.b16 %v1548, %v1547
    %v1556 = vpack.c.b16 %v1550, %v1549
    %v1557 = vpack.c.b16 %v1552, %v1551
    %v1558 = vpack.c.b16 %v1554, %v1553
    %vm1563 = vcmask 523264
    %v1565 = vsel %vm1563, %v1538, 0
    %1567 = vmatpush.bf16.msra.mxu0 0
    %1568 = vmatpush.bf16.msra.mxu0 0
    %1569 = vmatpush.bf16.msra.mxu0 0
    %1570 = vmatpush.bf16.msra.mxu0 0
    %1571 = vmatpush.bf16.msra.mxu0 %v1558
    %1572 = vmatpush.bf16.msra.mxu0 %v1557
    %1573 = vmatpush.bf16.msra.mxu0 %v1556
    %1574 = vmatpush.bf16.msra.mxu0 %v1555
    %1575 = vmatmul.bf16.gmra.mxu0 %v1565
    %v1576 = vpop.f32.mrf.mxu0
    %v1577 = vadd.f32 %v1532, %v1576
    %v1578 = vpop.f32.mrf.mxu0
    %v1579 = vadd.f32 %v1532, %v1578
    %1580 = vdwg.mxu0
    %v1581 = vpack.c.bf16 %v1577, %v1577
    %v1582 = vpack.c.bf16 %v1579, %v1579
    %1583 = vst [vmem:[%s12] sm:$0xf] %v1581
    %1584 = vst [vmem:[%s12 + $0x4] sm:$0xf] %v1582
    // Predicated region
    $region58: #{_decoder_forward_impl.1} parent=1 // pred_check
      _
    $region59: #{_decoder_forward_impl.1} parent=1 // pred_check_branch
      %1586 = sbr.rel (0) target = $region61
    $region60: #{_decoder_forward_impl.1} parent=1 // pred_region
      _
    $region61: #{_decoder_forward_impl.1} parent=1 // pred_fallthru
      _
    // Predicated region
    $region62: #{_decoder_forward_impl.1} parent=1 // pred_check
      _
    $region63: #{_decoder_forward_impl.1} parent=1 // pred_check_branch
      %1588 = sbr.rel (0) target = $region65
    $region64: #{_decoder_forward_impl.1} parent=1 // pred_region
      _
    $region65: #{_decoder_forward_impl.1} parent=1 // pred_fallthru
      _
    // Predicated region
    $region66: #{_decoder_forward_impl.1} parent=1 // pred_check
      _
    $region67: #{_decoder_forward_impl.1} parent=1 // pred_check_branch
      %1590 = sbr.rel (0) target = $region69
    $region68: #{_decoder_forward_impl.1} parent=1 // pred_region
      _
    $region69: #{_decoder_forward_impl.1} parent=1 // pred_fallthru
      _
    // Predicated region
    $region70: #{_decoder_forward_impl.1} parent=1 // pred_check
      _
    $region71: #{_decoder_forward_impl.1} parent=1 // pred_check_branch
      %1592 = sbr.rel (0) target = $region73
    $region72: #{_decoder_forward_impl.1} parent=1 // pred_region
      _
    $region73: #{_decoder_forward_impl.1} parent=1 // pred_fallthru
      _
    %1593 = vsyncpa [#allocation5], 1

</llo_original>
